<compile_context>
chip_gen: v7x
topology: tpu7x:2x2x1
jax: 0.10.0
libtpu: 0.0.40
codegen_flags: <defaults>
</compile_context>

<pallas_src>
import functools

import jax
import jax.numpy as jnp
from jax.experimental import pallas as pl
from jax.experimental.pallas import tpu as pltpu

# ---------------- hyper-parameters (match the module defaults / small test) -------------------
INPUT_DIM = 4          # feature dim of observed trajectory points
TARGET_DIM = 4         # predicted dim (head outputs mean + raw-sigma -> 2*TARGET_DIM)
N_HEADS = 4
HIDDEN = 32
N_ENC_LAYERS = 2       # n_enc_layers
T_SCALE = 5.0

OUT_DIM = 2 * TARGET_DIM
SLAB_W = max(8, -(-(1 + INPUT_DIM) // 8) * 8)   # packed [t | x | pad] input slab width (lanes)
_DH = HIDDEN // N_HEADS
_ATTN_SCALE = 1.0 / (_DH ** 0.5)
_VMEM_PLAN_BUDGET = 12 * 2 ** 20                # planning cap for per-step footprint

assert HIDDEN % N_HEADS == 0


# ------------------------------------- Pallas kernel ------------------------------------------
def _attn_cnp_kernel(slab_ref, w0_obs_ref, w1_obs_ref, w0_un_ref, w32_ref,
                     wkvo_ref, wh1_ref, b64_ref, b32_ref, bh1_ref, out_ref,
                     *, bb, cb, t_obs, t_un):
    H = HIDDEN
    L = N_ENC_LAYERS
    NH = N_HEADS
    f32 = jnp.float32
    bf16 = jnp.bfloat16

    rows_obs = bb * t_obs            # obs rows per grid step (tile-ordered: obs rows first)
    rk = cb * t_obs                  # obs rows per chunk
    rq = cb * t_un                   # unobs (query) rows per chunk
    n_chunks = bb // cb

    def _start(x):                   # alignment hint for dynamic row starts
        return x if isinstance(x, int) else pl.multiple_of(x, 8)

    def chunk(c):
        k0 = _start(c * rk)
        q0 = _start(rows_obs + c * rq)
        obs = slab_ref[pl.ds(k0, rk), :]                      # (rk, SLAB_W) bf16, [t | x | pad]
        un = slab_ref[pl.ds(q0, rq), :]                       # (rq, SLAB_W) bf16, [t | 0...]

        # --- fused context + obs-time encoder:  comb = [ r | k_emb ]  (rk, 2H) ----------------
        h = jnp.maximum(jnp.dot(obs, w0_obs_ref[...],
                                preferred_element_type=f32) + b64_ref[0:1, :], 0.0)
        comb = (jnp.dot(h.astype(bf16), w1_obs_ref[...],
                        preferred_element_type=f32) + b64_ref[1:2, :]).astype(bf16)

        # --- unobs time encoder -> query embedding / residual stream q (f32) ------------------
        hq = jnp.maximum(jnp.dot(un, w0_un_ref[...],
                                 preferred_element_type=f32) + b32_ref[0:1, :], 0.0)
        q = jnp.dot(hq.astype(bf16), w32_ref[0],
                    preferred_element_type=f32) + b32_ref[1:2, :]                 # (rq, H)

        # --- stacked multi-head cross attention (Q = unobs times, K = obs times, V = r) -------
        for l in range(L):
            Qf = jnp.dot(q.astype(bf16), w32_ref[1 + l],
                         preferred_element_type=f32) + b32_ref[2 + l:3 + l, :]
            Q3 = Qf.astype(bf16).reshape(cb, t_un, H)
            o_acc = jnp.zeros((rq, H), f32)
            for hh in range(NH):
                idx = l * NH + hh
                # head mask + 1/sqrt(dh) scale folded into the K projection weights/bias
                Kh = (jnp.dot(comb, wkvo_ref[2 * idx], preferred_element_type=f32)
                      + b32_ref[8 + idx:9 + idx, :]).astype(bf16)
                K3 = Kh.reshape(cb, t_obs, H)
                s = jnp.einsum('bqd,bkd->bqk', Q3, K3, preferred_element_type=f32)
                s = s - jnp.max(s, axis=-1, keepdims=True)
                p = jnp.exp(s)
                den = jnp.sum(p, axis=-1, keepdims=True)
                inv = pl.reciprocal(den, approx=True)
                inv = inv * (2.0 - den * inv)              # one Newton step -> near-exact softmax
                p = (p * inv).astype(bf16)
                # V @ Wo[head rows] folded into one projection of comb (no concat / lane slice)
                VWh = (jnp.dot(comb, wkvo_ref[2 * idx + 1], preferred_element_type=f32)
                       + b32_ref[8 + L * NH + idx:9 + L * NH + idx, :]).astype(bf16)
                VW3 = VWh.reshape(cb, t_obs, H)
                o_acc = o_acc + jnp.einsum('bqk,bkd->bqd', p, VW3,
                                           preferred_element_type=f32).reshape(rq, H)
            q = q + o_acc + b32_ref[4 + l:5 + l, :]         # residual + output-projection bias

        # --- output head: hidden -> [mean | raw sigma] -----------------------------------------
        hh_ = jnp.maximum(jnp.dot(q.astype(bf16), w32_ref[1 + L],
                                  preferred_element_type=f32) + b32_ref[6:7, :], 0.0)
        outc = jnp.dot(hh_.astype(bf16), wh1_ref[...],
                       preferred_element_type=f32) + bh1_ref[...]                 # (rq, OUT_DIM)
        out_ref[pl.ds(_start(c * rq), rq), :] = outc.astype(out_ref.dtype)

    if n_chunks == 1:
        chunk(0)
    else:
        @pl.loop(0, n_chunks)
        def _(c):
            chunk(c)


# ------------------------------------- parameters ---------------------------------------------
def init_params(key):
    ks = list(jax.random.split(key, 24))

    def lin(k, fan_in, fan_out):
        return jax.random.normal(k, (fan_in, fan_out), jnp.float32) / jnp.sqrt(float(fan_in))

    p = {}
    p["w_in0"] = lin(ks[0], 1 + INPUT_DIM, HIDDEN); p["b_in0"] = jnp.zeros((1, HIDDEN), jnp.float32)
    p["w_in1"] = lin(ks[1], HIDDEN, HIDDEN);        p["b_in1"] = jnp.zeros((1, HIDDEN), jnp.float32)
    p["w_tg0"] = lin(ks[2], 1, HIDDEN);             p["b_tg0"] = jnp.zeros((1, HIDDEN), jnp.float32)
    p["w_tg1"] = lin(ks[3], HIDDEN, HIDDEN);        p["b_tg1"] = jnp.zeros((1, HIDDEN), jnp.float32)
    for i, nm in enumerate(["wq", "wk", "wv", "wo"]):
        p[nm] = jnp.stack([lin(ks[4 + i * N_ENC_LAYERS + l], HIDDEN, HIDDEN)
                           for l in range(N_ENC_LAYERS)], axis=0)               # (L, H, H)
        p["b" + nm[1]] = jnp.zeros((N_ENC_LAYERS, 1, HIDDEN), jnp.float32)      # (L, 1, H)
    p["wh0"] = lin(ks[20], HIDDEN, HIDDEN);         p["bh0"] = jnp.zeros((1, HIDDEN), jnp.float32)
    p["wh1"] = lin(ks[21], HIDDEN, OUT_DIM);        p["bh1"] = jnp.zeros((1, OUT_DIM), jnp.float32)
    return p


def _pack_params(p):
    """Pack / pre-fold the module weights into 9 resident kernel operands (bf16 MXU weights)."""
    H, L, NH, DH = HIDDEN, N_ENC_LAYERS, N_HEADS, _DH
    f32, bf16 = jnp.float32, jnp.bfloat16

    # fused first encoder layer on obs rows: [ input2hidden([t|x]) | target2hidden(t) ]
    w0_obs = jnp.zeros((SLAB_W, 2 * H), f32)
    w0_obs = w0_obs.at[:1 + INPUT_DIM, :H].set(p["w_in0"])
    w0_obs = w0_obs.at[:1, H:].set(p["w_tg0"])
    b0_obs = jnp.concatenate([p["b_in0"], p["b_tg0"]], axis=-1)                  # (1, 2H)
    # fused second encoder layer (block diagonal): comb = [ r | k_emb ]
    w1_obs = jnp.zeros((2 * H, 2 * H), f32)
    w1_obs = w1_obs.at[:H, :H].set(p["w_in1"]).at[H:, H:].set(p["w_tg1"])
    b1_obs = jnp.concatenate([p["b_in1"], p["b_tg1"]], axis=-1)                  # (1, 2H)
    b_64 = jnp.concatenate([b0_obs, b1_obs], axis=0)                             # (2, 2H)

    # unobs time encoder, first layer (K = 1 row, padded to the slab width)
    w0_un = jnp.zeros((SLAB_W, H), f32).at[:1, :].set(p["w_tg0"])

    # (4, H, H): [target2hidden layer-1, Wq_0, Wq_1, head layer-0]
    w_32 = jnp.stack([p["w_tg1"]] + [p["wq"][l] for l in range(L)] + [p["wh0"]], axis=0)

    # per (layer, head): masked+scaled K projection and folded V*Wo projection, both applied to
    # the fused comb = [r | k_emb] stream (contraction depth 2H, no lane slicing in the kernel)
    kvo = []
    for l in range(L):
        for h in range(NH):
            sl = slice(h * DH, (h + 1) * DH)
            wk_mh = jnp.zeros((H, H), f32).at[:, sl].set(p["wk"][l][:, sl]) * _ATTN_SCALE
            w_k = jnp.zeros((2 * H, H), f32).at[H:, :].set(wk_mh)
            w_vo = jnp.zeros((2 * H, H), f32).at[:H, :].set(p["wv"][l][:, sl] @ p["wo"][l][sl, :])
            kvo += [w_k, w_vo]
    w_kvo = jnp.stack(kvo, axis=0)                                               # (2*L*NH, 2H, H)

    # 32-lane bias table
    b_32 = jnp.zeros((8 + 2 * L * NH, H), f32)
    b_32 = b_32.at[0].set(p["b_tg0"][0]).at[1].set(p["b_tg1"][0]).at[6].set(p["bh0"][0])
    for l in range(L):
        b_32 = b_32.at[2 + l].set(p["bq"][l, 0]).at[4 + l].set(p["bo"][l, 0])
        for h in range(NH):
            sl = slice(h * DH, (h + 1) * DH)
            bk_mh = jnp.zeros((H,), f32).at[sl].set(p["bk"][l, 0, sl]) * _ATTN_SCALE
            b_32 = b_32.at[8 + l * NH + h].set(bk_mh)
            b_32 = b_32.at[8 + L * NH + l * NH + h].set(p["bv"][l, 0, sl] @ p["wo"][l][sl, :])

    return dict(w0_obs=w0_obs.astype(bf16), w1_obs=w1_obs.astype(bf16),
                w0_un=w0_un.astype(bf16), w_32=w_32.astype(bf16), w_kvo=w_kvo.astype(bf16),
                w_h1=p["wh1"].astype(bf16), b_64=b_64, b_32=b_32, b_h1=p["bh1"])


# ------------------------------------- tiling plan --------------------------------------------
def _step_bytes(bb, cb, t_obs, t_un):
    """Rough per-grid-step VMEM footprint: double-buffered I/O + weights + chunk intermediates."""
    t_tot = t_obs + t_un
    io = 2 * (bb * t_tot * SLAB_W * 2 + bb * t_un * OUT_DIM * 4)
    weights = 2 * (2 * N_ENC_LAYERS * N_HEADS * 2 * HIDDEN * HIDDEN * 2
                   + 8 * HIDDEN * HIDDEN * 2 + 8192)
    chunk = (cb * t_obs * (2 * HIDDEN) * 4 * 4
             + cb * t_un * HIDDEN * 4 * 8
             + cb * t_un * t_obs * 4 * 4)
    return io + weights + chunk


def _plan_tiles(batch, t_obs, t_un):
    """Pick (batch-tile size bb, in-kernel chunk size cb).

    bb targets >= ~512 rows/grid-step on the smaller stream (amortize ~0.35us step overhead,
    fill the MXU), capped by a VMEM estimate and by ">= 2 grid steps when the batch allows"
    (so v7x's two TensorCores both get work). cb bounds per-chunk live vregs."""
    unit = 1
    while (unit * t_obs) % 8 or (unit * t_un) % 8:
        unit += 1
    t_max, t_min = max(t_obs, t_un), min(t_obs, t_un)
    cb = unit
    while ((cb + unit) * t_max <= 256) and ((cb + unit) * t_obs * t_un <= 8192):
        cb += unit
    n_chunks = 1
    while n_chunks * cb * t_min < 512:
        n_chunks += 1
    bb = n_chunks * cb
    while bb > cb and _step_bytes(bb, cb, t_obs, t_un) > _VMEM_PLAN_BUDGET:
        bb -= cb
    cap = -(-batch // unit) * unit
    if batch > unit:
        cap = min(cap, -(-((batch + 1) // 2) // unit) * unit)   # >= 2 grid steps
    if cap < bb:
        bb = cap
        if cb > bb:
            cb = bb
        else:
            bb = max(cb, (bb // cb) * cb)
    return bb, cb


# ------------------------------------- wrapper -------------------------------------------------
@jax.jit
def baseline_attn_cnp_forward(x_obs, ts_obs, ts_unobs, params):
    """x_obs:(T_obs,B,D), ts_obs:(T_obs,B,1), ts_unobs:(T_un,B,1) -> (T_un,B,2*TARGET_DIM)."""
    # TODO(synk): exact nodetracker `to_scaled_relative_ts` reference unavailable; using
    #             (t - ts_obs[0]) / t_scale, same as the previous kernel.
    t0 = ts_obs[0:1]
    ts_obs_r = (ts_obs - t0) / T_SCALE
    ts_un_r = (ts_unobs - t0) / T_SCALE

    t_obs, batch, d = x_obs.shape
    t_un = ts_unobs.shape[0]
    t_tot = t_obs + t_un
    assert 1 + d <= SLAB_W

    bb, cb = _plan_tiles(batch, t_obs, t_un)
    b_pad = -(-batch // bb) * bb
    num_tiles = b_pad // bb

    # batch-major, slim [t|x] / [t|0] slabs
    x_b = jnp.transpose(x_obs, (1, 0, 2)).astype(jnp.float32)          # (B, T_obs, D)
    to_b = jnp.transpose(ts_obs_r, (1, 0, 2)).astype(jnp.float32)      # (B, T_obs, 1)
    tu_b = jnp.transpose(ts_un_r, (1, 0, 2)).astype(jnp.float32)       # (B, T_un, 1)
    obs_slab = jnp.concatenate(
        [to_b, x_b, jnp.zeros((batch, t_obs, SLAB_W - 1 - d), jnp.float32)], axis=-1)
    un_slab = jnp.concatenate(
        [tu_b, jnp.zeros((batch, t_un, SLAB_W - 1), jnp.float32)], axis=-1)
    if b_pad != batch:
        pad = b_pad - batch
        obs_slab = jnp.concatenate(
            [obs_slab, jnp.zeros((pad, t_obs, SLAB_W), jnp.float32)], axis=0)
        un_slab = jnp.concatenate(
            [un_slab, jnp.zeros((pad, t_un, SLAB_W), jnp.float32)], axis=0)

    # tile-order the rows: per batch tile, all obs rows then all unobs rows (contiguous slices)
    obs_t = obs_slab.reshape(num_tiles, bb * t_obs, SLAB_W)
    un_t = un_slab.reshape(num_tiles, bb * t_un, SLAB_W)
    slab = jnp.concatenate([obs_t, un_t], axis=1).reshape(
        num_tiles * bb * t_tot, SLAB_W).astype(jnp.bfloat16)

    w = _pack_params(params)
    weights = [w["w0_obs"], w["w1_obs"], w["w0_un"], w["w_32"], w["w_kvo"],
               w["w_h1"], w["b_64"], w["b_32"], w["b_h1"]]

    in_specs = [pl.BlockSpec((bb * t_tot, SLAB_W), lambda i: (i, 0))]
    # constant index maps -> weights are DMA'd once and stay resident across grid steps
    in_specs += [pl.BlockSpec(a.shape, (lambda i, nd=a.ndim: (0,) * nd)) for a in weights]
    out_spec = pl.BlockSpec((bb * t_un, OUT_DIM), lambda i: (i, 0))

    est = _step_bytes(bb, cb, t_obs, t_un)
    vmem_limit = int(min(48 * 2 ** 20, max(16 * 2 ** 20, 4 * est)))

    kernel = functools.partial(_attn_cnp_kernel, bb=bb, cb=cb, t_obs=t_obs, t_un=t_un)
    out_flat = pl.pallas_call(
        kernel,
        out_shape=jax.ShapeDtypeStruct((b_pad * t_un, OUT_DIM), jnp.float32),
        grid_spec=pltpu.PrefetchScalarGridSpec(
            num_scalar_prefetch=0,
            grid=(num_tiles,),
            in_specs=in_specs,
            out_specs=out_spec,
        ),
        compiler_params=pltpu.CompilerParams(
            dimension_semantics=("parallel",),
            vmem_limit_bytes=vmem_limit),
    )(slab, *weights)

    # TODO(synk): raw sigma half returned without a positivity transform (softplus/exp), matching
    #             the previous kernel; the AttnCNP reference may apply one inside forward.
    out = out_flat.reshape(b_pad, t_un, OUT_DIM)[:batch]                # (B, T_un, 2*TD)
    return jnp.transpose(out, (1, 0, 2))                                # (T_un, B, 2*TD)


# ------------------------------------- main ----------------------------------------------------
if __name__ == "__main__":
    key = jax.random.PRNGKey(0)
    k_params, k_x = jax.random.split(key)

    B, T_OBS, T_UN = 2, 8, 8
    params = init_params(k_params)

    x_obs = jax.random.normal(k_x, (T_OBS, B, INPUT_DIM), jnp.float32)
    ts_obs = jnp.broadcast_to(
        jnp.arange(T_OBS, dtype=jnp.float32)[:, None, None], (T_OBS, B, 1))
    ts_unobs = jnp.broadcast_to(
        jnp.arange(T_OBS, T_OBS + T_UN, dtype=jnp.float32)[:, None, None], (T_UN, B, 1))

    out = baseline_attn_cnp_forward(x_obs, ts_obs, ts_unobs, params)
    out = jax.block_until_ready(out)
    assert out.shape == (T_UN, B, 2 * TARGET_DIM)
    assert bool(jnp.all(jnp.isfinite(out)))
    print("KERNEL_OK")
</pallas_src>

<mosaic_0001>
module attributes {stable_mosaic.version = 11 : i64} {
  func.func @_attn_cnp_kernel(%arg0: i32, %arg1: memref<16x8xbf16, #tpu.memory_space<vmem>>, %arg2: memref<8x64xbf16, #tpu.memory_space<vmem>>, %arg3: memref<64x64xbf16, #tpu.memory_space<vmem>>, %arg4: memref<8x32xbf16, #tpu.memory_space<vmem>>, %arg5: memref<4x32x32xbf16, #tpu.memory_space<vmem>>, %arg6: memref<16x64x32xbf16, #tpu.memory_space<vmem>>, %arg7: memref<32x8xbf16, #tpu.memory_space<vmem>>, %arg8: memref<2x64xf32, #tpu.memory_space<vmem>>, %arg9: memref<24x32xf32, #tpu.memory_space<vmem>>, %arg10: memref<1x8xf32, #tpu.memory_space<vmem>>, %arg11: memref<8x8xf32, #tpu.memory_space<vmem>>) attributes {dimension_semantics = [#tpu.dimension_semantics<parallel>], iteration_bounds = array<i64: 2>, scalar_prefetch = 0 : i64, scratch_operands = 0 : i64, tpu.core_type = #tpu.core_type<tc>, window_params = [{transform_indices = @transform_0, window_bounds = array<i64: 16, 8>}, {pipeline_mode = #tpu.pipeline_mode<synchronous>, transform_indices = @transform_1, window_bounds = array<i64: 8, 64>}, {pipeline_mode = #tpu.pipeline_mode<synchronous>, transform_indices = @transform_2, window_bounds = array<i64: 64, 64>}, {pipeline_mode = #tpu.pipeline_mode<synchronous>, transform_indices = @transform_3, window_bounds = array<i64: 8, 32>}, {pipeline_mode = #tpu.pipeline_mode<synchronous>, transform_indices = @transform_4, window_bounds = array<i64: 4, 32, 32>}, {pipeline_mode = #tpu.pipeline_mode<synchronous>, transform_indices = @transform_5, window_bounds = array<i64: 16, 64, 32>}, {pipeline_mode = #tpu.pipeline_mode<synchronous>, transform_indices = @transform_6, window_bounds = array<i64: 32, 8>}, {pipeline_mode = #tpu.pipeline_mode<synchronous>, transform_indices = @transform_7, window_bounds = array<i64: 2, 64>}, {pipeline_mode = #tpu.pipeline_mode<synchronous>, transform_indices = @transform_8, window_bounds = array<i64: 24, 32>}, {pipeline_mode = #tpu.pipeline_mode<synchronous>, transform_indices = @transform_9, window_bounds = array<i64: 1, 8>}, {transform_indices = @transform_10, window_bounds = array<i64: 8, 8>}]} {
    %c0 = arith.constant 0 : index
    %c0_0 = arith.constant 0 : index
    %0 = vector.load %arg1[%c0, %c0_0] : memref<16x8xbf16, #tpu.memory_space<vmem>>, vector<8x8xbf16>
    %c8 = arith.constant 8 : index
    %c0_1 = arith.constant 0 : index
    %1 = vector.load %arg1[%c8, %c0_1] : memref<16x8xbf16, #tpu.memory_space<vmem>>, vector<8x8xbf16>
    %c0_2 = arith.constant 0 : index
    %c0_3 = arith.constant 0 : index
    %2 = vector.load %arg2[%c0_2, %c0_3] : memref<8x64xbf16, #tpu.memory_space<vmem>>, vector<8x64xbf16>
    %cst = arith.constant dense<0.000000e+00> : vector<8x64xf32>
    %3 = tpu.matmul %0, %2, %cst {dimension_numbers = #tpu.dot_dimension_numbers<[1], [0], [0], [1], [0, 0, 1, 1], [], []>} : vector<8x8xbf16>, vector<8x64xbf16>, vector<8x64xf32> -> vector<8x64xf32>
    %c0_4 = arith.constant 0 : index
    %c0_5 = arith.constant 0 : index
    %4 = vector.load %arg8[%c0_4, %c0_5] : memref<2x64xf32, #tpu.memory_space<vmem>>, vector<1x64xf32>
    %5 = vector.broadcast %4 : vector<1x64xf32> to vector<8x64xf32>
    %6 = arith.addf %3, %5 : vector<8x64xf32>
    %cst_6 = arith.constant 0.000000e+00 : f32
    %7 = vector.broadcast %cst_6 : f32 to vector<8x64xf32>
    %8 = arith.maximumf %6, %7 : vector<8x64xf32>
    %9 = arith.truncf %8 : vector<8x64xf32> to vector<8x64xbf16>
    %c0_7 = arith.constant 0 : index
    %c0_8 = arith.constant 0 : index
    %10 = vector.load %arg3[%c0_7, %c0_8] : memref<64x64xbf16, #tpu.memory_space<vmem>>, vector<64x64xbf16>
    %cst_9 = arith.constant dense<0.000000e+00> : vector<8x64xf32>
    %11 = tpu.matmul %9, %10, %cst_9 {dimension_numbers = #tpu.dot_dimension_numbers<[1], [0], [0], [1], [0, 0, 1, 1], [], []>} : vector<8x64xbf16>, vector<64x64xbf16>, vector<8x64xf32> -> vector<8x64xf32>
    %c1 = arith.constant 1 : index
    %c0_10 = arith.constant 0 : index
    %12 = vector.load %arg8[%c1, %c0_10] : memref<2x64xf32, #tpu.memory_space<vmem>>, vector<1x64xf32>
    %13 = vector.broadcast %12 : vector<1x64xf32> to vector<8x64xf32>
    %14 = arith.addf %11, %13 : vector<8x64xf32>
    %15 = arith.truncf %14 : vector<8x64xf32> to vector<8x64xbf16>
    %c0_11 = arith.constant 0 : index
    %c0_12 = arith.constant 0 : index
    %16 = vector.load %arg4[%c0_11, %c0_12] : memref<8x32xbf16, #tpu.memory_space<vmem>>, vector<8x32xbf16>
    %cst_13 = arith.constant dense<0.000000e+00> : vector<8x32xf32>
    %17 = tpu.matmul %1, %16, %cst_13 {dimension_numbers = #tpu.dot_dimension_numbers<[1], [0], [0], [1], [0, 0, 1, 1], [], []>} : vector<8x8xbf16>, vector<8x32xbf16>, vector<8x32xf32> -> vector<8x32xf32>
    %c0_14 = arith.constant 0 : index
    %c0_15 = arith.constant 0 : index
    %18 = vector.load %arg9[%c0_14, %c0_15] : memref<24x32xf32, #tpu.memory_space<vmem>>, vector<1x32xf32>
    %19 = vector.broadcast %18 : vector<1x32xf32> to vector<8x32xf32>
    %20 = arith.addf %17, %19 : vector<8x32xf32>
    %cst_16 = arith.constant 0.000000e+00 : f32
    %21 = vector.broadcast %cst_16 : f32 to vector<8x32xf32>
    %22 = arith.maximumf %20, %21 : vector<8x32xf32>
    %23 = arith.truncf %22 : vector<8x32xf32> to vector<8x32xbf16>
    %c0_17 = arith.constant 0 : index
    %c0_18 = arith.constant 0 : index
    %c0_19 = arith.constant 0 : index
    %24 = vector.load %arg5[%c0_17, %c0_18, %c0_19] : memref<4x32x32xbf16, #tpu.memory_space<vmem>>, vector<1x32x32xbf16>
    %25 = vector.shape_cast %24 : vector<1x32x32xbf16> to vector<32x32xbf16>
    %cst_20 = arith.constant dense<0.000000e+00> : vector<8x32xf32>
    %26 = tpu.matmul %23, %25, %cst_20 {dimension_numbers = #tpu.dot_dimension_numbers<[1], [0], [0], [1], [0, 0, 1, 1], [], []>} : vector<8x32xbf16>, vector<32x32xbf16>, vector<8x32xf32> -> vector<8x32xf32>
    %c1_21 = arith.constant 1 : index
    %c0_22 = arith.constant 0 : index
    %27 = vector.load %arg9[%c1_21, %c0_22] : memref<24x32xf32, #tpu.memory_space<vmem>>, vector<1x32xf32>
    %28 = vector.broadcast %27 : vector<1x32xf32> to vector<8x32xf32>
    %29 = arith.addf %26, %28 : vector<8x32xf32>
    %30 = arith.truncf %29 : vector<8x32xf32> to vector<8x32xbf16>
    %c1_23 = arith.constant 1 : index
    %c0_24 = arith.constant 0 : index
    %c0_25 = arith.constant 0 : index
    %31 = vector.load %arg5[%c1_23, %c0_24, %c0_25] : memref<4x32x32xbf16, #tpu.memory_space<vmem>>, vector<1x32x32xbf16>
    %32 = vector.shape_cast %31 : vector<1x32x32xbf16> to vector<32x32xbf16>
    %cst_26 = arith.constant dense<0.000000e+00> : vector<8x32xf32>
    %33 = tpu.matmul %30, %32, %cst_26 {dimension_numbers = #tpu.dot_dimension_numbers<[1], [0], [0], [1], [0, 0, 1, 1], [], []>} : vector<8x32xbf16>, vector<32x32xbf16>, vector<8x32xf32> -> vector<8x32xf32>
    %c2 = arith.constant 2 : index
    %c0_27 = arith.constant 0 : index
    %34 = vector.load %arg9[%c2, %c0_27] : memref<24x32xf32, #tpu.memory_space<vmem>>, vector<1x32xf32>
    %35 = vector.broadcast %34 : vector<1x32xf32> to vector<8x32xf32>
    %36 = arith.addf %33, %35 : vector<8x32xf32>
    %37 = arith.truncf %36 : vector<8x32xf32> to vector<8x32xbf16>
    %38 = vector.shape_cast %37 : vector<8x32xbf16> to vector<1x8x32xbf16>
    %cst_28 = arith.constant 0.000000e+00 : f32
    %39 = vector.broadcast %cst_28 : f32 to vector<8x32xf32>
    %c0_29 = arith.constant 0 : index
    %c0_30 = arith.constant 0 : index
    %c0_31 = arith.constant 0 : index
    %40 = vector.load %arg6[%c0_29, %c0_30, %c0_31] : memref<16x64x32xbf16, #tpu.memory_space<vmem>>, vector<1x64x32xbf16>
    %41 = vector.shape_cast %40 : vector<1x64x32xbf16> to vector<64x32xbf16>
    %cst_32 = arith.constant dense<0.000000e+00> : vector<8x32xf32>
    %42 = tpu.matmul %15, %41, %cst_32 {dimension_numbers = #tpu.dot_dimension_numbers<[1], [0], [0], [1], [0, 0, 1, 1], [], []>} : vector<8x64xbf16>, vector<64x32xbf16>, vector<8x32xf32> -> vector<8x32xf32>
    %c8_33 = arith.constant 8 : index
    %c0_34 = arith.constant 0 : index
    %43 = vector.load %arg9[%c8_33, %c0_34] : memref<24x32xf32, #tpu.memory_space<vmem>>, vector<1x32xf32>
    %44 = vector.broadcast %43 : vector<1x32xf32> to vector<8x32xf32>
    %45 = arith.addf %42, %44 : vector<8x32xf32>
    %46 = arith.truncf %45 : vector<8x32xf32> to vector<8x32xbf16>
    %47 = vector.shape_cast %46 : vector<8x32xbf16> to vector<1x8x32xbf16>
    "tpu.trace_start"() <{level = 10 : i32, message = "bqd,bkd->bqk"}> : () -> ()
    %cst_35 = arith.constant dense<0.000000e+00> : vector<1x8x8xf32>
    %48 = tpu.matmul %38, %47, %cst_35 {dimension_numbers = #tpu.dot_dimension_numbers<[2], [2], [1], [1], [0, 0, 0, 1, 1, 1], [0], [0]>} : vector<1x8x32xbf16>, vector<1x8x32xbf16>, vector<1x8x8xf32> -> vector<1x8x8xf32>
    "tpu.trace_stop"() : () -> ()
    %cst_36 = arith.constant dense<0xFF800000> : vector<1x8xf32>
    %49 = vector.multi_reduction <maximumf>, %48, %cst_36 [2] : vector<1x8x8xf32> to vector<1x8xf32>
    %50 = vector.shape_cast %49 : vector<1x8xf32> to vector<1x8x1xf32>
    %51 = vector.broadcast %50 : vector<1x8x1xf32> to vector<1x8x8xf32>
    %52 = arith.subf %48, %51 : vector<1x8x8xf32>
    %53 = math.exp %52 : vector<1x8x8xf32>
    %cst_37 = arith.constant dense<0.000000e+00> : vector<1x8xf32>
    %54 = vector.multi_reduction <add>, %53, %cst_37 [2] : vector<1x8x8xf32> to vector<1x8xf32>
    %55 = vector.shape_cast %54 : vector<1x8xf32> to vector<1x8x1xf32>
    %56 = tpu.reciprocal %55 {approx = true} : vector<1x8x1xf32> -> vector<1x8x1xf32>
    %57 = arith.mulf %55, %56 : vector<1x8x1xf32>
    %cst_38 = arith.constant 2.000000e+00 : f32
    %58 = vector.broadcast %cst_38 : f32 to vector<1x8x1xf32>
    %59 = arith.subf %58, %57 : vector<1x8x1xf32>
    %60 = arith.mulf %56, %59 : vector<1x8x1xf32>
    %61 = vector.broadcast %60 : vector<1x8x1xf32> to vector<1x8x8xf32>
    %62 = arith.mulf %53, %61 : vector<1x8x8xf32>
    %63 = arith.truncf %62 : vector<1x8x8xf32> to vector<1x8x8xbf16>
    %c1_39 = arith.constant 1 : index
    %c0_40 = arith.constant 0 : index
    %c0_41 = arith.constant 0 : index
    %64 = vector.load %arg6[%c1_39, %c0_40, %c0_41] : memref<16x64x32xbf16, #tpu.memory_space<vmem>>, vector<1x64x32xbf16>
    %65 = vector.shape_cast %64 : vector<1x64x32xbf16> to vector<64x32xbf16>
    %cst_42 = arith.constant dense<0.000000e+00> : vector<8x32xf32>
    %66 = tpu.matmul %15, %65, %cst_42 {dimension_numbers = #tpu.dot_dimension_numbers<[1], [0], [0], [1], [0, 0, 1, 1], [], []>} : vector<8x64xbf16>, vector<64x32xbf16>, vector<8x32xf32> -> vector<8x32xf32>
    %c16 = arith.constant 16 : index
    %c0_43 = arith.constant 0 : index
    %67 = vector.load %arg9[%c16, %c0_43] : memref<24x32xf32, #tpu.memory_space<vmem>>, vector<1x32xf32>
    %68 = vector.broadcast %67 : vector<1x32xf32> to vector<8x32xf32>
    %69 = arith.addf %66, %68 : vector<8x32xf32>
    %70 = arith.truncf %69 : vector<8x32xf32> to vector<8x32xbf16>
    %71 = vector.shape_cast %70 : vector<8x32xbf16> to vector<1x8x32xbf16>
    "tpu.trace_start"() <{level = 10 : i32, message = "bqk,bkd->bqd"}> : () -> ()
    %cst_44 = arith.constant dense<0.000000e+00> : vector<1x8x32xf32>
    %72 = tpu.matmul %63, %71, %cst_44 {dimension_numbers = #tpu.dot_dimension_numbers<[2], [1], [1], [2], [0, 0, 0, 1, 1, 2], [0], [0]>} : vector<1x8x8xbf16>, vector<1x8x32xbf16>, vector<1x8x32xf32> -> vector<1x8x32xf32>
    "tpu.trace_stop"() : () -> ()
    %73 = vector.shape_cast %72 : vector<1x8x32xf32> to vector<8x32xf32>
    %74 = arith.addf %39, %73 : vector<8x32xf32>
    %c2_45 = arith.constant 2 : index
    %c0_46 = arith.constant 0 : index
    %c0_47 = arith.constant 0 : index
    %75 = vector.load %arg6[%c2_45, %c0_46, %c0_47] : memref<16x64x32xbf16, #tpu.memory_space<vmem>>, vector<1x64x32xbf16>
    %76 = vector.shape_cast %75 : vector<1x64x32xbf16> to vector<64x32xbf16>
    %cst_48 = arith.constant dense<0.000000e+00> : vector<8x32xf32>
    %77 = tpu.matmul %15, %76, %cst_48 {dimension_numbers = #tpu.dot_dimension_numbers<[1], [0], [0], [1], [0, 0, 1, 1], [], []>} : vector<8x64xbf16>, vector<64x32xbf16>, vector<8x32xf32> -> vector<8x32xf32>
    %c9 = arith.constant 9 : index
    %c0_49 = arith.constant 0 : index
    %78 = vector.load %arg9[%c9, %c0_49] : memref<24x32xf32, #tpu.memory_space<vmem>>, vector<1x32xf32>
    %79 = vector.broadcast %78 : vector<1x32xf32> to vector<8x32xf32>
    %80 = arith.addf %77, %79 : vector<8x32xf32>
    %81 = arith.truncf %80 : vector<8x32xf32> to vector<8x32xbf16>
    %82 = vector.shape_cast %81 : vector<8x32xbf16> to vector<1x8x32xbf16>
    "tpu.trace_start"() <{level = 10 : i32, message = "bqd,bkd->bqk"}> : () -> ()
    %cst_50 = arith.constant dense<0.000000e+00> : vector<1x8x8xf32>
    %83 = tpu.matmul %38, %82, %cst_50 {dimension_numbers = #tpu.dot_dimension_numbers<[2], [2], [1], [1], [0, 0, 0, 1, 1, 1], [0], [0]>} : vector<1x8x32xbf16>, vector<1x8x32xbf16>, vector<1x8x8xf32> -> vector<1x8x8xf32>
    "tpu.trace_stop"() : () -> ()
    %cst_51 = arith.constant dense<0xFF800000> : vector<1x8xf32>
    %84 = vector.multi_reduction <maximumf>, %83, %cst_51 [2] : vector<1x8x8xf32> to vector<1x8xf32>
    %85 = vector.shape_cast %84 : vector<1x8xf32> to vector<1x8x1xf32>
    %86 = vector.broadcast %85 : vector<1x8x1xf32> to vector<1x8x8xf32>
    %87 = arith.subf %83, %86 : vector<1x8x8xf32>
    %88 = math.exp %87 : vector<1x8x8xf32>
    %cst_52 = arith.constant dense<0.000000e+00> : vector<1x8xf32>
    %89 = vector.multi_reduction <add>, %88, %cst_52 [2] : vector<1x8x8xf32> to vector<1x8xf32>
    %90 = vector.shape_cast %89 : vector<1x8xf32> to vector<1x8x1xf32>
    %91 = tpu.reciprocal %90 {approx = true} : vector<1x8x1xf32> -> vector<1x8x1xf32>
    %92 = arith.mulf %90, %91 : vector<1x8x1xf32>
    %cst_53 = arith.constant 2.000000e+00 : f32
    %93 = vector.broadcast %cst_53 : f32 to vector<1x8x1xf32>
    %94 = arith.subf %93, %92 : vector<1x8x1xf32>
    %95 = arith.mulf %91, %94 : vector<1x8x1xf32>
    %96 = vector.broadcast %95 : vector<1x8x1xf32> to vector<1x8x8xf32>
    %97 = arith.mulf %88, %96 : vector<1x8x8xf32>
    %98 = arith.truncf %97 : vector<1x8x8xf32> to vector<1x8x8xbf16>
    %c3 = arith.constant 3 : index
    %c0_54 = arith.constant 0 : index
    %c0_55 = arith.constant 0 : index
    %99 = vector.load %arg6[%c3, %c0_54, %c0_55] : memref<16x64x32xbf16, #tpu.memory_space<vmem>>, vector<1x64x32xbf16>
    %100 = vector.shape_cast %99 : vector<1x64x32xbf16> to vector<64x32xbf16>
    %cst_56 = arith.constant dense<0.000000e+00> : vector<8x32xf32>
    %101 = tpu.matmul %15, %100, %cst_56 {dimension_numbers = #tpu.dot_dimension_numbers<[1], [0], [0], [1], [0, 0, 1, 1], [], []>} : vector<8x64xbf16>, vector<64x32xbf16>, vector<8x32xf32> -> vector<8x32xf32>
    %c17 = arith.constant 17 : index
    %c0_57 = arith.constant 0 : index
    %102 = vector.load %arg9[%c17, %c0_57] : memref<24x32xf32, #tpu.memory_space<vmem>>, vector<1x32xf32>
    %103 = vector.broadcast %102 : vector<1x32xf32> to vector<8x32xf32>
    %104 = arith.addf %101, %103 : vector<8x32xf32>
    %105 = arith.truncf %104 : vector<8x32xf32> to vector<8x32xbf16>
    %106 = vector.shape_cast %105 : vector<8x32xbf16> to vector<1x8x32xbf16>
    "tpu.trace_start"() <{level = 10 : i32, message = "bqk,bkd->bqd"}> : () -> ()
    %cst_58 = arith.constant dense<0.000000e+00> : vector<1x8x32xf32>
    %107 = tpu.matmul %98, %106, %cst_58 {dimension_numbers = #tpu.dot_dimension_numbers<[2], [1], [1], [2], [0, 0, 0, 1, 1, 2], [0], [0]>} : vector<1x8x8xbf16>, vector<1x8x32xbf16>, vector<1x8x32xf32> -> vector<1x8x32xf32>
    "tpu.trace_stop"() : () -> ()
    %108 = vector.shape_cast %107 : vector<1x8x32xf32> to vector<8x32xf32>
    %109 = arith.addf %74, %108 : vector<8x32xf32>
    %c4 = arith.constant 4 : index
    %c0_59 = arith.constant 0 : index
    %c0_60 = arith.constant 0 : index
    %110 = vector.load %arg6[%c4, %c0_59, %c0_60] : memref<16x64x32xbf16, #tpu.memory_space<vmem>>, vector<1x64x32xbf16>
    %111 = vector.shape_cast %110 : vector<1x64x32xbf16> to vector<64x32xbf16>
    %cst_61 = arith.constant dense<0.000000e+00> : vector<8x32xf32>
    %112 = tpu.matmul %15, %111, %cst_61 {dimension_numbers = #tpu.dot_dimension_numbers<[1], [0], [0], [1], [0, 0, 1, 1], [], []>} : vector<8x64xbf16>, vector<64x32xbf16>, vector<8x32xf32> -> vector<8x32xf32>
    %c10 = arith.constant 10 : index
    %c0_62 = arith.constant 0 : index
    %113 = vector.load %arg9[%c10, %c0_62] : memref<24x32xf32, #tpu.memory_space<vmem>>, vector<1x32xf32>
    %114 = vector.broadcast %113 : vector<1x32xf32> to vector<8x32xf32>
    %115 = arith.addf %112, %114 : vector<8x32xf32>
    %116 = arith.truncf %115 : vector<8x32xf32> to vector<8x32xbf16>
    %117 = vector.shape_cast %116 : vector<8x32xbf16> to vector<1x8x32xbf16>
    "tpu.trace_start"() <{level = 10 : i32, message = "bqd,bkd->bqk"}> : () -> ()
    %cst_63 = arith.constant dense<0.000000e+00> : vector<1x8x8xf32>
    %118 = tpu.matmul %38, %117, %cst_63 {dimension_numbers = #tpu.dot_dimension_numbers<[2], [2], [1], [1], [0, 0, 0, 1, 1, 1], [0], [0]>} : vector<1x8x32xbf16>, vector<1x8x32xbf16>, vector<1x8x8xf32> -> vector<1x8x8xf32>
    "tpu.trace_stop"() : () -> ()
    %cst_64 = arith.constant dense<0xFF800000> : vector<1x8xf32>
    %119 = vector.multi_reduction <maximumf>, %118, %cst_64 [2] : vector<1x8x8xf32> to vector<1x8xf32>
    %120 = vector.shape_cast %119 : vector<1x8xf32> to vector<1x8x1xf32>
    %121 = vector.broadcast %120 : vector<1x8x1xf32> to vector<1x8x8xf32>
    %122 = arith.subf %118, %121 : vector<1x8x8xf32>
    %123 = math.exp %122 : vector<1x8x8xf32>
    %cst_65 = arith.constant dense<0.000000e+00> : vector<1x8xf32>
    %124 = vector.multi_reduction <add>, %123, %cst_65 [2] : vector<1x8x8xf32> to vector<1x8xf32>
    %125 = vector.shape_cast %124 : vector<1x8xf32> to vector<1x8x1xf32>
    %126 = tpu.reciprocal %125 {approx = true} : vector<1x8x1xf32> -> vector<1x8x1xf32>
    %127 = arith.mulf %125, %126 : vector<1x8x1xf32>
    %cst_66 = arith.constant 2.000000e+00 : f32
    %128 = vector.broadcast %cst_66 : f32 to vector<1x8x1xf32>
    %129 = arith.subf %128, %127 : vector<1x8x1xf32>
    %130 = arith.mulf %126, %129 : vector<1x8x1xf32>
    %131 = vector.broadcast %130 : vector<1x8x1xf32> to vector<1x8x8xf32>
    %132 = arith.mulf %123, %131 : vector<1x8x8xf32>
    %133 = arith.truncf %132 : vector<1x8x8xf32> to vector<1x8x8xbf16>
    %c5 = arith.constant 5 : index
    %c0_67 = arith.constant 0 : index
    %c0_68 = arith.constant 0 : index
    %134 = vector.load %arg6[%c5, %c0_67, %c0_68] : memref<16x64x32xbf16, #tpu.memory_space<vmem>>, vector<1x64x32xbf16>
    %135 = vector.shape_cast %134 : vector<1x64x32xbf16> to vector<64x32xbf16>
    %cst_69 = arith.constant dense<0.000000e+00> : vector<8x32xf32>
    %136 = tpu.matmul %15, %135, %cst_69 {dimension_numbers = #tpu.dot_dimension_numbers<[1], [0], [0], [1], [0, 0, 1, 1], [], []>} : vector<8x64xbf16>, vector<64x32xbf16>, vector<8x32xf32> -> vector<8x32xf32>
    %c18 = arith.constant 18 : index
    %c0_70 = arith.constant 0 : index
    %137 = vector.load %arg9[%c18, %c0_70] : memref<24x32xf32, #tpu.memory_space<vmem>>, vector<1x32xf32>
    %138 = vector.broadcast %137 : vector<1x32xf32> to vector<8x32xf32>
    %139 = arith.addf %136, %138 : vector<8x32xf32>
    %140 = arith.truncf %139 : vector<8x32xf32> to vector<8x32xbf16>
    %141 = vector.shape_cast %140 : vector<8x32xbf16> to vector<1x8x32xbf16>
    "tpu.trace_start"() <{level = 10 : i32, message = "bqk,bkd->bqd"}> : () -> ()
    %cst_71 = arith.constant dense<0.000000e+00> : vector<1x8x32xf32>
    %142 = tpu.matmul %133, %141, %cst_71 {dimension_numbers = #tpu.dot_dimension_numbers<[2], [1], [1], [2], [0, 0, 0, 1, 1, 2], [0], [0]>} : vector<1x8x8xbf16>, vector<1x8x32xbf16>, vector<1x8x32xf32> -> vector<1x8x32xf32>
    "tpu.trace_stop"() : () -> ()
    %143 = vector.shape_cast %142 : vector<1x8x32xf32> to vector<8x32xf32>
    %144 = arith.addf %109, %143 : vector<8x32xf32>
    %c6 = arith.constant 6 : index
    %c0_72 = arith.constant 0 : index
    %c0_73 = arith.constant 0 : index
    %145 = vector.load %arg6[%c6, %c0_72, %c0_73] : memref<16x64x32xbf16, #tpu.memory_space<vmem>>, vector<1x64x32xbf16>
    %146 = vector.shape_cast %145 : vector<1x64x32xbf16> to vector<64x32xbf16>
    %cst_74 = arith.constant dense<0.000000e+00> : vector<8x32xf32>
    %147 = tpu.matmul %15, %146, %cst_74 {dimension_numbers = #tpu.dot_dimension_numbers<[1], [0], [0], [1], [0, 0, 1, 1], [], []>} : vector<8x64xbf16>, vector<64x32xbf16>, vector<8x32xf32> -> vector<8x32xf32>
    %c11 = arith.constant 11 : index
    %c0_75 = arith.constant 0 : index
    %148 = vector.load %arg9[%c11, %c0_75] : memref<24x32xf32, #tpu.memory_space<vmem>>, vector<1x32xf32>
    %149 = vector.broadcast %148 : vector<1x32xf32> to vector<8x32xf32>
    %150 = arith.addf %147, %149 : vector<8x32xf32>
    %151 = arith.truncf %150 : vector<8x32xf32> to vector<8x32xbf16>
    %152 = vector.shape_cast %151 : vector<8x32xbf16> to vector<1x8x32xbf16>
    "tpu.trace_start"() <{level = 10 : i32, message = "bqd,bkd->bqk"}> : () -> ()
    %cst_76 = arith.constant dense<0.000000e+00> : vector<1x8x8xf32>
    %153 = tpu.matmul %38, %152, %cst_76 {dimension_numbers = #tpu.dot_dimension_numbers<[2], [2], [1], [1], [0, 0, 0, 1, 1, 1], [0], [0]>} : vector<1x8x32xbf16>, vector<1x8x32xbf16>, vector<1x8x8xf32> -> vector<1x8x8xf32>
    "tpu.trace_stop"() : () -> ()
    %cst_77 = arith.constant dense<0xFF800000> : vector<1x8xf32>
    %154 = vector.multi_reduction <maximumf>, %153, %cst_77 [2] : vector<1x8x8xf32> to vector<1x8xf32>
    %155 = vector.shape_cast %154 : vector<1x8xf32> to vector<1x8x1xf32>
    %156 = vector.broadcast %155 : vector<1x8x1xf32> to vector<1x8x8xf32>
    %157 = arith.subf %153, %156 : vector<1x8x8xf32>
    %158 = math.exp %157 : vector<1x8x8xf32>
    %cst_78 = arith.constant dense<0.000000e+00> : vector<1x8xf32>
    %159 = vector.multi_reduction <add>, %158, %cst_78 [2] : vector<1x8x8xf32> to vector<1x8xf32>
    %160 = vector.shape_cast %159 : vector<1x8xf32> to vector<1x8x1xf32>
    %161 = tpu.reciprocal %160 {approx = true} : vector<1x8x1xf32> -> vector<1x8x1xf32>
    %162 = arith.mulf %160, %161 : vector<1x8x1xf32>
    %cst_79 = arith.constant 2.000000e+00 : f32
    %163 = vector.broadcast %cst_79 : f32 to vector<1x8x1xf32>
    %164 = arith.subf %163, %162 : vector<1x8x1xf32>
    %165 = arith.mulf %161, %164 : vector<1x8x1xf32>
    %166 = vector.broadcast %165 : vector<1x8x1xf32> to vector<1x8x8xf32>
    %167 = arith.mulf %158, %166 : vector<1x8x8xf32>
    %168 = arith.truncf %167 : vector<1x8x8xf32> to vector<1x8x8xbf16>
    %c7 = arith.constant 7 : index
    %c0_80 = arith.constant 0 : index
    %c0_81 = arith.constant 0 : index
    %169 = vector.load %arg6[%c7, %c0_80, %c0_81] : memref<16x64x32xbf16, #tpu.memory_space<vmem>>, vector<1x64x32xbf16>
    %170 = vector.shape_cast %169 : vector<1x64x32xbf16> to vector<64x32xbf16>
    %cst_82 = arith.constant dense<0.000000e+00> : vector<8x32xf32>
    %171 = tpu.matmul %15, %170, %cst_82 {dimension_numbers = #tpu.dot_dimension_numbers<[1], [0], [0], [1], [0, 0, 1, 1], [], []>} : vector<8x64xbf16>, vector<64x32xbf16>, vector<8x32xf32> -> vector<8x32xf32>
    %c19 = arith.constant 19 : index
    %c0_83 = arith.constant 0 : index
    %172 = vector.load %arg9[%c19, %c0_83] : memref<24x32xf32, #tpu.memory_space<vmem>>, vector<1x32xf32>
    %173 = vector.broadcast %172 : vector<1x32xf32> to vector<8x32xf32>
    %174 = arith.addf %171, %173 : vector<8x32xf32>
    %175 = arith.truncf %174 : vector<8x32xf32> to vector<8x32xbf16>
    %176 = vector.shape_cast %175 : vector<8x32xbf16> to vector<1x8x32xbf16>
    "tpu.trace_start"() <{level = 10 : i32, message = "bqk,bkd->bqd"}> : () -> ()
    %cst_84 = arith.constant dense<0.000000e+00> : vector<1x8x32xf32>
    %177 = tpu.matmul %168, %176, %cst_84 {dimension_numbers = #tpu.dot_dimension_numbers<[2], [1], [1], [2], [0, 0, 0, 1, 1, 2], [0], [0]>} : vector<1x8x8xbf16>, vector<1x8x32xbf16>, vector<1x8x32xf32> -> vector<1x8x32xf32>
    "tpu.trace_stop"() : () -> ()
    %178 = vector.shape_cast %177 : vector<1x8x32xf32> to vector<8x32xf32>
    %179 = arith.addf %144, %178 : vector<8x32xf32>
    %180 = arith.addf %29, %179 : vector<8x32xf32>
    %c4_85 = arith.constant 4 : index
    %c0_86 = arith.constant 0 : index
    %181 = vector.load %arg9[%c4_85, %c0_86] : memref<24x32xf32, #tpu.memory_space<vmem>>, vector<1x32xf32>
    %182 = vector.broadcast %181 : vector<1x32xf32> to vector<8x32xf32>
    %183 = arith.addf %180, %182 : vector<8x32xf32>
    %184 = arith.truncf %183 : vector<8x32xf32> to vector<8x32xbf16>
    %c2_87 = arith.constant 2 : index
    %c0_88 = arith.constant 0 : index
    %c0_89 = arith.constant 0 : index
    %185 = vector.load %arg5[%c2_87, %c0_88, %c0_89] : memref<4x32x32xbf16, #tpu.memory_space<vmem>>, vector<1x32x32xbf16>
    %186 = vector.shape_cast %185 : vector<1x32x32xbf16> to vector<32x32xbf16>
    %cst_90 = arith.constant dense<0.000000e+00> : vector<8x32xf32>
    %187 = tpu.matmul %184, %186, %cst_90 {dimension_numbers = #tpu.dot_dimension_numbers<[1], [0], [0], [1], [0, 0, 1, 1], [], []>} : vector<8x32xbf16>, vector<32x32xbf16>, vector<8x32xf32> -> vector<8x32xf32>
    %c3_91 = arith.constant 3 : index
    %c0_92 = arith.constant 0 : index
    %188 = vector.load %arg9[%c3_91, %c0_92] : memref<24x32xf32, #tpu.memory_space<vmem>>, vector<1x32xf32>
    %189 = vector.broadcast %188 : vector<1x32xf32> to vector<8x32xf32>
    %190 = arith.addf %187, %189 : vector<8x32xf32>
    %191 = arith.truncf %190 : vector<8x32xf32> to vector<8x32xbf16>
    %192 = vector.shape_cast %191 : vector<8x32xbf16> to vector<1x8x32xbf16>
    %cst_93 = arith.constant 0.000000e+00 : f32
    %193 = vector.broadcast %cst_93 : f32 to vector<8x32xf32>
    %c8_94 = arith.constant 8 : index
    %c0_95 = arith.constant 0 : index
    %c0_96 = arith.constant 0 : index
    %194 = vector.load %arg6[%c8_94, %c0_95, %c0_96] : memref<16x64x32xbf16, #tpu.memory_space<vmem>>, vector<1x64x32xbf16>
    %195 = vector.shape_cast %194 : vector<1x64x32xbf16> to vector<64x32xbf16>
    %cst_97 = arith.constant dense<0.000000e+00> : vector<8x32xf32>
    %196 = tpu.matmul %15, %195, %cst_97 {dimension_numbers = #tpu.dot_dimension_numbers<[1], [0], [0], [1], [0, 0, 1, 1], [], []>} : vector<8x64xbf16>, vector<64x32xbf16>, vector<8x32xf32> -> vector<8x32xf32>
    %c12 = arith.constant 12 : index
    %c0_98 = arith.constant 0 : index
    %197 = vector.load %arg9[%c12, %c0_98] : memref<24x32xf32, #tpu.memory_space<vmem>>, vector<1x32xf32>
    %198 = vector.broadcast %197 : vector<1x32xf32> to vector<8x32xf32>
    %199 = arith.addf %196, %198 : vector<8x32xf32>
    %200 = arith.truncf %199 : vector<8x32xf32> to vector<8x32xbf16>
    %201 = vector.shape_cast %200 : vector<8x32xbf16> to vector<1x8x32xbf16>
    "tpu.trace_start"() <{level = 10 : i32, message = "bqd,bkd->bqk"}> : () -> ()
    %cst_99 = arith.constant dense<0.000000e+00> : vector<1x8x8xf32>
    %202 = tpu.matmul %192, %201, %cst_99 {dimension_numbers = #tpu.dot_dimension_numbers<[2], [2], [1], [1], [0, 0, 0, 1, 1, 1], [0], [0]>} : vector<1x8x32xbf16>, vector<1x8x32xbf16>, vector<1x8x8xf32> -> vector<1x8x8xf32>
    "tpu.trace_stop"() : () -> ()
    %cst_100 = arith.constant dense<0xFF800000> : vector<1x8xf32>
    %203 = vector.multi_reduction <maximumf>, %202, %cst_100 [2] : vector<1x8x8xf32> to vector<1x8xf32>
    %204 = vector.shape_cast %203 : vector<1x8xf32> to vector<1x8x1xf32>
    %205 = vector.broadcast %204 : vector<1x8x1xf32> to vector<1x8x8xf32>
    %206 = arith.subf %202, %205 : vector<1x8x8xf32>
    %207 = math.exp %206 : vector<1x8x8xf32>
    %cst_101 = arith.constant dense<0.000000e+00> : vector<1x8xf32>
    %208 = vector.multi_reduction <add>, %207, %cst_101 [2] : vector<1x8x8xf32> to vector<1x8xf32>
    %209 = vector.shape_cast %208 : vector<1x8xf32> to vector<1x8x1xf32>
    %210 = tpu.reciprocal %209 {approx = true} : vector<1x8x1xf32> -> vector<1x8x1xf32>
    %211 = arith.mulf %209, %210 : vector<1x8x1xf32>
    %cst_102 = arith.constant 2.000000e+00 : f32
    %212 = vector.broadcast %cst_102 : f32 to vector<1x8x1xf32>
    %213 = arith.subf %212, %211 : vector<1x8x1xf32>
    %214 = arith.mulf %210, %213 : vector<1x8x1xf32>
    %215 = vector.broadcast %214 : vector<1x8x1xf32> to vector<1x8x8xf32>
    %216 = arith.mulf %207, %215 : vector<1x8x8xf32>
    %217 = arith.truncf %216 : vector<1x8x8xf32> to vector<1x8x8xbf16>
    %c9_103 = arith.constant 9 : index
    %c0_104 = arith.constant 0 : index
    %c0_105 = arith.constant 0 : index
    %218 = vector.load %arg6[%c9_103, %c0_104, %c0_105] : memref<16x64x32xbf16, #tpu.memory_space<vmem>>, vector<1x64x32xbf16>
    %219 = vector.shape_cast %218 : vector<1x64x32xbf16> to vector<64x32xbf16>
    %cst_106 = arith.constant dense<0.000000e+00> : vector<8x32xf32>
    %220 = tpu.matmul %15, %219, %cst_106 {dimension_numbers = #tpu.dot_dimension_numbers<[1], [0], [0], [1], [0, 0, 1, 1], [], []>} : vector<8x64xbf16>, vector<64x32xbf16>, vector<8x32xf32> -> vector<8x32xf32>
    %c20 = arith.constant 20 : index
    %c0_107 = arith.constant 0 : index
    %221 = vector.load %arg9[%c20, %c0_107] : memref<24x32xf32, #tpu.memory_space<vmem>>, vector<1x32xf32>
    %222 = vector.broadcast %221 : vector<1x32xf32> to vector<8x32xf32>
    %223 = arith.addf %220, %222 : vector<8x32xf32>
    %224 = arith.truncf %223 : vector<8x32xf32> to vector<8x32xbf16>
    %225 = vector.shape_cast %224 : vector<8x32xbf16> to vector<1x8x32xbf16>
    "tpu.trace_start"() <{level = 10 : i32, message = "bqk,bkd->bqd"}> : () -> ()
    %cst_108 = arith.constant dense<0.000000e+00> : vector<1x8x32xf32>
    %226 = tpu.matmul %217, %225, %cst_108 {dimension_numbers = #tpu.dot_dimension_numbers<[2], [1], [1], [2], [0, 0, 0, 1, 1, 2], [0], [0]>} : vector<1x8x8xbf16>, vector<1x8x32xbf16>, vector<1x8x32xf32> -> vector<1x8x32xf32>
    "tpu.trace_stop"() : () -> ()
    %227 = vector.shape_cast %226 : vector<1x8x32xf32> to vector<8x32xf32>
    %228 = arith.addf %193, %227 : vector<8x32xf32>
    %c10_109 = arith.constant 10 : index
    %c0_110 = arith.constant 0 : index
    %c0_111 = arith.constant 0 : index
    %229 = vector.load %arg6[%c10_109, %c0_110, %c0_111] : memref<16x64x32xbf16, #tpu.memory_space<vmem>>, vector<1x64x32xbf16>
    %230 = vector.shape_cast %229 : vector<1x64x32xbf16> to vector<64x32xbf16>
    %cst_112 = arith.constant dense<0.000000e+00> : vector<8x32xf32>
    %231 = tpu.matmul %15, %230, %cst_112 {dimension_numbers = #tpu.dot_dimension_numbers<[1], [0], [0], [1], [0, 0, 1, 1], [], []>} : vector<8x64xbf16>, vector<64x32xbf16>, vector<8x32xf32> -> vector<8x32xf32>
    %c13 = arith.constant 13 : index
    %c0_113 = arith.constant 0 : index
    %232 = vector.load %arg9[%c13, %c0_113] : memref<24x32xf32, #tpu.memory_space<vmem>>, vector<1x32xf32>
    %233 = vector.broadcast %232 : vector<1x32xf32> to vector<8x32xf32>
    %234 = arith.addf %231, %233 : vector<8x32xf32>
    %235 = arith.truncf %234 : vector<8x32xf32> to vector<8x32xbf16>
    %236 = vector.shape_cast %235 : vector<8x32xbf16> to vector<1x8x32xbf16>
    "tpu.trace_start"() <{level = 10 : i32, message = "bqd,bkd->bqk"}> : () -> ()
    %cst_114 = arith.constant dense<0.000000e+00> : vector<1x8x8xf32>
    %237 = tpu.matmul %192, %236, %cst_114 {dimension_numbers = #tpu.dot_dimension_numbers<[2], [2], [1], [1], [0, 0, 0, 1, 1, 1], [0], [0]>} : vector<1x8x32xbf16>, vector<1x8x32xbf16>, vector<1x8x8xf32> -> vector<1x8x8xf32>
    "tpu.trace_stop"() : () -> ()
    %cst_115 = arith.constant dense<0xFF800000> : vector<1x8xf32>
    %238 = vector.multi_reduction <maximumf>, %237, %cst_115 [2] : vector<1x8x8xf32> to vector<1x8xf32>
    %239 = vector.shape_cast %238 : vector<1x8xf32> to vector<1x8x1xf32>
    %240 = vector.broadcast %239 : vector<1x8x1xf32> to vector<1x8x8xf32>
    %241 = arith.subf %237, %240 : vector<1x8x8xf32>
    %242 = math.exp %241 : vector<1x8x8xf32>
    %cst_116 = arith.constant dense<0.000000e+00> : vector<1x8xf32>
    %243 = vector.multi_reduction <add>, %242, %cst_116 [2] : vector<1x8x8xf32> to vector<1x8xf32>
    %244 = vector.shape_cast %243 : vector<1x8xf32> to vector<1x8x1xf32>
    %245 = tpu.reciprocal %244 {approx = true} : vector<1x8x1xf32> -> vector<1x8x1xf32>
    %246 = arith.mulf %244, %245 : vector<1x8x1xf32>
    %cst_117 = arith.constant 2.000000e+00 : f32
    %247 = vector.broadcast %cst_117 : f32 to vector<1x8x1xf32>
    %248 = arith.subf %247, %246 : vector<1x8x1xf32>
    %249 = arith.mulf %245, %248 : vector<1x8x1xf32>
    %250 = vector.broadcast %249 : vector<1x8x1xf32> to vector<1x8x8xf32>
    %251 = arith.mulf %242, %250 : vector<1x8x8xf32>
    %252 = arith.truncf %251 : vector<1x8x8xf32> to vector<1x8x8xbf16>
    %c11_118 = arith.constant 11 : index
    %c0_119 = arith.constant 0 : index
    %c0_120 = arith.constant 0 : index
    %253 = vector.load %arg6[%c11_118, %c0_119, %c0_120] : memref<16x64x32xbf16, #tpu.memory_space<vmem>>, vector<1x64x32xbf16>
    %254 = vector.shape_cast %253 : vector<1x64x32xbf16> to vector<64x32xbf16>
    %cst_121 = arith.constant dense<0.000000e+00> : vector<8x32xf32>
    %255 = tpu.matmul %15, %254, %cst_121 {dimension_numbers = #tpu.dot_dimension_numbers<[1], [0], [0], [1], [0, 0, 1, 1], [], []>} : vector<8x64xbf16>, vector<64x32xbf16>, vector<8x32xf32> -> vector<8x32xf32>
    %c21 = arith.constant 21 : index
    %c0_122 = arith.constant 0 : index
    %256 = vector.load %arg9[%c21, %c0_122] : memref<24x32xf32, #tpu.memory_space<vmem>>, vector<1x32xf32>
    %257 = vector.broadcast %256 : vector<1x32xf32> to vector<8x32xf32>
    %258 = arith.addf %255, %257 : vector<8x32xf32>
    %259 = arith.truncf %258 : vector<8x32xf32> to vector<8x32xbf16>
    %260 = vector.shape_cast %259 : vector<8x32xbf16> to vector<1x8x32xbf16>
    "tpu.trace_start"() <{level = 10 : i32, message = "bqk,bkd->bqd"}> : () -> ()
    %cst_123 = arith.constant dense<0.000000e+00> : vector<1x8x32xf32>
    %261 = tpu.matmul %252, %260, %cst_123 {dimension_numbers = #tpu.dot_dimension_numbers<[2], [1], [1], [2], [0, 0, 0, 1, 1, 2], [0], [0]>} : vector<1x8x8xbf16>, vector<1x8x32xbf16>, vector<1x8x32xf32> -> vector<1x8x32xf32>
    "tpu.trace_stop"() : () -> ()
    %262 = vector.shape_cast %261 : vector<1x8x32xf32> to vector<8x32xf32>
    %263 = arith.addf %228, %262 : vector<8x32xf32>
    %c12_124 = arith.constant 12 : index
    %c0_125 = arith.constant 0 : index
    %c0_126 = arith.constant 0 : index
    %264 = vector.load %arg6[%c12_124, %c0_125, %c0_126] : memref<16x64x32xbf16, #tpu.memory_space<vmem>>, vector<1x64x32xbf16>
    %265 = vector.shape_cast %264 : vector<1x64x32xbf16> to vector<64x32xbf16>
    %cst_127 = arith.constant dense<0.000000e+00> : vector<8x32xf32>
    %266 = tpu.matmul %15, %265, %cst_127 {dimension_numbers = #tpu.dot_dimension_numbers<[1], [0], [0], [1], [0, 0, 1, 1], [], []>} : vector<8x64xbf16>, vector<64x32xbf16>, vector<8x32xf32> -> vector<8x32xf32>
    %c14 = arith.constant 14 : index
    %c0_128 = arith.constant 0 : index
    %267 = vector.load %arg9[%c14, %c0_128] : memref<24x32xf32, #tpu.memory_space<vmem>>, vector<1x32xf32>
    %268 = vector.broadcast %267 : vector<1x32xf32> to vector<8x32xf32>
    %269 = arith.addf %266, %268 : vector<8x32xf32>
    %270 = arith.truncf %269 : vector<8x32xf32> to vector<8x32xbf16>
    %271 = vector.shape_cast %270 : vector<8x32xbf16> to vector<1x8x32xbf16>
    "tpu.trace_start"() <{level = 10 : i32, message = "bqd,bkd->bqk"}> : () -> ()
    %cst_129 = arith.constant dense<0.000000e+00> : vector<1x8x8xf32>
    %272 = tpu.matmul %192, %271, %cst_129 {dimension_numbers = #tpu.dot_dimension_numbers<[2], [2], [1], [1], [0, 0, 0, 1, 1, 1], [0], [0]>} : vector<1x8x32xbf16>, vector<1x8x32xbf16>, vector<1x8x8xf32> -> vector<1x8x8xf32>
    "tpu.trace_stop"() : () -> ()
    %cst_130 = arith.constant dense<0xFF800000> : vector<1x8xf32>
    %273 = vector.multi_reduction <maximumf>, %272, %cst_130 [2] : vector<1x8x8xf32> to vector<1x8xf32>
    %274 = vector.shape_cast %273 : vector<1x8xf32> to vector<1x8x1xf32>
    %275 = vector.broadcast %274 : vector<1x8x1xf32> to vector<1x8x8xf32>
    %276 = arith.subf %272, %275 : vector<1x8x8xf32>
    %277 = math.exp %276 : vector<1x8x8xf32>
    %cst_131 = arith.constant dense<0.000000e+00> : vector<1x8xf32>
    %278 = vector.multi_reduction <add>, %277, %cst_131 [2] : vector<1x8x8xf32> to vector<1x8xf32>
    %279 = vector.shape_cast %278 : vector<1x8xf32> to vector<1x8x1xf32>
    %280 = tpu.reciprocal %279 {approx = true} : vector<1x8x1xf32> -> vector<1x8x1xf32>
    %281 = arith.mulf %279, %280 : vector<1x8x1xf32>
    %cst_132 = arith.constant 2.000000e+00 : f32
    %282 = vector.broadcast %cst_132 : f32 to vector<1x8x1xf32>
    %283 = arith.subf %282, %281 : vector<1x8x1xf32>
    %284 = arith.mulf %280, %283 : vector<1x8x1xf32>
    %285 = vector.broadcast %284 : vector<1x8x1xf32> to vector<1x8x8xf32>
    %286 = arith.mulf %277, %285 : vector<1x8x8xf32>
    %287 = arith.truncf %286 : vector<1x8x8xf32> to vector<1x8x8xbf16>
    %c13_133 = arith.constant 13 : index
    %c0_134 = arith.constant 0 : index
    %c0_135 = arith.constant 0 : index
    %288 = vector.load %arg6[%c13_133, %c0_134, %c0_135] : memref<16x64x32xbf16, #tpu.memory_space<vmem>>, vector<1x64x32xbf16>
    %289 = vector.shape_cast %288 : vector<1x64x32xbf16> to vector<64x32xbf16>
    %cst_136 = arith.constant dense<0.000000e+00> : vector<8x32xf32>
    %290 = tpu.matmul %15, %289, %cst_136 {dimension_numbers = #tpu.dot_dimension_numbers<[1], [0], [0], [1], [0, 0, 1, 1], [], []>} : vector<8x64xbf16>, vector<64x32xbf16>, vector<8x32xf32> -> vector<8x32xf32>
    %c22 = arith.constant 22 : index
    %c0_137 = arith.constant 0 : index
    %291 = vector.load %arg9[%c22, %c0_137] : memref<24x32xf32, #tpu.memory_space<vmem>>, vector<1x32xf32>
    %292 = vector.broadcast %291 : vector<1x32xf32> to vector<8x32xf32>
    %293 = arith.addf %290, %292 : vector<8x32xf32>
    %294 = arith.truncf %293 : vector<8x32xf32> to vector<8x32xbf16>
    %295 = vector.shape_cast %294 : vector<8x32xbf16> to vector<1x8x32xbf16>
    "tpu.trace_start"() <{level = 10 : i32, message = "bqk,bkd->bqd"}> : () -> ()
    %cst_138 = arith.constant dense<0.000000e+00> : vector<1x8x32xf32>
    %296 = tpu.matmul %287, %295, %cst_138 {dimension_numbers = #tpu.dot_dimension_numbers<[2], [1], [1], [2], [0, 0, 0, 1, 1, 2], [0], [0]>} : vector<1x8x8xbf16>, vector<1x8x32xbf16>, vector<1x8x32xf32> -> vector<1x8x32xf32>
    "tpu.trace_stop"() : () -> ()
    %297 = vector.shape_cast %296 : vector<1x8x32xf32> to vector<8x32xf32>
    %298 = arith.addf %263, %297 : vector<8x32xf32>
    %c14_139 = arith.constant 14 : index
    %c0_140 = arith.constant 0 : index
    %c0_141 = arith.constant 0 : index
    %299 = vector.load %arg6[%c14_139, %c0_140, %c0_141] : memref<16x64x32xbf16, #tpu.memory_space<vmem>>, vector<1x64x32xbf16>
    %300 = vector.shape_cast %299 : vector<1x64x32xbf16> to vector<64x32xbf16>
    %cst_142 = arith.constant dense<0.000000e+00> : vector<8x32xf32>
    %301 = tpu.matmul %15, %300, %cst_142 {dimension_numbers = #tpu.dot_dimension_numbers<[1], [0], [0], [1], [0, 0, 1, 1], [], []>} : vector<8x64xbf16>, vector<64x32xbf16>, vector<8x32xf32> -> vector<8x32xf32>
    %c15 = arith.constant 15 : index
    %c0_143 = arith.constant 0 : index
    %302 = vector.load %arg9[%c15, %c0_143] : memref<24x32xf32, #tpu.memory_space<vmem>>, vector<1x32xf32>
    %303 = vector.broadcast %302 : vector<1x32xf32> to vector<8x32xf32>
    %304 = arith.addf %301, %303 : vector<8x32xf32>
    %305 = arith.truncf %304 : vector<8x32xf32> to vector<8x32xbf16>
    %306 = vector.shape_cast %305 : vector<8x32xbf16> to vector<1x8x32xbf16>
    "tpu.trace_start"() <{level = 10 : i32, message = "bqd,bkd->bqk"}> : () -> ()
    %cst_144 = arith.constant dense<0.000000e+00> : vector<1x8x8xf32>
    %307 = tpu.matmul %192, %306, %cst_144 {dimension_numbers = #tpu.dot_dimension_numbers<[2], [2], [1], [1], [0, 0, 0, 1, 1, 1], [0], [0]>} : vector<1x8x32xbf16>, vector<1x8x32xbf16>, vector<1x8x8xf32> -> vector<1x8x8xf32>
    "tpu.trace_stop"() : () -> ()
    %cst_145 = arith.constant dense<0xFF800000> : vector<1x8xf32>
    %308 = vector.multi_reduction <maximumf>, %307, %cst_145 [2] : vector<1x8x8xf32> to vector<1x8xf32>
    %309 = vector.shape_cast %308 : vector<1x8xf32> to vector<1x8x1xf32>
    %310 = vector.broadcast %309 : vector<1x8x1xf32> to vector<1x8x8xf32>
    %311 = arith.subf %307, %310 : vector<1x8x8xf32>
    %312 = math.exp %311 : vector<1x8x8xf32>
    %cst_146 = arith.constant dense<0.000000e+00> : vector<1x8xf32>
    %313 = vector.multi_reduction <add>, %312, %cst_146 [2] : vector<1x8x8xf32> to vector<1x8xf32>
    %314 = vector.shape_cast %313 : vector<1x8xf32> to vector<1x8x1xf32>
    %315 = tpu.reciprocal %314 {approx = true} : vector<1x8x1xf32> -> vector<1x8x1xf32>
    %316 = arith.mulf %314, %315 : vector<1x8x1xf32>
    %cst_147 = arith.constant 2.000000e+00 : f32
    %317 = vector.broadcast %cst_147 : f32 to vector<1x8x1xf32>
    %318 = arith.subf %317, %316 : vector<1x8x1xf32>
    %319 = arith.mulf %315, %318 : vector<1x8x1xf32>
    %320 = vector.broadcast %319 : vector<1x8x1xf32> to vector<1x8x8xf32>
    %321 = arith.mulf %312, %320 : vector<1x8x8xf32>
    %322 = arith.truncf %321 : vector<1x8x8xf32> to vector<1x8x8xbf16>
    %c15_148 = arith.constant 15 : index
    %c0_149 = arith.constant 0 : index
    %c0_150 = arith.constant 0 : index
    %323 = vector.load %arg6[%c15_148, %c0_149, %c0_150] : memref<16x64x32xbf16, #tpu.memory_space<vmem>>, vector<1x64x32xbf16>
    %324 = vector.shape_cast %323 : vector<1x64x32xbf16> to vector<64x32xbf16>
    %cst_151 = arith.constant dense<0.000000e+00> : vector<8x32xf32>
    %325 = tpu.matmul %15, %324, %cst_151 {dimension_numbers = #tpu.dot_dimension_numbers<[1], [0], [0], [1], [0, 0, 1, 1], [], []>} : vector<8x64xbf16>, vector<64x32xbf16>, vector<8x32xf32> -> vector<8x32xf32>
    %c23 = arith.constant 23 : index
    %c0_152 = arith.constant 0 : index
    %326 = vector.load %arg9[%c23, %c0_152] : memref<24x32xf32, #tpu.memory_space<vmem>>, vector<1x32xf32>
    %327 = vector.broadcast %326 : vector<1x32xf32> to vector<8x32xf32>
    %328 = arith.addf %325, %327 : vector<8x32xf32>
    %329 = arith.truncf %328 : vector<8x32xf32> to vector<8x32xbf16>
    %330 = vector.shape_cast %329 : vector<8x32xbf16> to vector<1x8x32xbf16>
    "tpu.trace_start"() <{level = 10 : i32, message = "bqk,bkd->bqd"}> : () -> ()
    %cst_153 = arith.constant dense<0.000000e+00> : vector<1x8x32xf32>
    %331 = tpu.matmul %322, %330, %cst_153 {dimension_numbers = #tpu.dot_dimension_numbers<[2], [1], [1], [2], [0, 0, 0, 1, 1, 2], [0], [0]>} : vector<1x8x8xbf16>, vector<1x8x32xbf16>, vector<1x8x32xf32> -> vector<1x8x32xf32>
    "tpu.trace_stop"() : () -> ()
    %332 = vector.shape_cast %331 : vector<1x8x32xf32> to vector<8x32xf32>
    %333 = arith.addf %298, %332 : vector<8x32xf32>
    %334 = arith.addf %183, %333 : vector<8x32xf32>
    %c5_154 = arith.constant 5 : index
    %c0_155 = arith.constant 0 : index
    %335 = vector.load %arg9[%c5_154, %c0_155] : memref<24x32xf32, #tpu.memory_space<vmem>>, vector<1x32xf32>
    %336 = vector.broadcast %335 : vector<1x32xf32> to vector<8x32xf32>
    %337 = arith.addf %334, %336 : vector<8x32xf32>
    %338 = arith.truncf %337 : vector<8x32xf32> to vector<8x32xbf16>
    %c3_156 = arith.constant 3 : index
    %c0_157 = arith.constant 0 : index
    %c0_158 = arith.constant 0 : index
    %339 = vector.load %arg5[%c3_156, %c0_157, %c0_158] : memref<4x32x32xbf16, #tpu.memory_space<vmem>>, vector<1x32x32xbf16>
    %340 = vector.shape_cast %339 : vector<1x32x32xbf16> to vector<32x32xbf16>
    %cst_159 = arith.constant dense<0.000000e+00> : vector<8x32xf32>
    %341 = tpu.matmul %338, %340, %cst_159 {dimension_numbers = #tpu.dot_dimension_numbers<[1], [0], [0], [1], [0, 0, 1, 1], [], []>} : vector<8x32xbf16>, vector<32x32xbf16>, vector<8x32xf32> -> vector<8x32xf32>
    %c6_160 = arith.constant 6 : index
    %c0_161 = arith.constant 0 : index
    %342 = vector.load %arg9[%c6_160, %c0_161] : memref<24x32xf32, #tpu.memory_space<vmem>>, vector<1x32xf32>
    %343 = vector.broadcast %342 : vector<1x32xf32> to vector<8x32xf32>
    %344 = arith.addf %341, %343 : vector<8x32xf32>
    %cst_162 = arith.constant 0.000000e+00 : f32
    %345 = vector.broadcast %cst_162 : f32 to vector<8x32xf32>
    %346 = arith.maximumf %344, %345 : vector<8x32xf32>
    %347 = arith.truncf %346 : vector<8x32xf32> to vector<8x32xbf16>
    %c0_163 = arith.constant 0 : index
    %c0_164 = arith.constant 0 : index
    %348 = vector.load %arg7[%c0_163, %c0_164] : memref<32x8xbf16, #tpu.memory_space<vmem>>, vector<32x8xbf16>
    %cst_165 = arith.constant dense<0.000000e+00> : vector<8x8xf32>
    %349 = tpu.matmul %347, %348, %cst_165 {dimension_numbers = #tpu.dot_dimension_numbers<[1], [0], [0], [1], [0, 0, 1, 1], [], []>} : vector<8x32xbf16>, vector<32x8xbf16>, vector<8x8xf32> -> vector<8x8xf32>
    %c0_166 = arith.constant 0 : index
    %c0_167 = arith.constant 0 : index
    %350 = vector.load %arg10[%c0_166, %c0_167] : memref<1x8xf32, #tpu.memory_space<vmem>>, vector<1x8xf32>
    %351 = vector.broadcast %350 : vector<1x8xf32> to vector<8x8xf32>
    %352 = arith.addf %349, %351 : vector<8x8xf32>
    %c0_168 = arith.constant 0 : index
    %c0_169 = arith.constant 0 : index
    %353 = vector.load %arg11[%c0_168, %c0_169] : memref<8x8xf32, #tpu.memory_space<vmem>>, vector<8x8xf32>
    tpu.vector_store %arg11[%c0_168, %c0_169], %352 {strides = array<i32>} : memref<8x8xf32, #tpu.memory_space<vmem>>, vector<8x8xf32>,
    return
  }
  func.func @transform_0(%arg0: i32) -> (i32, i32) {
    %c0_i32 = arith.constant 0 : i32
    %c0_i32_0 = arith.constant 0 : i32
    return %arg0, %c0_i32 : i32, i32
  }
  func.func @transform_1(%arg0: i32) -> (i32, i32) {
    %c0_i32 = arith.constant 0 : i32
    %c0_i32_0 = arith.constant 0 : i32
    %c0_i32_1 = arith.constant 0 : i32
    return %c0_i32, %c0_i32_0 : i32, i32
  }
  func.func @transform_2(%arg0: i32) -> (i32, i32) {
    %c0_i32 = arith.constant 0 : i32
    %c0_i32_0 = arith.constant 0 : i32
    %c0_i32_1 = arith.constant 0 : i32
    return %c0_i32, %c0_i32_0 : i32, i32
  }
  func.func @transform_3(%arg0: i32) -> (i32, i32) {
    %c0_i32 = arith.constant 0 : i32
    %c0_i32_0 = arith.constant 0 : i32
    %c0_i32_1 = arith.constant 0 : i32
    return %c0_i32, %c0_i32_0 : i32, i32
  }
  func.func @transform_4(%arg0: i32) -> (i32, i32, i32) {
    %c0_i32 = arith.constant 0 : i32
    %c0_i32_0 = arith.constant 0 : i32
    %c0_i32_1 = arith.constant 0 : i32
    %c0_i32_2 = arith.constant 0 : i32
    return %c0_i32, %c0_i32_0, %c0_i32_1 : i32, i32, i32
  }
  func.func @transform_5(%arg0: i32) -> (i32, i32, i32) {
    %c0_i32 = arith.constant 0 : i32
    %c0_i32_0 = arith.constant 0 : i32
    %c0_i32_1 = arith.constant 0 : i32
    %c0_i32_2 = arith.constant 0 : i32
    return %c0_i32, %c0_i32_0, %c0_i32_1 : i32, i32, i32
  }
  func.func @transform_6(%arg0: i32) -> (i32, i32) {
    %c0_i32 = arith.constant 0 : i32
    %c0_i32_0 = arith.constant 0 : i32
    %c0_i32_1 = arith.constant 0 : i32
    return %c0_i32, %c0_i32_0 : i32, i32
  }
  func.func @transform_7(%arg0: i32) -> (i32, i32) {
    %c0_i32 = arith.constant 0 : i32
    %c0_i32_0 = arith.constant 0 : i32
    %c0_i32_1 = arith.constant 0 : i32
    return %c0_i32, %c0_i32_0 : i32, i32
  }
  func.func @transform_8(%arg0: i32) -> (i32, i32) {
    %c0_i32 = arith.constant 0 : i32
    %c0_i32_0 = arith.constant 0 : i32
    %c0_i32_1 = arith.constant 0 : i32
    return %c0_i32, %c0_i32_0 : i32, i32
  }
  func.func @transform_9(%arg0: i32) -> (i32, i32) {
    %c0_i32 = arith.constant 0 : i32
    %c0_i32_0 = arith.constant 0 : i32
    %c0_i32_1 = arith.constant 0 : i32
    return %c0_i32, %c0_i32_0 : i32, i32
  }
  func.func @transform_10(%arg0: i32) -> (i32, i32) {
    %c0_i32 = arith.constant 0 : i32
    %c0_i32_0 = arith.constant 0 : i32
    return %arg0, %c0_i32 : i32, i32
  }
}

</mosaic_0001>

<llo_original>
// kernel: baseline_attn_cnp_forward.1
$region0: #{baseline_attn_cnp_forward.1}
  #allocation0 [shape = 'u32[]', space=smem, size = 0x4, offset = 0x4, fixed_abs, tag = 'smem constant byte address 0x4 - core index']
  #allocation1 [shape = 'u32[144,128]{1,0:T(1,128)}', space=vmem, size = 0x12000, scoped, tag = 'internal scratch']
  %s0 = inlined_call_operand.vmem [shape: bf16[32,8], index: 0, kind: input, shape index: {}]
  %s1 = inlined_call_operand.vmem [shape: bf16[8,64], index: 1, kind: input, shape index: {}]
  %s2 = inlined_call_operand.vmem [shape: bf16[64,64], index: 2, kind: input, shape index: {}]
  %s3 = inlined_call_operand.vmem [shape: bf16[8,32], index: 3, kind: input, shape index: {}]
  %s4 = inlined_call_operand.vmem [shape: bf16[4,32,32], index: 4, kind: input, shape index: {}]
  %s5 = inlined_call_operand.vmem [shape: bf16[16,64,32], index: 5, kind: input, shape index: {}]
  %s6 = inlined_call_operand.vmem [shape: bf16[32,8], index: 6, kind: input, shape index: {}]
  %s7 = inlined_call_operand.vmem [shape: f32[2,64], index: 7, kind: input, shape index: {}]
  %s8 = inlined_call_operand.vmem [shape: f32[24,32], index: 8, kind: input, shape index: {}]
  %s9 = inlined_call_operand.vmem [shape: f32[1,8], index: 9, kind: input, shape index: {}]
  %s10 = inlined_call_operand.vmem [shape: f32[16,8], index: 10, kind: output, shape index: {}]
  %s11 = sld [smem:[#allocation0]]
  $region73: #{baseline_attn_cnp_forward.1} parent=0
    _
  %s13 = ssub.s32 1, %s11
  %s14 = scalar_select 0, %s13, %s11
  loop: start=0, step=1, limit=4
  $region2: #{baseline_attn_cnp_forward.1} parent=0 // loop_pre_header
    _
  $region3: #{baseline_attn_cnp_forward.1} parent=0 // loop_header
    %s16 = sphi 0, %s20
    %p17 = scmp.ge.s32.totalorder %s16, 4
    %s26 = sphi 0, %s28
    %s29 = sphi 0, %s26
    %s30 = sphi 0, %s29
    %s46 = sphi 0, %s30
    %s50 = sphi 0, %s50
    %s52 = sphi 0, %s50
    %s53 = sphi 0, %s52
    %s67 = sphi 0, %s53
    %s71 = sphi 0, %s71
    %s73 = sphi 0, %s71
    %s74 = sphi 0, %s73
    %s88 = sphi 0, %s74
    %s92 = sphi 0, %s92
    %s94 = sphi 0, %s92
    %s95 = sphi 0, %s94
    %s109 = sphi 0, %s95
    %s113 = sphi 0, %s113
    %s115 = sphi 0, %s113
    %s116 = sphi 0, %s115
    %s130 = sphi 0, %s116
    %s134 = sphi 0, %s134
    %s136 = sphi 0, %s134
    %s137 = sphi 0, %s136
    %s151 = sphi 0, %s137
    %s155 = sphi 0, %s155
    %s157 = sphi 0, %s155
    %s158 = sphi 0, %s157
    %s172 = sphi 0, %s158
    %s176 = sphi 0, %s176
    %s178 = sphi 0, %s176
    %s179 = sphi 0, %s178
    %s193 = sphi 0, %s179
    %s197 = sphi 0, %s197
    %s199 = sphi 0, %s197
    %s200 = sphi 0, %s199
    %s214 = sphi 0, %s200
    %s218 = sphi 0, %s218
    %s220 = sphi 0, %s218
    %s221 = sphi 0, %s220
    %s235 = sphi 0, %s221
    %s241 = sphi 0, %s243
    %s244 = sphi 0, %s241
    %s245 = sphi 0, %s244
    %s261 = sphi 0, %s245
  $region4: #{baseline_attn_cnp_forward.1} parent=0 // loop_header_branch
    %19 = sbr.rel (%p17) target = $region8
  $region5: #{baseline_attn_cnp_forward.1} parent=0 // loop_body
    %s21 = ssub.s32 %s16, 1
    %s22 = ssub.s32 %s16, 2
    %s23 = sadd.s32 %s16, 1
    %s24 = ssub.s32 %s16, %s23
    %p25 = scmp.eq.s32.totalorder %s24, 0
    %s27 = sadd.s32 %s26, 1
    %s28 = scalar_select %p25, %s26, %s27
    %p31 = pneg %p25
    %p32 = scmp.eq.s32.totalorder %s16, 1
    %p33 = por %p31, %p32
    %p34 = scmp.ne.s32.totalorder %s26, %s29
    %p35 = scmp.eq.s32.totalorder %s16, 0
    %p36 = por %p34, %p35
    %p37 = scmp.ne.s32.totalorder %s26, %s29
    %p38 = scmp.eq.s32.totalorder %s21, 1
    %p39 = por %p37, %p38
    %p40 = scmp.ne.s32.totalorder %s29, %s30
    %p41 = scmp.eq.s32.totalorder %s21, 0
    %p42 = por %p40, %p41
    %p43 = scmp.ne.s32.totalorder %s29, %s30
    %p44 = scmp.eq.s32.totalorder %s22, 1
    %p45 = por %p43, %p44
    %p47 = scmp.ne.s32.totalorder %s30, %s46
    %p48 = scmp.eq.s32.totalorder %s22, 0
    %p49 = por %p47, %p48
    %s51 = sadd.s32 %s50, 1
    %p54 = scmp.eq.s32.totalorder %s16, 1
    %p55 = scmp.ne.s32.totalorder %s50, %s52
    %p56 = scmp.eq.s32.totalorder %s16, 0
    %p57 = por %p55, %p56
    %p58 = scmp.ne.s32.totalorder %s50, %s52
    %p59 = scmp.eq.s32.totalorder %s21, 1
    %p60 = por %p58, %p59
    %p61 = scmp.ne.s32.totalorder %s52, %s53
    %p62 = scmp.eq.s32.totalorder %s21, 0
    %p63 = por %p61, %p62
    %p64 = scmp.ne.s32.totalorder %s52, %s53
    %p65 = scmp.eq.s32.totalorder %s22, 1
    %p66 = por %p64, %p65
    %p68 = scmp.ne.s32.totalorder %s53, %s67
    %p69 = scmp.eq.s32.totalorder %s22, 0
    %p70 = por %p68, %p69
    %s72 = sadd.s32 %s71, 1
    %p75 = scmp.eq.s32.totalorder %s16, 1
    %p76 = scmp.ne.s32.totalorder %s71, %s73
    %p77 = scmp.eq.s32.totalorder %s16, 0
    %p78 = por %p76, %p77
    %p79 = scmp.ne.s32.totalorder %s71, %s73
    %p80 = scmp.eq.s32.totalorder %s21, 1
    %p81 = por %p79, %p80
    %p82 = scmp.ne.s32.totalorder %s73, %s74
    %p83 = scmp.eq.s32.totalorder %s21, 0
    %p84 = por %p82, %p83
    %p85 = scmp.ne.s32.totalorder %s73, %s74
    %p86 = scmp.eq.s32.totalorder %s22, 1
    %p87 = por %p85, %p86
    %p89 = scmp.ne.s32.totalorder %s74, %s88
    %p90 = scmp.eq.s32.totalorder %s22, 0
    %p91 = por %p89, %p90
    %s93 = sadd.s32 %s92, 1
    %p96 = scmp.eq.s32.totalorder %s16, 1
    %p97 = scmp.ne.s32.totalorder %s92, %s94
    %p98 = scmp.eq.s32.totalorder %s16, 0
    %p99 = por %p97, %p98
    %p100 = scmp.ne.s32.totalorder %s92, %s94
    %p101 = scmp.eq.s32.totalorder %s21, 1
    %p102 = por %p100, %p101
    %p103 = scmp.ne.s32.totalorder %s94, %s95
    %p104 = scmp.eq.s32.totalorder %s21, 0
    %p105 = por %p103, %p104
    %p106 = scmp.ne.s32.totalorder %s94, %s95
    %p107 = scmp.eq.s32.totalorder %s22, 1
    %p108 = por %p106, %p107
    %p110 = scmp.ne.s32.totalorder %s95, %s109
    %p111 = scmp.eq.s32.totalorder %s22, 0
    %p112 = por %p110, %p111
    %s114 = sadd.s32 %s113, 1
    %p117 = scmp.eq.s32.totalorder %s16, 1
    %p118 = scmp.ne.s32.totalorder %s113, %s115
    %p119 = scmp.eq.s32.totalorder %s16, 0
    %p120 = por %p118, %p119
    %p121 = scmp.ne.s32.totalorder %s113, %s115
    %p122 = scmp.eq.s32.totalorder %s21, 1
    %p123 = por %p121, %p122
    %p124 = scmp.ne.s32.totalorder %s115, %s116
    %p125 = scmp.eq.s32.totalorder %s21, 0
    %p126 = por %p124, %p125
    %p127 = scmp.ne.s32.totalorder %s115, %s116
    %p128 = scmp.eq.s32.totalorder %s22, 1
    %p129 = por %p127, %p128
    %p131 = scmp.ne.s32.totalorder %s116, %s130
    %p132 = scmp.eq.s32.totalorder %s22, 0
    %p133 = por %p131, %p132
    %s135 = sadd.s32 %s134, 1
    %p138 = scmp.eq.s32.totalorder %s16, 1
    %p139 = scmp.ne.s32.totalorder %s134, %s136
    %p140 = scmp.eq.s32.totalorder %s16, 0
    %p141 = por %p139, %p140
    %p142 = scmp.ne.s32.totalorder %s134, %s136
    %p143 = scmp.eq.s32.totalorder %s21, 1
    %p144 = por %p142, %p143
    %p145 = scmp.ne.s32.totalorder %s136, %s137
    %p146 = scmp.eq.s32.totalorder %s21, 0
    %p147 = por %p145, %p146
    %p148 = scmp.ne.s32.totalorder %s136, %s137
    %p149 = scmp.eq.s32.totalorder %s22, 1
    %p150 = por %p148, %p149
    %p152 = scmp.ne.s32.totalorder %s137, %s151
    %p153 = scmp.eq.s32.totalorder %s22, 0
    %p154 = por %p152, %p153
    %s156 = sadd.s32 %s155, 1
    %p159 = scmp.eq.s32.totalorder %s16, 1
    %p160 = scmp.ne.s32.totalorder %s155, %s157
    %p161 = scmp.eq.s32.totalorder %s16, 0
    %p162 = por %p160, %p161
    %p163 = scmp.ne.s32.totalorder %s155, %s157
    %p164 = scmp.eq.s32.totalorder %s21, 1
    %p165 = por %p163, %p164
    %p166 = scmp.ne.s32.totalorder %s157, %s158
    %p167 = scmp.eq.s32.totalorder %s21, 0
    %p168 = por %p166, %p167
    %p169 = scmp.ne.s32.totalorder %s157, %s158
    %p170 = scmp.eq.s32.totalorder %s22, 1
    %p171 = por %p169, %p170
    %p173 = scmp.ne.s32.totalorder %s158, %s172
    %p174 = scmp.eq.s32.totalorder %s22, 0
    %p175 = por %p173, %p174
    %s177 = sadd.s32 %s176, 1
    %p180 = scmp.eq.s32.totalorder %s16, 1
    %p181 = scmp.ne.s32.totalorder %s176, %s178
    %p182 = scmp.eq.s32.totalorder %s16, 0
    %p183 = por %p181, %p182
    %p184 = scmp.ne.s32.totalorder %s176, %s178
    %p185 = scmp.eq.s32.totalorder %s21, 1
    %p186 = por %p184, %p185
    %p187 = scmp.ne.s32.totalorder %s178, %s179
    %p188 = scmp.eq.s32.totalorder %s21, 0
    %p189 = por %p187, %p188
    %p190 = scmp.ne.s32.totalorder %s178, %s179
    %p191 = scmp.eq.s32.totalorder %s22, 1
    %p192 = por %p190, %p191
    %p194 = scmp.ne.s32.totalorder %s179, %s193
    %p195 = scmp.eq.s32.totalorder %s22, 0
    %p196 = por %p194, %p195
    %s198 = sadd.s32 %s197, 1
    %p201 = scmp.eq.s32.totalorder %s16, 1
    %p202 = scmp.ne.s32.totalorder %s197, %s199
    %p203 = scmp.eq.s32.totalorder %s16, 0
    %p204 = por %p202, %p203
    %p205 = scmp.ne.s32.totalorder %s197, %s199
    %p206 = scmp.eq.s32.totalorder %s21, 1
    %p207 = por %p205, %p206
    %p208 = scmp.ne.s32.totalorder %s199, %s200
    %p209 = scmp.eq.s32.totalorder %s21, 0
    %p210 = por %p208, %p209
    %p211 = scmp.ne.s32.totalorder %s199, %s200
    %p212 = scmp.eq.s32.totalorder %s22, 1
    %p213 = por %p211, %p212
    %p215 = scmp.ne.s32.totalorder %s200, %s214
    %p216 = scmp.eq.s32.totalorder %s22, 0
    %p217 = por %p215, %p216
    %s219 = sadd.s32 %s218, 1
    %p222 = scmp.eq.s32.totalorder %s16, 1
    %p223 = scmp.ne.s32.totalorder %s218, %s220
    %p224 = scmp.eq.s32.totalorder %s16, 0
    %p225 = por %p223, %p224
    %p226 = scmp.ne.s32.totalorder %s218, %s220
    %p227 = scmp.eq.s32.totalorder %s21, 1
    %p228 = por %p226, %p227
    %p229 = scmp.ne.s32.totalorder %s220, %s221
    %p230 = scmp.eq.s32.totalorder %s21, 0
    %p231 = por %p229, %p230
    %p232 = scmp.ne.s32.totalorder %s220, %s221
    %p233 = scmp.eq.s32.totalorder %s22, 1
    %p234 = por %p232, %p233
    %p236 = scmp.ne.s32.totalorder %s221, %s235
    %p237 = scmp.eq.s32.totalorder %s22, 0
    %p238 = por %p236, %p237
    %s239 = ssub.s32 %s16, %s23
    %p240 = scmp.eq.s32.totalorder %s239, 0
    %s242 = sadd.s32 %s241, 1
    %s243 = scalar_select %p240, %s241, %s242
    %p246 = pneg %p240
    %p247 = scmp.eq.s32.totalorder %s16, 1
    %p248 = por %p246, %p247
    %p249 = scmp.ne.s32.totalorder %s241, %s244
    %p250 = scmp.eq.s32.totalorder %s16, 0
    %p251 = por %p249, %p250
    %p252 = scmp.ne.s32.totalorder %s241, %s244
    %p253 = scmp.eq.s32.totalorder %s21, 1
    %p254 = por %p252, %p253
    %p255 = scmp.ne.s32.totalorder %s244, %s245
    %p256 = scmp.eq.s32.totalorder %s21, 0
    %p257 = por %p255, %p256
    %p258 = scmp.ne.s32.totalorder %s244, %s245
    %p259 = scmp.eq.s32.totalorder %s22, 1
    %p260 = por %p258, %p259
    %p262 = scmp.ne.s32.totalorder %s245, %s261
    %p263 = scmp.eq.s32.totalorder %s22, 0
    %p264 = por %p262, %p263
    %p265 = scmp.le.s32.totalorder 1, %s16
    %p266 = scmp.lt.s32.totalorder %s16, 3
    %p267 = pnand %p265, %p266
    %p268 = pneg %p267
    // Predicated region
    $region9: #{baseline_attn_cnp_forward.1} parent=5 // pred_check
      _
    $region10: #{baseline_attn_cnp_forward.1} parent=5 // pred_check_branch
      %270 = sbr.rel (%p267) target = $region12
    $region11: #{baseline_attn_cnp_forward.1} parent=5 // pred_region
      %s271 = ssub.s32 %s16, 1
      // Predicated region
      $region13: #{baseline_attn_cnp_forward.1} parent=11 // pred_check
        %p272 = pneg %p63
      $region14: #{baseline_attn_cnp_forward.1} parent=11 // pred_check_branch
        %274 = sbr.rel (%p272) target = $region16
      $region15: #{baseline_attn_cnp_forward.1} parent=11 // pred_region
        _
      $region16: #{baseline_attn_cnp_forward.1} parent=11 // pred_fallthru
        _
      // Predicated region
      $region17: #{baseline_attn_cnp_forward.1} parent=11 // pred_check
        %p275 = pneg %p84
      $region18: #{baseline_attn_cnp_forward.1} parent=11 // pred_check_branch
        %277 = sbr.rel (%p275) target = $region20
      $region19: #{baseline_attn_cnp_forward.1} parent=11 // pred_region
        _
      $region20: #{baseline_attn_cnp_forward.1} parent=11 // pred_fallthru
        _
      // Predicated region
      $region21: #{baseline_attn_cnp_forward.1} parent=11 // pred_check
        %p278 = pneg %p105
      $region22: #{baseline_attn_cnp_forward.1} parent=11 // pred_check_branch
        %280 = sbr.rel (%p278) target = $region24
      $region23: #{baseline_attn_cnp_forward.1} parent=11 // pred_region
        _
      $region24: #{baseline_attn_cnp_forward.1} parent=11 // pred_fallthru
        _
      // Predicated region
      $region25: #{baseline_attn_cnp_forward.1} parent=11 // pred_check
        %p281 = pneg %p126
      $region26: #{baseline_attn_cnp_forward.1} parent=11 // pred_check_branch
        %283 = sbr.rel (%p281) target = $region28
      $region27: #{baseline_attn_cnp_forward.1} parent=11 // pred_region
        _
      $region28: #{baseline_attn_cnp_forward.1} parent=11 // pred_fallthru
        _
      // Predicated region
      $region29: #{baseline_attn_cnp_forward.1} parent=11 // pred_check
        %p284 = pneg %p147
      $region30: #{baseline_attn_cnp_forward.1} parent=11 // pred_check_branch
        %286 = sbr.rel (%p284) target = $region32
      $region31: #{baseline_attn_cnp_forward.1} parent=11 // pred_region
        _
      $region32: #{baseline_attn_cnp_forward.1} parent=11 // pred_fallthru
        _
      // Predicated region
      $region33: #{baseline_attn_cnp_forward.1} parent=11 // pred_check
        %p287 = pneg %p168
      $region34: #{baseline_attn_cnp_forward.1} parent=11 // pred_check_branch
        %289 = sbr.rel (%p287) target = $region36
      $region35: #{baseline_attn_cnp_forward.1} parent=11 // pred_region
        _
      $region36: #{baseline_attn_cnp_forward.1} parent=11 // pred_fallthru
        _
      // Predicated region
      $region37: #{baseline_attn_cnp_forward.1} parent=11 // pred_check
        %p290 = pneg %p189
      $region38: #{baseline_attn_cnp_forward.1} parent=11 // pred_check_branch
        %292 = sbr.rel (%p290) target = $region40
      $region39: #{baseline_attn_cnp_forward.1} parent=11 // pred_region
        _
      $region40: #{baseline_attn_cnp_forward.1} parent=11 // pred_fallthru
        _
      // Predicated region
      $region41: #{baseline_attn_cnp_forward.1} parent=11 // pred_check
        %p293 = pneg %p210
      $region42: #{baseline_attn_cnp_forward.1} parent=11 // pred_check_branch
        %295 = sbr.rel (%p293) target = $region44
      $region43: #{baseline_attn_cnp_forward.1} parent=11 // pred_region
        _
      $region44: #{baseline_attn_cnp_forward.1} parent=11 // pred_fallthru
        _
      // Predicated region
      $region45: #{baseline_attn_cnp_forward.1} parent=11 // pred_check
        %p296 = pneg %p231
      $region46: #{baseline_attn_cnp_forward.1} parent=11 // pred_check_branch
        %298 = sbr.rel (%p296) target = $region48
      $region47: #{baseline_attn_cnp_forward.1} parent=11 // pred_region
        _
      $region48: #{baseline_attn_cnp_forward.1} parent=11 // pred_fallthru
        _
    $region12: #{baseline_attn_cnp_forward.1} parent=5 // pred_fallthru
      _
    %p299 = scmp.lt.s32.totalorder %s16, 2
    // Predicated region
    $region49: #{baseline_attn_cnp_forward.1} parent=5 // pred_check
      %p300 = pneg %p299
    $region50: #{baseline_attn_cnp_forward.1} parent=5 // pred_check_branch
      %302 = sbr.rel (%p300) target = $region52
    $region51: #{baseline_attn_cnp_forward.1} parent=5 // pred_region
      // Predicated region
      $region53: #{baseline_attn_cnp_forward.1} parent=51 // pred_check
        %p303 = pneg %p36
      $region54: #{baseline_attn_cnp_forward.1} parent=51 // pred_check_branch
        %305 = sbr.rel (%p303) target = $region56
      $region55: #{baseline_attn_cnp_forward.1} parent=51 // pred_region
        %s306 = smul.u32 2, %s16
        %p307 = scmp.lt.s32.totalorder %s306, 3
        %s308 = scalar_select %p307, %s306, 3
        %s309 = smul.addr %s308, 4
        %s310 = scalar_lea.vmem %s0, %s309
        %s311 = smul.u32 2, %s16
      $region56: #{baseline_attn_cnp_forward.1} parent=51 // pred_fallthru
        _
    $region52: #{baseline_attn_cnp_forward.1} parent=5 // pred_fallthru
      _
    %p312 = scmp.le.s32.totalorder 1, %s16
    %p313 = scmp.lt.s32.totalorder %s16, 3
    %p314 = pnand %p312, %p313
    %p315 = pneg %p314
    // Predicated region
    $region57: #{baseline_attn_cnp_forward.1} parent=5 // pred_check
      _
    $region58: #{baseline_attn_cnp_forward.1} parent=5 // pred_check_branch
      %317 = sbr.rel (%p314) target = $region60
    $region59: #{baseline_attn_cnp_forward.1} parent=5 // pred_region
      %s318 = ssub.s32 %s16, 1
      %s319 = smul.u32 2, %s21
      %p320 = scmp.lt.s32.totalorder %s319, 3
      %s321 = scalar_select %p320, %s319, 3
      %s322 = smul.addr %s321, 4
      %s323 = scalar_lea.vmem %s0, %s322
      %p324 = pneg %p42
      %p325 = pneg %p39
      %p326 = pneg %p63
      %p327 = pneg %p60
      %p328 = pneg %p84
      %p329 = pneg %p81
      %p330 = pneg %p105
      %p331 = pneg %p102
      %p332 = pneg %p126
      %p333 = pneg %p123
      %p334 = pneg %p147
      %p335 = pneg %p144
      %p336 = pneg %p168
      %p337 = pneg %p165
      %p338 = pneg %p189
      %p339 = pneg %p186
      %p340 = pneg %p210
      %p341 = pneg %p207
      %p342 = pneg %p231
      %p343 = pneg %p228
      %p344 = pneg %p257
      %p345 = pneg %p254
      %p346 = scmp.lt.s32.totalorder %s21, 1
      %s347 = scalar_select %p346, %s21, 1
      %s348 = smul.addr %s347, 8
      %s349 = scalar_lea.vmem %s10, %s348
      %s350 = smul.u32 2, %s21
      %p351 = scmp.lt.s32.totalorder %s350, 3
      %s352 = scalar_select %p351, %s350, 3
      %s353 = smul.addr %s352, 4
      %s354 = scalar_lea.vmem %s0, %s353
      %s355 = smul.u32 2, %s21
      %p356 = scmp.lt.s32.totalorder %s21, 1
      %s357 = scalar_select %p356, %s21, 1
      %s358 = smul.addr %s357, 8
      %s359 = scalar_lea.vmem %s10, %s358
      %v361 = vld [vmem:[%s354] sm:$0xf]
      %v362 = vld [vmem:[%s354 + $0x4] sm:$0xf]
      %v363 = vld [vmem:[%s1] sm:$0xf]
      %v364 = vld [vmem:[%s7] sm:$0x1]
      %v365 = vlaneseq
      %v366 = vshrl.u32 %v365, 7
      %v367 = vsub.s32 0, %v366
      %v368 = vrot.slane %v364, %v367
      %vm369 = vcmask 64512
      %v371 = vsel %vm369, %v361, 0
      %vm373 = vcmask 1043456
      %v375 = vsel %vm373, %v363, 0
      %377 = vmatprep.subr.bf16.mxu0 0
      %378 = vmatpush1.bf16.msra.mxu0 %v375
      %379 = vmatprep.subr.bf16.mxu0 0
      %380 = vmatpush1.bf16.msra.mxu0 0
      %381 = vmatprep.subr.bf16.mxu0 0
      %382 = vmatpush1.bf16.msra.mxu0 0
      %383 = vmatprep.subr.bf16.mxu0 0
      %384 = vmatpush1.bf16.msra.mxu0 0
      %385 = vmatprep.subr.bf16.mxu0 0
      %386 = vmatpush1.bf16.msra.mxu0 0
      %387 = vmatprep.subr.bf16.mxu0 0
      %388 = vmatpush1.bf16.msra.mxu0 0
      %389 = vmatprep.subr.bf16.mxu0 0
      %390 = vmatpush1.bf16.msra.mxu0 0
      %391 = vmatprep.subr.bf16.mxu0 0
      %392 = vmatpush1.bf16.msra.mxu0 0
      %393 = vmatprep.subr.bf16.mxu0 0
      %394 = vmatpush1.bf16.msra.mxu0 0
      %395 = vmatprep.subr.bf16.mxu0 0
      %396 = vmatpush1.bf16.msra.mxu0 0
      %397 = vmatprep.subr.bf16.mxu0 0
      %398 = vmatpush1.bf16.msra.mxu0 0
      %399 = vmatprep.subr.bf16.mxu0 0
      %400 = vmatpush1.bf16.msra.mxu0 0
      %401 = vmatprep.subr.bf16.mxu0 0
      %402 = vmatpush1.bf16.msra.mxu0 0
      %403 = vmatprep.subr.bf16.mxu0 0
      %404 = vmatpush1.bf16.msra.mxu0 0
      %405 = vmatprep.subr.bf16.mxu0 0
      %406 = vmatpush1.bf16.msra.mxu0 0
      %407 = vmatprep.subr.bf16.mxu0 0
      %408 = vmatpush1.bf16.msra.mxu0 0
      %409 = vmatprep.mubr.bf16.mxu0 0
      %410 = vmatmul.mubr.bf16.gmra.mrb[0].mxu0 %v371
      %v411 = vpop.f32.mrb[0].mxu0
      %v412 = vadd.f32 %v368, %v411
      %v413 = vpop.f32.mrb[0].mxu0
      %v414 = vpop.f32.mrb[0].mxu0
      %v415 = vpop.f32.mrb[0].mxu0
      %416 = vdwg.mxu0
      %v417 = vmax.f32 %v412, 0.0
      %v418 = vpack.c.bf16 %v417, %v417
      %v419 = vld [vmem:[%s2] sm:$0xf]
      %v420 = vld [vmem:[%s2 + $0x4] sm:$0xf]
      %v421 = vld [vmem:[%s2 + $0x8] sm:$0xf]
      %v422 = vld [vmem:[%s2 + $0xc] sm:$0xf]
      %v423 = vld [vmem:[%s2 + $0x10] sm:$0xf]
      %v424 = vld [vmem:[%s2 + $0x14] sm:$0xf]
      %v425 = vld [vmem:[%s2 + $0x18] sm:$0xf]
      %v426 = vld [vmem:[%s2 + $0x1c] sm:$0xf]
      %v427 = vld [vmem:[%s7 + $0x1] sm:$0x1]
      %v428 = vlaneseq
      %v429 = vshrl.u32 %v428, 7
      %v430 = vsub.s32 0, %v429
      %v431 = vrot.slane %v427, %v430
      %v440 = vunpack.c.l.b16 %v419
      %v441 = vunpack.c.l.b16 %v420
      %v442 = vunpack.c.l.b16 %v421
      %v443 = vunpack.c.l.b16 %v422
      %v444 = vunpack.c.l.b16 %v423
      %v445 = vunpack.c.l.b16 %v424
      %v446 = vunpack.c.l.b16 %v425
      %v447 = vunpack.c.l.b16 %v426
      %v448 = vpack.c.b16 %v441, %v440
      %v449 = vpack.c.b16 %v443, %v442
      %v450 = vpack.c.b16 %v445, %v444
      %v451 = vpack.c.b16 %v447, %v446
      %vm456 = vcmask 523264
      %v458 = vsel %vm456, %v418, 0
      %460 = vmatprep.subr.bf16.mxu0 0
      %461 = vmatpush1.bf16.msra.mxu0 %v448
      %462 = vmatprep.subr.bf16.mxu0 0
      %463 = vmatpush1.bf16.msra.mxu0 %v449
      %464 = vmatprep.subr.bf16.mxu0 0
      %465 = vmatpush1.bf16.msra.mxu0 %v450
      %466 = vmatprep.subr.bf16.mxu0 0
      %467 = vmatpush1.bf16.msra.mxu0 %v451
      %468 = vmatprep.subr.bf16.mxu0 0
      %469 = vmatpush1.bf16.msra.mxu0 0
      %470 = vmatprep.subr.bf16.mxu0 0
      %471 = vmatpush1.bf16.msra.mxu0 0
      %472 = vmatprep.subr.bf16.mxu0 0
      %473 = vmatpush1.bf16.msra.mxu0 0
      %474 = vmatprep.subr.bf16.mxu0 0
      %475 = vmatpush1.bf16.msra.mxu0 0
      %476 = vmatprep.subr.bf16.mxu0 0
      %477 = vmatpush1.bf16.msra.mxu0 0
      %478 = vmatprep.subr.bf16.mxu0 0
      %479 = vmatpush1.bf16.msra.mxu0 0
      %480 = vmatprep.subr.bf16.mxu0 0
      %481 = vmatpush1.bf16.msra.mxu0 0
      %482 = vmatprep.subr.bf16.mxu0 0
      %483 = vmatpush1.bf16.msra.mxu0 0
      %484 = vmatprep.subr.bf16.mxu0 0
      %485 = vmatpush1.bf16.msra.mxu0 0
      %486 = vmatprep.subr.bf16.mxu0 0
      %487 = vmatpush1.bf16.msra.mxu0 0
      %488 = vmatprep.subr.bf16.mxu0 0
      %489 = vmatpush1.bf16.msra.mxu0 0
      %490 = vmatprep.subr.bf16.mxu0 0
      %491 = vmatpush1.bf16.msra.mxu0 0
      %492 = vmatprep.mubr.bf16.mxu0 0
      %493 = vmatmul.mubr.bf16.gmra.mrb[0].mxu0 %v458
      %v494 = vpop.f32.mrb[0].mxu0
      %v495 = vadd.f32 %v431, %v494
      %v496 = vpop.f32.mrb[0].mxu0
      %v497 = vpop.f32.mrb[0].mxu0
      %v498 = vpop.f32.mrb[0].mxu0
      %499 = vdwg.mxu0
      %v500 = vpack.c.bf16 %v495, %v495
      %v501 = vld [vmem:[%s3] sm:$0xf]
      %v502 = vld [vmem:[%s8] sm:$0x1]
      %v503 = vlaneseq
      %v504 = vshrl.u32 %v503, 7
      %v505 = vsub.s32 0, %v504
      %v506 = vrot.slane %v502, %v505
      %v508 = vsel %vm369, %v362, 0
      %v511 = vsel %vm373, %v501, 0
      %513 = vmatprep.subr.bf16.mxu0 0
      %514 = vmatpush1.bf16.msra.mxu0 %v511
      %515 = vmatprep.subr.bf16.mxu0 0
      %516 = vmatpush1.bf16.msra.mxu0 0
      %517 = vmatprep.subr.bf16.mxu0 0
      %518 = vmatpush1.bf16.msra.mxu0 0
      %519 = vmatprep.subr.bf16.mxu0 0
      %520 = vmatpush1.bf16.msra.mxu0 0
      %521 = vmatprep.subr.bf16.mxu0 0
      %522 = vmatpush1.bf16.msra.mxu0 0
      %523 = vmatprep.subr.bf16.mxu0 0
      %524 = vmatpush1.bf16.msra.mxu0 0
      %525 = vmatprep.subr.bf16.mxu0 0
      %526 = vmatpush1.bf16.msra.mxu0 0
      %527 = vmatprep.subr.bf16.mxu0 0
      %528 = vmatpush1.bf16.msra.mxu0 0
      %529 = vmatprep.subr.bf16.mxu0 0
      %530 = vmatpush1.bf16.msra.mxu0 0
      %531 = vmatprep.subr.bf16.mxu0 0
      %532 = vmatpush1.bf16.msra.mxu0 0
      %533 = vmatprep.subr.bf16.mxu0 0
      %534 = vmatpush1.bf16.msra.mxu0 0
      %535 = vmatprep.subr.bf16.mxu0 0
      %536 = vmatpush1.bf16.msra.mxu0 0
      %537 = vmatprep.subr.bf16.mxu0 0
      %538 = vmatpush1.bf16.msra.mxu0 0
      %539 = vmatprep.subr.bf16.mxu0 0
      %540 = vmatpush1.bf16.msra.mxu0 0
      %541 = vmatprep.subr.bf16.mxu0 0
      %542 = vmatpush1.bf16.msra.mxu0 0
      %543 = vmatprep.subr.bf16.mxu0 0
      %544 = vmatpush1.bf16.msra.mxu0 0
      %545 = vmatprep.mubr.bf16.mxu0 0
      %546 = vmatmul.mubr.bf16.gmra.mrb[0].mxu0 %v508
      %v547 = vpop.f32.mrb[0].mxu0
      %v548 = vadd.f32 %v506, %v547
      %v549 = vpop.f32.mrb[0].mxu0
      %v550 = vpop.f32.mrb[0].mxu0
      %v551 = vpop.f32.mrb[0].mxu0
      %552 = vdwg.mxu0
      %v553 = vmax.f32 %v548, 0.0
      %v554 = vpack.c.bf16 %v553, %v553
      %v555 = vld [vmem:[%s4] sm:$0xf]
      %v556 = vld [vmem:[%s4 + $0x4] sm:$0xf]
      %v557 = vld [vmem:[%s4 + $0x8] sm:$0xf]
      %v558 = vld [vmem:[%s4 + $0xc] sm:$0xf]
      %v559 = vld [vmem:[%s8 + $0x1] sm:$0x1]
      %v560 = vlaneseq
      %v561 = vshrl.u32 %v560, 7
      %v562 = vsub.s32 0, %v561
      %v563 = vrot.slane %v559, %v562
      %v568 = vunpack.c.l.b16 %v555
      %v569 = vunpack.c.l.b16 %v556
      %v570 = vunpack.c.l.b16 %v557
      %v571 = vunpack.c.l.b16 %v558
      %v572 = vpack.c.b16 %v569, %v568
      %v573 = vpack.c.b16 %v571, %v570
      %vm576 = vcmask 261120
      %v578 = vsel %vm576, %v554, 0
      %580 = vmatprep.subr.bf16.mxu0 0
      %581 = vmatpush1.bf16.msra.mxu0 %v572
      %582 = vmatprep.subr.bf16.mxu0 0
      %583 = vmatpush1.bf16.msra.mxu0 %v573
      %584 = vmatprep.subr.bf16.mxu0 0
      %585 = vmatpush1.bf16.msra.mxu0 0
      %586 = vmatprep.subr.bf16.mxu0 0
      %587 = vmatpush1.bf16.msra.mxu0 0
      %588 = vmatprep.subr.bf16.mxu0 0
      %589 = vmatpush1.bf16.msra.mxu0 0
      %590 = vmatprep.subr.bf16.mxu0 0
      %591 = vmatpush1.bf16.msra.mxu0 0
      %592 = vmatprep.subr.bf16.mxu0 0
      %593 = vmatpush1.bf16.msra.mxu0 0
      %594 = vmatprep.subr.bf16.mxu0 0
      %595 = vmatpush1.bf16.msra.mxu0 0
      %596 = vmatprep.subr.bf16.mxu0 0
      %597 = vmatpush1.bf16.msra.mxu0 0
      %598 = vmatprep.subr.bf16.mxu0 0
      %599 = vmatpush1.bf16.msra.mxu0 0
      %600 = vmatprep.subr.bf16.mxu0 0
      %601 = vmatpush1.bf16.msra.mxu0 0
      %602 = vmatprep.subr.bf16.mxu0 0
      %603 = vmatpush1.bf16.msra.mxu0 0
      %604 = vmatprep.subr.bf16.mxu0 0
      %605 = vmatpush1.bf16.msra.mxu0 0
      %606 = vmatprep.subr.bf16.mxu0 0
      %607 = vmatpush1.bf16.msra.mxu0 0
      %608 = vmatprep.subr.bf16.mxu0 0
      %609 = vmatpush1.bf16.msra.mxu0 0
      %610 = vmatprep.subr.bf16.mxu0 0
      %611 = vmatpush1.bf16.msra.mxu0 0
      %612 = vmatprep.mubr.bf16.mxu0 0
      %613 = vmatmul.mubr.bf16.gmra.mrb[0].mxu0 %v578
      %v614 = vpop.f32.mrb[0].mxu0
      %v615 = vadd.f32 %v563, %v614
      %v616 = vpop.f32.mrb[0].mxu0
      %v617 = vpop.f32.mrb[0].mxu0
      %v618 = vpop.f32.mrb[0].mxu0
      %619 = vdwg.mxu0
      %v620 = vpack.c.bf16 %v615, %v615
      %s621 = scalar_lea.vmem %s4, 16
      %v622 = vld [vmem:[%s621] sm:$0xf]
      %v623 = vld [vmem:[%s621 + $0x4] sm:$0xf]
      %v624 = vld [vmem:[%s621 + $0x8] sm:$0xf]
      %v625 = vld [vmem:[%s621 + $0xc] sm:$0xf]
      %v626 = vld [vmem:[%s8 + $0x2] sm:$0x1]
      %v627 = vlaneseq
      %v628 = vshrl.u32 %v627, 7
      %v629 = vsub.s32 0, %v628
      %v630 = vrot.slane %v626, %v629
      %v635 = vunpack.c.l.b16 %v622
      %v636 = vunpack.c.l.b16 %v623
      %v637 = vunpack.c.l.b16 %v624
      %v638 = vunpack.c.l.b16 %v625
      %v639 = vpack.c.b16 %v636, %v635
      %v640 = vpack.c.b16 %v638, %v637
      %v644 = vsel %vm576, %v620, 0
      %646 = vmatprep.subr.bf16.mxu0 0
      %647 = vmatpush1.bf16.msra.mxu0 %v639
      %648 = vmatprep.subr.bf16.mxu0 0
      %649 = vmatpush1.bf16.msra.mxu0 %v640
      %650 = vmatprep.subr.bf16.mxu0 0
      %651 = vmatpush1.bf16.msra.mxu0 0
      %652 = vmatprep.subr.bf16.mxu0 0
      %653 = vmatpush1.bf16.msra.mxu0 0
      %654 = vmatprep.subr.bf16.mxu0 0
      %655 = vmatpush1.bf16.msra.mxu0 0
      %656 = vmatprep.subr.bf16.mxu0 0
      %657 = vmatpush1.bf16.msra.mxu0 0
      %658 = vmatprep.subr.bf16.mxu0 0
      %659 = vmatpush1.bf16.msra.mxu0 0
      %660 = vmatprep.subr.bf16.mxu0 0
      %661 = vmatpush1.bf16.msra.mxu0 0
      %662 = vmatprep.subr.bf16.mxu0 0
      %663 = vmatpush1.bf16.msra.mxu0 0
      %664 = vmatprep.subr.bf16.mxu0 0
      %665 = vmatpush1.bf16.msra.mxu0 0
      %666 = vmatprep.subr.bf16.mxu0 0
      %667 = vmatpush1.bf16.msra.mxu0 0
      %668 = vmatprep.subr.bf16.mxu0 0
      %669 = vmatpush1.bf16.msra.mxu0 0
      %670 = vmatprep.subr.bf16.mxu0 0
      %671 = vmatpush1.bf16.msra.mxu0 0
      %672 = vmatprep.subr.bf16.mxu0 0
      %673 = vmatpush1.bf16.msra.mxu0 0
      %674 = vmatprep.subr.bf16.mxu0 0
      %675 = vmatpush1.bf16.msra.mxu0 0
      %676 = vmatprep.subr.bf16.mxu0 0
      %677 = vmatpush1.bf16.msra.mxu0 0
      %678 = vmatprep.mubr.bf16.mxu0 0
      %679 = vmatmul.mubr.bf16.gmra.mrb[0].mxu0 %v644
      %v680 = vpop.f32.mrb[0].mxu0
      %v681 = vadd.f32 %v630, %v680
      %v682 = vpop.f32.mrb[0].mxu0
      %v683 = vpop.f32.mrb[0].mxu0
      %v684 = vpop.f32.mrb[0].mxu0
      %685 = vdwg.mxu0
      %v686 = vpack.c.bf16 %v681, %v681
      %v687 = vld [vmem:[%s5] sm:$0xf]
      %v688 = vld [vmem:[%s5 + $0x4] sm:$0xf]
      %v689 = vld [vmem:[%s5 + $0x8] sm:$0xf]
      %v690 = vld [vmem:[%s5 + $0xc] sm:$0xf]
      %v691 = vld [vmem:[%s5 + $0x10] sm:$0xf]
      %v692 = vld [vmem:[%s5 + $0x14] sm:$0xf]
      %v693 = vld [vmem:[%s5 + $0x18] sm:$0xf]
      %v694 = vld [vmem:[%s5 + $0x1c] sm:$0xf]
      %v695 = vld [vmem:[%s8 + $0x8] sm:$0x1]
      %v696 = vlaneseq
      %v697 = vshrl.u32 %v696, 7
      %v698 = vsub.s32 0, %v697
      %v699 = vrot.slane %v695, %v698
      %v708 = vunpack.c.l.b16 %v687
      %v709 = vunpack.c.l.b16 %v688
      %v710 = vunpack.c.l.b16 %v689
      %v711 = vunpack.c.l.b16 %v690
      %v712 = vunpack.c.l.b16 %v691
      %v713 = vunpack.c.l.b16 %v692
      %v714 = vunpack.c.l.b16 %v693
      %v715 = vunpack.c.l.b16 %v694
      %v716 = vpack.c.b16 %v709, %v708
      %v717 = vpack.c.b16 %v711, %v710
      %v718 = vpack.c.b16 %v713, %v712
      %v719 = vpack.c.b16 %v715, %v714
      %v725 = vsel %vm456, %v500, 0
      %727 = vmatprep.subr.bf16.mxu0 0
      %728 = vmatpush1.bf16.msra.mxu0 %v716
      %729 = vmatprep.subr.bf16.mxu0 0
      %730 = vmatpush1.bf16.msra.mxu0 %v717
      %731 = vmatprep.subr.bf16.mxu0 0
      %732 = vmatpush1.bf16.msra.mxu0 %v718
      %733 = vmatprep.subr.bf16.mxu0 0
      %734 = vmatpush1.bf16.msra.mxu0 %v719
      %735 = vmatprep.subr.bf16.mxu0 0
      %736 = vmatpush1.bf16.msra.mxu0 0
      %737 = vmatprep.subr.bf16.mxu0 0
      %738 = vmatpush1.bf16.msra.mxu0 0
      %739 = vmatprep.subr.bf16.mxu0 0
      %740 = vmatpush1.bf16.msra.mxu0 0
      %741 = vmatprep.subr.bf16.mxu0 0
      %742 = vmatpush1.bf16.msra.mxu0 0
      %743 = vmatprep.subr.bf16.mxu0 0
      %744 = vmatpush1.bf16.msra.mxu0 0
      %745 = vmatprep.subr.bf16.mxu0 0
      %746 = vmatpush1.bf16.msra.mxu0 0
      %747 = vmatprep.subr.bf16.mxu0 0
      %748 = vmatpush1.bf16.msra.mxu0 0
      %749 = vmatprep.subr.bf16.mxu0 0
      %750 = vmatpush1.bf16.msra.mxu0 0
      %751 = vmatprep.subr.bf16.mxu0 0
      %752 = vmatpush1.bf16.msra.mxu0 0
      %753 = vmatprep.subr.bf16.mxu0 0
      %754 = vmatpush1.bf16.msra.mxu0 0
      %755 = vmatprep.subr.bf16.mxu0 0
      %756 = vmatpush1.bf16.msra.mxu0 0
      %757 = vmatprep.subr.bf16.mxu0 0
      %758 = vmatpush1.bf16.msra.mxu0 0
      %759 = vmatprep.mubr.bf16.mxu0 0
      %760 = vmatmul.mubr.bf16.gmra.mrb[0].mxu0 %v725
      %v761 = vpop.f32.mrb[0].mxu0
      %v762 = vadd.f32 %v699, %v761
      %v763 = vpop.f32.mrb[0].mxu0
      %v764 = vpop.f32.mrb[0].mxu0
      %v765 = vpop.f32.mrb[0].mxu0
      %766 = vdwg.mxu0
      %v767 = vpack.c.bf16 %v762, %v762
      %v769 = vsel %vm576, %v686, 0
      %v772 = vsel %vm576, %v767, 0
      %774 = vmatprep.subr.bf16.mxu0 0
      %775 = vmatpush1.bf16.xpose.msra.mxu0 %v772
      %776 = vmatprep.subr.bf16.mxu0 0
      %777 = vmatpush1.bf16.xpose.msra.mxu0 0
      %778 = vmatprep.subr.bf16.mxu0 0
      %779 = vmatpush1.bf16.xpose.msra.mxu0 0
      %780 = vmatprep.subr.bf16.mxu0 0
      %781 = vmatpush1.bf16.xpose.msra.mxu0 0
      %782 = vmatprep.subr.bf16.mxu0 0
      %783 = vmatpush1.bf16.xpose.msra.mxu0 0
      %784 = vmatprep.subr.bf16.mxu0 0
      %785 = vmatpush1.bf16.xpose.msra.mxu0 0
      %786 = vmatprep.subr.bf16.mxu0 0
      %787 = vmatpush1.bf16.xpose.msra.mxu0 0
      %788 = vmatprep.subr.bf16.mxu0 0
      %789 = vmatpush1.bf16.xpose.msra.mxu0 0
      %790 = vmatprep.subr.bf16.mxu0 0
      %791 = vmatpush1.bf16.xpose.msra.mxu0 0
      %792 = vmatprep.subr.bf16.mxu0 0
      %793 = vmatpush1.bf16.xpose.msra.mxu0 0
      %794 = vmatprep.subr.bf16.mxu0 0
      %795 = vmatpush1.bf16.xpose.msra.mxu0 0
      %796 = vmatprep.subr.bf16.mxu0 0
      %797 = vmatpush1.bf16.xpose.msra.mxu0 0
      %798 = vmatprep.subr.bf16.mxu0 0
      %799 = vmatpush1.bf16.xpose.msra.mxu0 0
      %800 = vmatprep.subr.bf16.mxu0 0
      %801 = vmatpush1.bf16.xpose.msra.mxu0 0
      %802 = vmatprep.subr.bf16.mxu0 0
      %803 = vmatpush1.bf16.xpose.msra.mxu0 0
      %804 = vmatprep.subr.bf16.mxu0 0
      %805 = vmatpush1.bf16.xpose.msra.mxu0 0
      %806 = vmatprep.mubr.bf16.mxu0 0
      %807 = vmatmul.mubr.bf16.gmra.mrb[0].mxu0 %v769
      %v808 = vpop.f32.mrb[0].mxu0
      %v809 = vadd.f32 0.0, %v808
      %v810 = vpop.f32.mrb[0].mxu0
      %v811 = vpop.f32.mrb[0].mxu0
      %v812 = vpop.f32.mrb[0].mxu0
      %813 = vdwg.mxu0
      %v814 = vsel %vm369, %v809, -inf
      %815 = vmax.xlane.f32.xlu0 %v814
      %v816 = vpop.xlane.xlu0 %815
      %v817 = vsub.f32 %v809, %v816
      %v818 = vmul.f32 %v817, 1.442695
      %v819 = vpow.pop %v818
      %v820 = vsel %vm369, %v819, 0.0
      %821 = vadd.xlane.f32.xlu0 %v820
      %v822 = vpop.xlane.xlu0 %821
      %v823 = vrcp.pop %v822
      %v824 = vmul.f32 %v822, %v823
      %v825 = vsub.f32 2.0, %v824
      %v826 = vmul.f32 %v823, %v825
      %v827 = vmul.f32 %v819, %v826
      %v828 = vpack.c.bf16 %v827, %v827
      %s829 = scalar_lea.vmem %s5, 32
      %v830 = vld [vmem:[%s829] sm:$0xf]
      %v831 = vld [vmem:[%s829 + $0x4] sm:$0xf]
      %v832 = vld [vmem:[%s829 + $0x8] sm:$0xf]
      %v833 = vld [vmem:[%s829 + $0xc] sm:$0xf]
      %v834 = vld [vmem:[%s829 + $0x10] sm:$0xf]
      %v835 = vld [vmem:[%s829 + $0x14] sm:$0xf]
      %v836 = vld [vmem:[%s829 + $0x18] sm:$0xf]
      %v837 = vld [vmem:[%s829 + $0x1c] sm:$0xf]
      %v838 = vld [vmem:[%s8 + $0x10] sm:$0x1]
      %v839 = vlaneseq
      %v840 = vshrl.u32 %v839, 7
      %v841 = vsub.s32 0, %v840
      %v842 = vrot.slane %v838, %v841
      %v851 = vunpack.c.l.b16 %v830
      %v852 = vunpack.c.l.b16 %v831
      %v853 = vunpack.c.l.b16 %v832
      %v854 = vunpack.c.l.b16 %v833
      %v855 = vunpack.c.l.b16 %v834
      %v856 = vunpack.c.l.b16 %v835
      %v857 = vunpack.c.l.b16 %v836
      %v858 = vunpack.c.l.b16 %v837
      %v859 = vpack.c.b16 %v852, %v851
      %v860 = vpack.c.b16 %v854, %v853
      %v861 = vpack.c.b16 %v856, %v855
      %v862 = vpack.c.b16 %v858, %v857
      %867 = vmatprep.subr.bf16.mxu0 0
      %868 = vmatpush1.bf16.msra.mxu0 %v859
      %869 = vmatprep.subr.bf16.mxu0 0
      %870 = vmatpush1.bf16.msra.mxu0 %v860
      %871 = vmatprep.subr.bf16.mxu0 0
      %872 = vmatpush1.bf16.msra.mxu0 %v861
      %873 = vmatprep.subr.bf16.mxu0 0
      %874 = vmatpush1.bf16.msra.mxu0 %v862
      %875 = vmatprep.subr.bf16.mxu0 0
      %876 = vmatpush1.bf16.msra.mxu0 0
      %877 = vmatprep.subr.bf16.mxu0 0
      %878 = vmatpush1.bf16.msra.mxu0 0
      %879 = vmatprep.subr.bf16.mxu0 0
      %880 = vmatpush1.bf16.msra.mxu0 0
      %881 = vmatprep.subr.bf16.mxu0 0
      %882 = vmatpush1.bf16.msra.mxu0 0
      %883 = vmatprep.subr.bf16.mxu0 0
      %884 = vmatpush1.bf16.msra.mxu0 0
      %885 = vmatprep.subr.bf16.mxu0 0
      %886 = vmatpush1.bf16.msra.mxu0 0
      %887 = vmatprep.subr.bf16.mxu0 0
      %888 = vmatpush1.bf16.msra.mxu0 0
      %889 = vmatprep.subr.bf16.mxu0 0
      %890 = vmatpush1.bf16.msra.mxu0 0
      %891 = vmatprep.subr.bf16.mxu0 0
      %892 = vmatpush1.bf16.msra.mxu0 0
      %893 = vmatprep.subr.bf16.mxu0 0
      %894 = vmatpush1.bf16.msra.mxu0 0
      %895 = vmatprep.subr.bf16.mxu0 0
      %896 = vmatpush1.bf16.msra.mxu0 0
      %897 = vmatprep.subr.bf16.mxu0 0
      %898 = vmatpush1.bf16.msra.mxu0 0
      %899 = vmatprep.mubr.bf16.mxu0 0
      %900 = vmatmul.mubr.bf16.gmra.mrb[0].mxu0 %v725
      %v901 = vpop.f32.mrb[0].mxu0
      %v902 = vadd.f32 %v842, %v901
      %v903 = vpop.f32.mrb[0].mxu0
      %v904 = vpop.f32.mrb[0].mxu0
      %v905 = vpop.f32.mrb[0].mxu0
      %906 = vdwg.mxu0
      %v907 = vpack.c.bf16 %v902, %v902
      %s908 = scalar_lea.vmem %s5, 64
      %v909 = vld [vmem:[%s908] sm:$0xf]
      %v910 = vld [vmem:[%s908 + $0x4] sm:$0xf]
      %v911 = vld [vmem:[%s908 + $0x8] sm:$0xf]
      %v912 = vld [vmem:[%s908 + $0xc] sm:$0xf]
      %v913 = vld [vmem:[%s908 + $0x10] sm:$0xf]
      %v914 = vld [vmem:[%s908 + $0x14] sm:$0xf]
      %v915 = vld [vmem:[%s908 + $0x18] sm:$0xf]
      %v916 = vld [vmem:[%s908 + $0x1c] sm:$0xf]
      %v917 = vld [vmem:[%s8 + $0x9] sm:$0x1]
      %v918 = vlaneseq
      %v919 = vshrl.u32 %v918, 7
      %v920 = vsub.s32 0, %v919
      %v921 = vrot.slane %v917, %v920
      %v930 = vunpack.c.l.b16 %v909
      %v931 = vunpack.c.l.b16 %v910
      %v932 = vunpack.c.l.b16 %v911
      %v933 = vunpack.c.l.b16 %v912
      %v934 = vunpack.c.l.b16 %v913
      %v935 = vunpack.c.l.b16 %v914
      %v936 = vunpack.c.l.b16 %v915
      %v937 = vunpack.c.l.b16 %v916
      %v938 = vpack.c.b16 %v931, %v930
      %v939 = vpack.c.b16 %v933, %v932
      %v940 = vpack.c.b16 %v935, %v934
      %v941 = vpack.c.b16 %v937, %v936
      %946 = vmatprep.subr.bf16.mxu0 0
      %947 = vmatpush1.bf16.msra.mxu0 %v938
      %948 = vmatprep.subr.bf16.mxu0 0
      %949 = vmatpush1.bf16.msra.mxu0 %v939
      %950 = vmatprep.subr.bf16.mxu0 0
      %951 = vmatpush1.bf16.msra.mxu0 %v940
      %952 = vmatprep.subr.bf16.mxu0 0
      %953 = vmatpush1.bf16.msra.mxu0 %v941
      %954 = vmatprep.subr.bf16.mxu0 0
      %955 = vmatpush1.bf16.msra.mxu0 0
      %956 = vmatprep.subr.bf16.mxu0 0
      %957 = vmatpush1.bf16.msra.mxu0 0
      %958 = vmatprep.subr.bf16.mxu0 0
      %959 = vmatpush1.bf16.msra.mxu0 0
      %960 = vmatprep.subr.bf16.mxu0 0
      %961 = vmatpush1.bf16.msra.mxu0 0
      %962 = vmatprep.subr.bf16.mxu0 0
      %963 = vmatpush1.bf16.msra.mxu0 0
      %964 = vmatprep.subr.bf16.mxu0 0
      %965 = vmatpush1.bf16.msra.mxu0 0
      %966 = vmatprep.subr.bf16.mxu0 0
      %967 = vmatpush1.bf16.msra.mxu0 0
      %968 = vmatprep.subr.bf16.mxu0 0
      %969 = vmatpush1.bf16.msra.mxu0 0
      %970 = vmatprep.subr.bf16.mxu0 0
      %971 = vmatpush1.bf16.msra.mxu0 0
      %972 = vmatprep.subr.bf16.mxu0 0
      %973 = vmatpush1.bf16.msra.mxu0 0
      %974 = vmatprep.subr.bf16.mxu0 0
      %975 = vmatpush1.bf16.msra.mxu0 0
      %976 = vmatprep.subr.bf16.mxu0 0
      %977 = vmatpush1.bf16.msra.mxu0 0
      %978 = vmatprep.mubr.bf16.mxu0 0
      %979 = vmatmul.mubr.bf16.gmra.mrb[0].mxu0 %v725
      %v980 = vpop.f32.mrb[0].mxu0
      %v981 = vadd.f32 %v921, %v980
      %v982 = vpop.f32.mrb[0].mxu0
      %v983 = vpop.f32.mrb[0].mxu0
      %v984 = vpop.f32.mrb[0].mxu0
      %985 = vdwg.mxu0
      %v986 = vpack.c.bf16 %v981, %v981
      %v988 = vsel %vm576, %v986, 0
      %990 = vmatprep.subr.bf16.mxu0 0
      %991 = vmatpush1.bf16.xpose.msra.mxu0 %v988
      %992 = vmatprep.subr.bf16.mxu0 0
      %993 = vmatpush1.bf16.xpose.msra.mxu0 0
      %994 = vmatprep.subr.bf16.mxu0 0
      %995 = vmatpush1.bf16.xpose.msra.mxu0 0
      %996 = vmatprep.subr.bf16.mxu0 0
      %997 = vmatpush1.bf16.xpose.msra.mxu0 0
      %998 = vmatprep.subr.bf16.mxu0 0
      %999 = vmatpush1.bf16.xpose.msra.mxu0 0
      %1000 = vmatprep.subr.bf16.mxu0 0
      %1001 = vmatpush1.bf16.xpose.msra.mxu0 0
      %1002 = vmatprep.subr.bf16.mxu0 0
      %1003 = vmatpush1.bf16.xpose.msra.mxu0 0
      %1004 = vmatprep.subr.bf16.mxu0 0
      %1005 = vmatpush1.bf16.xpose.msra.mxu0 0
      %1006 = vmatprep.subr.bf16.mxu0 0
      %1007 = vmatpush1.bf16.xpose.msra.mxu0 0
      %1008 = vmatprep.subr.bf16.mxu0 0
      %1009 = vmatpush1.bf16.xpose.msra.mxu0 0
      %1010 = vmatprep.subr.bf16.mxu0 0
      %1011 = vmatpush1.bf16.xpose.msra.mxu0 0
      %1012 = vmatprep.subr.bf16.mxu0 0
      %1013 = vmatpush1.bf16.xpose.msra.mxu0 0
      %1014 = vmatprep.subr.bf16.mxu0 0
      %1015 = vmatpush1.bf16.xpose.msra.mxu0 0
      %1016 = vmatprep.subr.bf16.mxu0 0
      %1017 = vmatpush1.bf16.xpose.msra.mxu0 0
      %1018 = vmatprep.subr.bf16.mxu0 0
      %1019 = vmatpush1.bf16.xpose.msra.mxu0 0
      %1020 = vmatprep.subr.bf16.mxu0 0
      %1021 = vmatpush1.bf16.xpose.msra.mxu0 0
      %1022 = vmatprep.mubr.bf16.mxu0 0
      %1023 = vmatmul.mubr.bf16.gmra.mrb[0].mxu0 %v769
      %v1024 = vpop.f32.mrb[0].mxu0
      %v1025 = vadd.f32 0.0, %v1024
      %v1026 = vpop.f32.mrb[0].mxu0
      %v1027 = vpop.f32.mrb[0].mxu0
      %v1028 = vpop.f32.mrb[0].mxu0
      %1029 = vdwg.mxu0
      %v1030 = vsel %vm369, %v1025, -inf
      %1031 = vmax.xlane.f32.xlu0 %v1030
      %v1032 = vpop.xlane.xlu0 %1031
      %v1033 = vsub.f32 %v1025, %v1032
      %v1034 = vmul.f32 %v1033, 1.442695
      %v1035 = vpow.pop %v1034
      %v1036 = vsel %vm369, %v1035, 0.0
      %1037 = vadd.xlane.f32.xlu0 %v1036
      %v1038 = vpop.xlane.xlu0 %1037
      %v1039 = vrcp.pop %v1038
      %v1040 = vmul.f32 %v1038, %v1039
      %v1041 = vsub.f32 2.0, %v1040
      %v1042 = vmul.f32 %v1039, %v1041
      %v1043 = vmul.f32 %v1035, %v1042
      %v1044 = vpack.c.bf16 %v1043, %v1043
      %s1045 = scalar_lea.vmem %s5, 96
      %v1046 = vld [vmem:[%s1045] sm:$0xf]
      %v1047 = vld [vmem:[%s1045 + $0x4] sm:$0xf]
      %v1048 = vld [vmem:[%s1045 + $0x8] sm:$0xf]
      %v1049 = vld [vmem:[%s1045 + $0xc] sm:$0xf]
      %v1050 = vld [vmem:[%s1045 + $0x10] sm:$0xf]
      %v1051 = vld [vmem:[%s1045 + $0x14] sm:$0xf]
      %v1052 = vld [vmem:[%s1045 + $0x18] sm:$0xf]
      %v1053 = vld [vmem:[%s1045 + $0x1c] sm:$0xf]
      %v1054 = vld [vmem:[%s8 + $0x11] sm:$0x1]
      %v1055 = vlaneseq
      %v1056 = vshrl.u32 %v1055, 7
      %v1057 = vsub.s32 0, %v1056
      %v1058 = vrot.slane %v1054, %v1057
      %v1067 = vunpack.c.l.b16 %v1046
      %v1068 = vunpack.c.l.b16 %v1047
      %v1069 = vunpack.c.l.b16 %v1048
      %v1070 = vunpack.c.l.b16 %v1049
      %v1071 = vunpack.c.l.b16 %v1050
      %v1072 = vunpack.c.l.b16 %v1051
      %v1073 = vunpack.c.l.b16 %v1052
      %v1074 = vunpack.c.l.b16 %v1053
      %v1075 = vpack.c.b16 %v1068, %v1067
      %v1076 = vpack.c.b16 %v1070, %v1069
      %v1077 = vpack.c.b16 %v1072, %v1071
      %v1078 = vpack.c.b16 %v1074, %v1073
      %1083 = vmatprep.subr.bf16.mxu0 0
      %1084 = vmatpush1.bf16.msra.mxu0 %v1075
      %1085 = vmatprep.subr.bf16.mxu0 0
      %1086 = vmatpush1.bf16.msra.mxu0 %v1076
      %1087 = vmatprep.subr.bf16.mxu0 0
      %1088 = vmatpush1.bf16.msra.mxu0 %v1077
      %1089 = vmatprep.subr.bf16.mxu0 0
      %1090 = vmatpush1.bf16.msra.mxu0 %v1078
      %1091 = vmatprep.subr.bf16.mxu0 0
      %1092 = vmatpush1.bf16.msra.mxu0 0
      %1093 = vmatprep.subr.bf16.mxu0 0
      %1094 = vmatpush1.bf16.msra.mxu0 0
      %1095 = vmatprep.subr.bf16.mxu0 0
      %1096 = vmatpush1.bf16.msra.mxu0 0
      %1097 = vmatprep.subr.bf16.mxu0 0
      %1098 = vmatpush1.bf16.msra.mxu0 0
      %1099 = vmatprep.subr.bf16.mxu0 0
      %1100 = vmatpush1.bf16.msra.mxu0 0
      %1101 = vmatprep.subr.bf16.mxu0 0
      %1102 = vmatpush1.bf16.msra.mxu0 0
      %1103 = vmatprep.subr.bf16.mxu0 0
      %1104 = vmatpush1.bf16.msra.mxu0 0
      %1105 = vmatprep.subr.bf16.mxu0 0
      %1106 = vmatpush1.bf16.msra.mxu0 0
      %1107 = vmatprep.subr.bf16.mxu0 0
      %1108 = vmatpush1.bf16.msra.mxu0 0
      %1109 = vmatprep.subr.bf16.mxu0 0
      %1110 = vmatpush1.bf16.msra.mxu0 0
      %1111 = vmatprep.subr.bf16.mxu0 0
      %1112 = vmatpush1.bf16.msra.mxu0 0
      %1113 = vmatprep.subr.bf16.mxu0 0
      %1114 = vmatpush1.bf16.msra.mxu0 0
      %1115 = vmatprep.mubr.bf16.mxu0 0
      %1116 = vmatmul.mubr.bf16.gmra.mrb[0].mxu0 %v725
      %v1117 = vpop.f32.mrb[0].mxu0
      %v1118 = vadd.f32 %v1058, %v1117
      %v1119 = vpop.f32.mrb[0].mxu0
      %v1120 = vpop.f32.mrb[0].mxu0
      %v1121 = vpop.f32.mrb[0].mxu0
      %1122 = vdwg.mxu0
      %v1123 = vpack.c.bf16 %v1118, %v1118
      %v1125 = vsel %vm369, %v1044, 0
      %v1128 = vsel %vm373, %v1123, 0
      %1130 = vmatprep.subr.bf16.mxu0 0
      %1131 = vmatpush1.bf16.msra.mxu0 %v1128
      %1132 = vmatprep.subr.bf16.mxu0 0
      %1133 = vmatpush1.bf16.msra.mxu0 0
      %1134 = vmatprep.subr.bf16.mxu0 0
      %1135 = vmatpush1.bf16.msra.mxu0 0
      %1136 = vmatprep.subr.bf16.mxu0 0
      %1137 = vmatpush1.bf16.msra.mxu0 0
      %1138 = vmatprep.subr.bf16.mxu0 0
      %1139 = vmatpush1.bf16.msra.mxu0 0
      %1140 = vmatprep.subr.bf16.mxu0 0
      %1141 = vmatpush1.bf16.msra.mxu0 0
      %1142 = vmatprep.subr.bf16.mxu0 0
      %1143 = vmatpush1.bf16.msra.mxu0 0
      %1144 = vmatprep.subr.bf16.mxu0 0
      %1145 = vmatpush1.bf16.msra.mxu0 0
      %1146 = vmatprep.subr.bf16.mxu0 0
      %1147 = vmatpush1.bf16.msra.mxu0 0
      %1148 = vmatprep.subr.bf16.mxu0 0
      %1149 = vmatpush1.bf16.msra.mxu0 0
      %1150 = vmatprep.subr.bf16.mxu0 0
      %1151 = vmatpush1.bf16.msra.mxu0 0
      %1152 = vmatprep.subr.bf16.mxu0 0
      %1153 = vmatpush1.bf16.msra.mxu0 0
      %1154 = vmatprep.subr.bf16.mxu0 0
      %1155 = vmatpush1.bf16.msra.mxu0 0
      %1156 = vmatprep.subr.bf16.mxu0 0
      %1157 = vmatpush1.bf16.msra.mxu0 0
      %1158 = vmatprep.subr.bf16.mxu0 0
      %1159 = vmatpush1.bf16.msra.mxu0 0
      %1160 = vmatprep.subr.bf16.mxu0 0
      %1161 = vmatpush1.bf16.msra.mxu0 0
      %1162 = vmatprep.mubr.bf16.mxu0 0
      %1163 = vmatmul.mubr.bf16.gmra.mrb[0].mxu0 %v1125
      %v1164 = vpop.f32.mrb[0].mxu0
      %v1165 = vadd.f32 0.0, %v1164
      %v1166 = vpop.f32.mrb[0].mxu0
      %v1167 = vpop.f32.mrb[0].mxu0
      %v1168 = vpop.f32.mrb[0].mxu0
      %1169 = vdwg.mxu0
      %v1171 = vsel %vm369, %v828, 0
      %v1174 = vsel %vm373, %v907, 0
      %1176 = vmatprep.subr.bf16.mxu0 0
      %1177 = vmatpush1.bf16.msra.mxu0 %v1174
      %1178 = vmatprep.subr.bf16.mxu0 0
      %1179 = vmatpush1.bf16.msra.mxu0 0
      %1180 = vmatprep.subr.bf16.mxu0 0
      %1181 = vmatpush1.bf16.msra.mxu0 0
      %1182 = vmatprep.subr.bf16.mxu0 0
      %1183 = vmatpush1.bf16.msra.mxu0 0
      %1184 = vmatprep.subr.bf16.mxu0 0
      %1185 = vmatpush1.bf16.msra.mxu0 0
      %1186 = vmatprep.subr.bf16.mxu0 0
      %1187 = vmatpush1.bf16.msra.mxu0 0
      %1188 = vmatprep.subr.bf16.mxu0 0
      %1189 = vmatpush1.bf16.msra.mxu0 0
      %1190 = vmatprep.subr.bf16.mxu0 0
      %1191 = vmatpush1.bf16.msra.mxu0 0
      %1192 = vmatprep.subr.bf16.mxu0 0
      %1193 = vmatpush1.bf16.msra.mxu0 0
      %1194 = vmatprep.subr.bf16.mxu0 0
      %1195 = vmatpush1.bf16.msra.mxu0 0
      %1196 = vmatprep.subr.bf16.mxu0 0
      %1197 = vmatpush1.bf16.msra.mxu0 0
      %1198 = vmatprep.subr.bf16.mxu0 0
      %1199 = vmatpush1.bf16.msra.mxu0 0
      %1200 = vmatprep.subr.bf16.mxu0 0
      %1201 = vmatpush1.bf16.msra.mxu0 0
      %1202 = vmatprep.subr.bf16.mxu0 0
      %1203 = vmatpush1.bf16.msra.mxu0 0
      %1204 = vmatprep.subr.bf16.mxu0 0
      %1205 = vmatpush1.bf16.msra.mxu0 0
      %1206 = vmatprep.subr.bf16.mxu0 0
      %1207 = vmatpush1.bf16.msra.mxu0 0
      %1208 = vmatprep.mubr.bf16.mxu0 0
      %1209 = vmatmul.mubr.bf16.gmra.mrb[0].mxu0 %v1171
      %v1210 = vpop.f32.mrb[0].mxu0
      %v1211 = vadd.f32 %v1165, %v1210
      %v1212 = vpop.f32.mrb[0].mxu0
      %v1213 = vpop.f32.mrb[0].mxu0
      %v1214 = vpop.f32.mrb[0].mxu0
      %1215 = vdwg.mxu0
      %s1216 = scalar_lea.vmem %s5, 128
      %v1217 = vld [vmem:[%s1216] sm:$0xf]
      %v1218 = vld [vmem:[%s1216 + $0x4] sm:$0xf]
      %v1219 = vld [vmem:[%s1216 + $0x8] sm:$0xf]
      %v1220 = vld [vmem:[%s1216 + $0xc] sm:$0xf]
      %v1221 = vld [vmem:[%s1216 + $0x10] sm:$0xf]
      %v1222 = vld [vmem:[%s1216 + $0x14] sm:$0xf]
      %v1223 = vld [vmem:[%s1216 + $0x18] sm:$0xf]
      %v1224 = vld [vmem:[%s1216 + $0x1c] sm:$0xf]
      %v1225 = vld [vmem:[%s8 + $0xa] sm:$0x1]
      %v1226 = vlaneseq
      %v1227 = vshrl.u32 %v1226, 7
      %v1228 = vsub.s32 0, %v1227
      %v1229 = vrot.slane %v1225, %v1228
      %v1238 = vunpack.c.l.b16 %v1217
      %v1239 = vunpack.c.l.b16 %v1218
      %v1240 = vunpack.c.l.b16 %v1219
      %v1241 = vunpack.c.l.b16 %v1220
      %v1242 = vunpack.c.l.b16 %v1221
      %v1243 = vunpack.c.l.b16 %v1222
      %v1244 = vunpack.c.l.b16 %v1223
      %v1245 = vunpack.c.l.b16 %v1224
      %v1246 = vpack.c.b16 %v1239, %v1238
      %v1247 = vpack.c.b16 %v1241, %v1240
      %v1248 = vpack.c.b16 %v1243, %v1242
      %v1249 = vpack.c.b16 %v1245, %v1244
      %1254 = vmatprep.subr.bf16.mxu0 0
      %1255 = vmatpush1.bf16.msra.mxu0 %v1246
      %1256 = vmatprep.subr.bf16.mxu0 0
      %1257 = vmatpush1.bf16.msra.mxu0 %v1247
      %1258 = vmatprep.subr.bf16.mxu0 0
      %1259 = vmatpush1.bf16.msra.mxu0 %v1248
      %1260 = vmatprep.subr.bf16.mxu0 0
      %1261 = vmatpush1.bf16.msra.mxu0 %v1249
      %1262 = vmatprep.subr.bf16.mxu0 0
      %1263 = vmatpush1.bf16.msra.mxu0 0
      %1264 = vmatprep.subr.bf16.mxu0 0
      %1265 = vmatpush1.bf16.msra.mxu0 0
      %1266 = vmatprep.subr.bf16.mxu0 0
      %1267 = vmatpush1.bf16.msra.mxu0 0
      %1268 = vmatprep.subr.bf16.mxu0 0
      %1269 = vmatpush1.bf16.msra.mxu0 0
      %1270 = vmatprep.subr.bf16.mxu0 0
      %1271 = vmatpush1.bf16.msra.mxu0 0
      %1272 = vmatprep.subr.bf16.mxu0 0
      %1273 = vmatpush1.bf16.msra.mxu0 0
      %1274 = vmatprep.subr.bf16.mxu0 0
      %1275 = vmatpush1.bf16.msra.mxu0 0
      %1276 = vmatprep.subr.bf16.mxu0 0
      %1277 = vmatpush1.bf16.msra.mxu0 0
      %1278 = vmatprep.subr.bf16.mxu0 0
      %1279 = vmatpush1.bf16.msra.mxu0 0
      %1280 = vmatprep.subr.bf16.mxu0 0
      %1281 = vmatpush1.bf16.msra.mxu0 0
      %1282 = vmatprep.subr.bf16.mxu0 0
      %1283 = vmatpush1.bf16.msra.mxu0 0
      %1284 = vmatprep.subr.bf16.mxu0 0
      %1285 = vmatpush1.bf16.msra.mxu0 0
      %1286 = vmatprep.mubr.bf16.mxu0 0
      %1287 = vmatmul.mubr.bf16.gmra.mrb[0].mxu0 %v725
      %v1288 = vpop.f32.mrb[0].mxu0
      %v1289 = vadd.f32 %v1229, %v1288
      %v1290 = vpop.f32.mrb[0].mxu0
      %v1291 = vpop.f32.mrb[0].mxu0
      %v1292 = vpop.f32.mrb[0].mxu0
      %1293 = vdwg.mxu0
      %v1294 = vpack.c.bf16 %v1289, %v1289
      %v1296 = vsel %vm576, %v1294, 0
      %1298 = vmatprep.subr.bf16.mxu0 0
      %1299 = vmatpush1.bf16.xpose.msra.mxu0 %v1296
      %1300 = vmatprep.subr.bf16.mxu0 0
      %1301 = vmatpush1.bf16.xpose.msra.mxu0 0
      %1302 = vmatprep.subr.bf16.mxu0 0
      %1303 = vmatpush1.bf16.xpose.msra.mxu0 0
      %1304 = vmatprep.subr.bf16.mxu0 0
      %1305 = vmatpush1.bf16.xpose.msra.mxu0 0
      %1306 = vmatprep.subr.bf16.mxu0 0
      %1307 = vmatpush1.bf16.xpose.msra.mxu0 0
      %1308 = vmatprep.subr.bf16.mxu0 0
      %1309 = vmatpush1.bf16.xpose.msra.mxu0 0
      %1310 = vmatprep.subr.bf16.mxu0 0
      %1311 = vmatpush1.bf16.xpose.msra.mxu0 0
      %1312 = vmatprep.subr.bf16.mxu0 0
      %1313 = vmatpush1.bf16.xpose.msra.mxu0 0
      %1314 = vmatprep.subr.bf16.mxu0 0
      %1315 = vmatpush1.bf16.xpose.msra.mxu0 0
      %1316 = vmatprep.subr.bf16.mxu0 0
      %1317 = vmatpush1.bf16.xpose.msra.mxu0 0
      %1318 = vmatprep.subr.bf16.mxu0 0
      %1319 = vmatpush1.bf16.xpose.msra.mxu0 0
      %1320 = vmatprep.subr.bf16.mxu0 0
      %1321 = vmatpush1.bf16.xpose.msra.mxu0 0
      %1322 = vmatprep.subr.bf16.mxu0 0
      %1323 = vmatpush1.bf16.xpose.msra.mxu0 0
      %1324 = vmatprep.subr.bf16.mxu0 0
      %1325 = vmatpush1.bf16.xpose.msra.mxu0 0
      %1326 = vmatprep.subr.bf16.mxu0 0
      %1327 = vmatpush1.bf16.xpose.msra.mxu0 0
      %1328 = vmatprep.subr.bf16.mxu0 0
      %1329 = vmatpush1.bf16.xpose.msra.mxu0 0
      %1330 = vmatprep.mubr.bf16.mxu0 0
      %1331 = vmatmul.mubr.bf16.gmra.mrb[0].mxu0 %v769
      %v1332 = vpop.f32.mrb[0].mxu0
      %v1333 = vadd.f32 0.0, %v1332
      %v1334 = vpop.f32.mrb[0].mxu0
      %v1335 = vpop.f32.mrb[0].mxu0
      %v1336 = vpop.f32.mrb[0].mxu0
      %1337 = vdwg.mxu0
      %v1338 = vsel %vm369, %v1333, -inf
      %1339 = vmax.xlane.f32.xlu0 %v1338
      %v1340 = vpop.xlane.xlu0 %1339
      %v1341 = vsub.f32 %v1333, %v1340
      %v1342 = vmul.f32 %v1341, 1.442695
      %v1343 = vpow.pop %v1342
      %v1344 = vsel %vm369, %v1343, 0.0
      %1345 = vadd.xlane.f32.xlu0 %v1344
      %v1346 = vpop.xlane.xlu0 %1345
      %v1347 = vrcp.pop %v1346
      %v1348 = vmul.f32 %v1346, %v1347
      %v1349 = vsub.f32 2.0, %v1348
      %v1350 = vmul.f32 %v1347, %v1349
      %v1351 = vmul.f32 %v1343, %v1350
      %v1352 = vpack.c.bf16 %v1351, %v1351
      %s1353 = scalar_lea.vmem %s5, 160
      %v1354 = vld [vmem:[%s1353] sm:$0xf]
      %v1355 = vld [vmem:[%s1353 + $0x4] sm:$0xf]
      %v1356 = vld [vmem:[%s1353 + $0x8] sm:$0xf]
      %v1357 = vld [vmem:[%s1353 + $0xc] sm:$0xf]
      %v1358 = vld [vmem:[%s1353 + $0x10] sm:$0xf]
      %v1359 = vld [vmem:[%s1353 + $0x14] sm:$0xf]
      %v1360 = vld [vmem:[%s1353 + $0x18] sm:$0xf]
      %v1361 = vld [vmem:[%s1353 + $0x1c] sm:$0xf]
      %v1362 = vld [vmem:[%s8 + $0x12] sm:$0x1]
      %v1363 = vlaneseq
      %v1364 = vshrl.u32 %v1363, 7
      %v1365 = vsub.s32 0, %v1364
      %v1366 = vrot.slane %v1362, %v1365
      %v1375 = vunpack.c.l.b16 %v1354
      %v1376 = vunpack.c.l.b16 %v1355
      %v1377 = vunpack.c.l.b16 %v1356
      %v1378 = vunpack.c.l.b16 %v1357
      %v1379 = vunpack.c.l.b16 %v1358
      %v1380 = vunpack.c.l.b16 %v1359
      %v1381 = vunpack.c.l.b16 %v1360
      %v1382 = vunpack.c.l.b16 %v1361
      %v1383 = vpack.c.b16 %v1376, %v1375
      %v1384 = vpack.c.b16 %v1378, %v1377
      %v1385 = vpack.c.b16 %v1380, %v1379
      %v1386 = vpack.c.b16 %v1382, %v1381
      %1391 = vmatprep.subr.bf16.mxu0 0
      %1392 = vmatpush1.bf16.msra.mxu0 %v1383
      %1393 = vmatprep.subr.bf16.mxu0 0
      %1394 = vmatpush1.bf16.msra.mxu0 %v1384
      %1395 = vmatprep.subr.bf16.mxu0 0
      %1396 = vmatpush1.bf16.msra.mxu0 %v1385
      %1397 = vmatprep.subr.bf16.mxu0 0
      %1398 = vmatpush1.bf16.msra.mxu0 %v1386
      %1399 = vmatprep.subr.bf16.mxu0 0
      %1400 = vmatpush1.bf16.msra.mxu0 0
      %1401 = vmatprep.subr.bf16.mxu0 0
      %1402 = vmatpush1.bf16.msra.mxu0 0
      %1403 = vmatprep.subr.bf16.mxu0 0
      %1404 = vmatpush1.bf16.msra.mxu0 0
      %1405 = vmatprep.subr.bf16.mxu0 0
      %1406 = vmatpush1.bf16.msra.mxu0 0
      %1407 = vmatprep.subr.bf16.mxu0 0
      %1408 = vmatpush1.bf16.msra.mxu0 0
      %1409 = vmatprep.subr.bf16.mxu0 0
      %1410 = vmatpush1.bf16.msra.mxu0 0
      %1411 = vmatprep.subr.bf16.mxu0 0
      %1412 = vmatpush1.bf16.msra.mxu0 0
      %1413 = vmatprep.subr.bf16.mxu0 0
      %1414 = vmatpush1.bf16.msra.mxu0 0
      %1415 = vmatprep.subr.bf16.mxu0 0
      %1416 = vmatpush1.bf16.msra.mxu0 0
      %1417 = vmatprep.subr.bf16.mxu0 0
      %1418 = vmatpush1.bf16.msra.mxu0 0
      %1419 = vmatprep.subr.bf16.mxu0 0
      %1420 = vmatpush1.bf16.msra.mxu0 0
      %1421 = vmatprep.subr.bf16.mxu0 0
      %1422 = vmatpush1.bf16.msra.mxu0 0
      %1423 = vmatprep.mubr.bf16.mxu0 0
      %1424 = vmatmul.mubr.bf16.gmra.mrb[0].mxu0 %v725
      %v1425 = vpop.f32.mrb[0].mxu0
      %v1426 = vadd.f32 %v1366, %v1425
      %v1427 = vpop.f32.mrb[0].mxu0
      %v1428 = vpop.f32.mrb[0].mxu0
      %v1429 = vpop.f32.mrb[0].mxu0
      %1430 = vdwg.mxu0
      %v1431 = vpack.c.bf16 %v1426, %v1426
      %v1433 = vsel %vm369, %v1352, 0
      %v1436 = vsel %vm373, %v1431, 0
      %1438 = vmatprep.subr.bf16.mxu0 0
      %1439 = vmatpush1.bf16.msra.mxu0 %v1436
      %1440 = vmatprep.subr.bf16.mxu0 0
      %1441 = vmatpush1.bf16.msra.mxu0 0
      %1442 = vmatprep.subr.bf16.mxu0 0
      %1443 = vmatpush1.bf16.msra.mxu0 0
      %1444 = vmatprep.subr.bf16.mxu0 0
      %1445 = vmatpush1.bf16.msra.mxu0 0
      %1446 = vmatprep.subr.bf16.mxu0 0
      %1447 = vmatpush1.bf16.msra.mxu0 0
      %1448 = vmatprep.subr.bf16.mxu0 0
      %1449 = vmatpush1.bf16.msra.mxu0 0
      %1450 = vmatprep.subr.bf16.mxu0 0
      %1451 = vmatpush1.bf16.msra.mxu0 0
      %1452 = vmatprep.subr.bf16.mxu0 0
      %1453 = vmatpush1.bf16.msra.mxu0 0
      %1454 = vmatprep.subr.bf16.mxu0 0
      %1455 = vmatpush1.bf16.msra.mxu0 0
      %1456 = vmatprep.subr.bf16.mxu0 0
      %1457 = vmatpush1.bf16.msra.mxu0 0
      %1458 = vmatprep.subr.bf16.mxu0 0
      %1459 = vmatpush1.bf16.msra.mxu0 0
      %1460 = vmatprep.subr.bf16.mxu0 0
      %1461 = vmatpush1.bf16.msra.mxu0 0
      %1462 = vmatprep.subr.bf16.mxu0 0
      %1463 = vmatpush1.bf16.msra.mxu0 0
      %1464 = vmatprep.subr.bf16.mxu0 0
      %1465 = vmatpush1.bf16.msra.mxu0 0
      %1466 = vmatprep.subr.bf16.mxu0 0
      %1467 = vmatpush1.bf16.msra.mxu0 0
      %1468 = vmatprep.subr.bf16.mxu0 0
      %1469 = vmatpush1.bf16.msra.mxu0 0
      %1470 = vmatprep.mubr.bf16.mxu0 0
      %1471 = vmatmul.mubr.bf16.gmra.mrb[0].mxu0 %v1433
      %v1472 = vpop.f32.mrb[0].mxu0
      %v1473 = vadd.f32 0.0, %v1472
      %v1474 = vpop.f32.mrb[0].mxu0
      %v1475 = vpop.f32.mrb[0].mxu0
      %v1476 = vpop.f32.mrb[0].mxu0
      %1477 = vdwg.mxu0
      %v1478 = vadd.f32 %v1211, %v1473
      %s1479 = scalar_lea.vmem %s5, 192
      %v1480 = vld [vmem:[%s1479] sm:$0xf]
      %v1481 = vld [vmem:[%s1479 + $0x4] sm:$0xf]
      %v1482 = vld [vmem:[%s1479 + $0x8] sm:$0xf]
      %v1483 = vld [vmem:[%s1479 + $0xc] sm:$0xf]
      %v1484 = vld [vmem:[%s1479 + $0x10] sm:$0xf]
      %v1485 = vld [vmem:[%s1479 + $0x14] sm:$0xf]
      %v1486 = vld [vmem:[%s1479 + $0x18] sm:$0xf]
      %v1487 = vld [vmem:[%s1479 + $0x1c] sm:$0xf]
      %v1488 = vld [vmem:[%s8 + $0xb] sm:$0x1]
      %v1489 = vlaneseq
      %v1490 = vshrl.u32 %v1489, 7
      %v1491 = vsub.s32 0, %v1490
      %v1492 = vrot.slane %v1488, %v1491
      %v1501 = vunpack.c.l.b16 %v1480
      %v1502 = vunpack.c.l.b16 %v1481
      %v1503 = vunpack.c.l.b16 %v1482
      %v1504 = vunpack.c.l.b16 %v1483
      %v1505 = vunpack.c.l.b16 %v1484
      %v1506 = vunpack.c.l.b16 %v1485
      %v1507 = vunpack.c.l.b16 %v1486
      %v1508 = vunpack.c.l.b16 %v1487
      %v1509 = vpack.c.b16 %v1502, %v1501
      %v1510 = vpack.c.b16 %v1504, %v1503
      %v1511 = vpack.c.b16 %v1506, %v1505
      %v1512 = vpack.c.b16 %v1508, %v1507
      %1517 = vmatprep.subr.bf16.mxu0 0
      %1518 = vmatpush1.bf16.msra.mxu0 %v1509
      %1519 = vmatprep.subr.bf16.mxu0 0
      %1520 = vmatpush1.bf16.msra.mxu0 %v1510
      %1521 = vmatprep.subr.bf16.mxu0 0
      %1522 = vmatpush1.bf16.msra.mxu0 %v1511
      %1523 = vmatprep.subr.bf16.mxu0 0
      %1524 = vmatpush1.bf16.msra.mxu0 %v1512
      %1525 = vmatprep.subr.bf16.mxu0 0
      %1526 = vmatpush1.bf16.msra.mxu0 0
      %1527 = vmatprep.subr.bf16.mxu0 0
      %1528 = vmatpush1.bf16.msra.mxu0 0
      %1529 = vmatprep.subr.bf16.mxu0 0
      %1530 = vmatpush1.bf16.msra.mxu0 0
      %1531 = vmatprep.subr.bf16.mxu0 0
      %1532 = vmatpush1.bf16.msra.mxu0 0
      %1533 = vmatprep.subr.bf16.mxu0 0
      %1534 = vmatpush1.bf16.msra.mxu0 0
      %1535 = vmatprep.subr.bf16.mxu0 0
      %1536 = vmatpush1.bf16.msra.mxu0 0
      %1537 = vmatprep.subr.bf16.mxu0 0
      %1538 = vmatpush1.bf16.msra.mxu0 0
      %1539 = vmatprep.subr.bf16.mxu0 0
      %1540 = vmatpush1.bf16.msra.mxu0 0
      %1541 = vmatprep.subr.bf16.mxu0 0
      %1542 = vmatpush1.bf16.msra.mxu0 0
      %1543 = vmatprep.subr.bf16.mxu0 0
      %1544 = vmatpush1.bf16.msra.mxu0 0
      %1545 = vmatprep.subr.bf16.mxu0 0
      %1546 = vmatpush1.bf16.msra.mxu0 0
      %1547 = vmatprep.subr.bf16.mxu0 0
      %1548 = vmatpush1.bf16.msra.mxu0 0
      %1549 = vmatprep.mubr.bf16.mxu0 0
      %1550 = vmatmul.mubr.bf16.gmra.mrb[0].mxu0 %v725
      %v1551 = vpop.f32.mrb[0].mxu0
      %v1552 = vadd.f32 %v1492, %v1551
      %v1553 = vpop.f32.mrb[0].mxu0
      %v1554 = vpop.f32.mrb[0].mxu0
      %v1555 = vpop.f32.mrb[0].mxu0
      %1556 = vdwg.mxu0
      %v1557 = vpack.c.bf16 %v1552, %v1552
      %v1559 = vsel %vm576, %v1557, 0
      %1561 = vmatprep.subr.bf16.mxu0 0
      %1562 = vmatpush1.bf16.xpose.msra.mxu0 %v1559
      %1563 = vmatprep.subr.bf16.mxu0 0
      %1564 = vmatpush1.bf16.xpose.msra.mxu0 0
      %1565 = vmatprep.subr.bf16.mxu0 0
      %1566 = vmatpush1.bf16.xpose.msra.mxu0 0
      %1567 = vmatprep.subr.bf16.mxu0 0
      %1568 = vmatpush1.bf16.xpose.msra.mxu0 0
      %1569 = vmatprep.subr.bf16.mxu0 0
      %1570 = vmatpush1.bf16.xpose.msra.mxu0 0
      %1571 = vmatprep.subr.bf16.mxu0 0
      %1572 = vmatpush1.bf16.xpose.msra.mxu0 0
      %1573 = vmatprep.subr.bf16.mxu0 0
      %1574 = vmatpush1.bf16.xpose.msra.mxu0 0
      %1575 = vmatprep.subr.bf16.mxu0 0
      %1576 = vmatpush1.bf16.xpose.msra.mxu0 0
      %1577 = vmatprep.subr.bf16.mxu0 0
      %1578 = vmatpush1.bf16.xpose.msra.mxu0 0
      %1579 = vmatprep.subr.bf16.mxu0 0
      %1580 = vmatpush1.bf16.xpose.msra.mxu0 0
      %1581 = vmatprep.subr.bf16.mxu0 0
      %1582 = vmatpush1.bf16.xpose.msra.mxu0 0
      %1583 = vmatprep.subr.bf16.mxu0 0
      %1584 = vmatpush1.bf16.xpose.msra.mxu0 0
      %1585 = vmatprep.subr.bf16.mxu0 0
      %1586 = vmatpush1.bf16.xpose.msra.mxu0 0
      %1587 = vmatprep.subr.bf16.mxu0 0
      %1588 = vmatpush1.bf16.xpose.msra.mxu0 0
      %1589 = vmatprep.subr.bf16.mxu0 0
      %1590 = vmatpush1.bf16.xpose.msra.mxu0 0
      %1591 = vmatprep.subr.bf16.mxu0 0
      %1592 = vmatpush1.bf16.xpose.msra.mxu0 0
      %1593 = vmatprep.mubr.bf16.mxu0 0
      %1594 = vmatmul.mubr.bf16.gmra.mrb[0].mxu0 %v769
      %v1595 = vpop.f32.mrb[0].mxu0
      %v1596 = vadd.f32 0.0, %v1595
      %v1597 = vpop.f32.mrb[0].mxu0
      %v1598 = vpop.f32.mrb[0].mxu0
      %v1599 = vpop.f32.mrb[0].mxu0
      %1600 = vdwg.mxu0
      %v1601 = vsel %vm369, %v1596, -inf
      %1602 = vmax.xlane.f32.xlu0 %v1601
      %v1603 = vpop.xlane.xlu0 %1602
      %v1604 = vsub.f32 %v1596, %v1603
      %v1605 = vmul.f32 %v1604, 1.442695
      %v1606 = vpow.pop %v1605
      %v1607 = vsel %vm369, %v1606, 0.0
      %1608 = vadd.xlane.f32.xlu0 %v1607
      %v1609 = vpop.xlane.xlu0 %1608
      %v1610 = vrcp.pop %v1609
      %v1611 = vmul.f32 %v1609, %v1610
      %v1612 = vsub.f32 2.0, %v1611
      %v1613 = vmul.f32 %v1610, %v1612
      %v1614 = vmul.f32 %v1606, %v1613
      %v1615 = vpack.c.bf16 %v1614, %v1614
      %s1616 = scalar_lea.vmem %s5, 224
      %v1617 = vld [vmem:[%s1616] sm:$0xf]
      %v1618 = vld [vmem:[%s1616 + $0x4] sm:$0xf]
      %v1619 = vld [vmem:[%s1616 + $0x8] sm:$0xf]
      %v1620 = vld [vmem:[%s1616 + $0xc] sm:$0xf]
      %v1621 = vld [vmem:[%s1616 + $0x10] sm:$0xf]
      %v1622 = vld [vmem:[%s1616 + $0x14] sm:$0xf]
      %v1623 = vld [vmem:[%s1616 + $0x18] sm:$0xf]
      %v1624 = vld [vmem:[%s1616 + $0x1c] sm:$0xf]
      %v1625 = vld [vmem:[%s8 + $0x13] sm:$0x1]
      %v1626 = vlaneseq
      %v1627 = vshrl.u32 %v1626, 7
      %v1628 = vsub.s32 0, %v1627
      %v1629 = vrot.slane %v1625, %v1628
      %v1638 = vunpack.c.l.b16 %v1617
      %v1639 = vunpack.c.l.b16 %v1618
      %v1640 = vunpack.c.l.b16 %v1619
      %v1641 = vunpack.c.l.b16 %v1620
      %v1642 = vunpack.c.l.b16 %v1621
      %v1643 = vunpack.c.l.b16 %v1622
      %v1644 = vunpack.c.l.b16 %v1623
      %v1645 = vunpack.c.l.b16 %v1624
      %v1646 = vpack.c.b16 %v1639, %v1638
      %v1647 = vpack.c.b16 %v1641, %v1640
      %v1648 = vpack.c.b16 %v1643, %v1642
      %v1649 = vpack.c.b16 %v1645, %v1644
      %1654 = vmatprep.subr.bf16.mxu0 0
      %1655 = vmatpush1.bf16.msra.mxu0 %v1646
      %1656 = vmatprep.subr.bf16.mxu0 0
      %1657 = vmatpush1.bf16.msra.mxu0 %v1647
      %1658 = vmatprep.subr.bf16.mxu0 0
      %1659 = vmatpush1.bf16.msra.mxu0 %v1648
      %1660 = vmatprep.subr.bf16.mxu0 0
      %1661 = vmatpush1.bf16.msra.mxu0 %v1649
      %1662 = vmatprep.subr.bf16.mxu0 0
      %1663 = vmatpush1.bf16.msra.mxu0 0
      %1664 = vmatprep.subr.bf16.mxu0 0
      %1665 = vmatpush1.bf16.msra.mxu0 0
      %1666 = vmatprep.subr.bf16.mxu0 0
      %1667 = vmatpush1.bf16.msra.mxu0 0
      %1668 = vmatprep.subr.bf16.mxu0 0
      %1669 = vmatpush1.bf16.msra.mxu0 0
      %1670 = vmatprep.subr.bf16.mxu0 0
      %1671 = vmatpush1.bf16.msra.mxu0 0
      %1672 = vmatprep.subr.bf16.mxu0 0
      %1673 = vmatpush1.bf16.msra.mxu0 0
      %1674 = vmatprep.subr.bf16.mxu0 0
      %1675 = vmatpush1.bf16.msra.mxu0 0
      %1676 = vmatprep.subr.bf16.mxu0 0
      %1677 = vmatpush1.bf16.msra.mxu0 0
      %1678 = vmatprep.subr.bf16.mxu0 0
      %1679 = vmatpush1.bf16.msra.mxu0 0
      %1680 = vmatprep.subr.bf16.mxu0 0
      %1681 = vmatpush1.bf16.msra.mxu0 0
      %1682 = vmatprep.subr.bf16.mxu0 0
      %1683 = vmatpush1.bf16.msra.mxu0 0
      %1684 = vmatprep.subr.bf16.mxu0 0
      %1685 = vmatpush1.bf16.msra.mxu0 0
      %1686 = vmatprep.mubr.bf16.mxu0 0
      %1687 = vmatmul.mubr.bf16.gmra.mrb[0].mxu0 %v725
      %v1688 = vpop.f32.mrb[0].mxu0
      %v1689 = vadd.f32 %v1629, %v1688
      %v1690 = vpop.f32.mrb[0].mxu0
      %v1691 = vpop.f32.mrb[0].mxu0
      %v1692 = vpop.f32.mrb[0].mxu0
      %1693 = vdwg.mxu0
      %v1694 = vpack.c.bf16 %v1689, %v1689
      %v1696 = vsel %vm369, %v1615, 0
      %v1699 = vsel %vm373, %v1694, 0
      %1701 = vmatprep.subr.bf16.mxu0 0
      %1702 = vmatpush1.bf16.msra.mxu0 %v1699
      %1703 = vmatprep.subr.bf16.mxu0 0
      %1704 = vmatpush1.bf16.msra.mxu0 0
      %1705 = vmatprep.subr.bf16.mxu0 0
      %1706 = vmatpush1.bf16.msra.mxu0 0
      %1707 = vmatprep.subr.bf16.mxu0 0
      %1708 = vmatpush1.bf16.msra.mxu0 0
      %1709 = vmatprep.subr.bf16.mxu0 0
      %1710 = vmatpush1.bf16.msra.mxu0 0
      %1711 = vmatprep.subr.bf16.mxu0 0
      %1712 = vmatpush1.bf16.msra.mxu0 0
      %1713 = vmatprep.subr.bf16.mxu0 0
      %1714 = vmatpush1.bf16.msra.mxu0 0
      %1715 = vmatprep.subr.bf16.mxu0 0
      %1716 = vmatpush1.bf16.msra.mxu0 0
      %1717 = vmatprep.subr.bf16.mxu0 0
      %1718 = vmatpush1.bf16.msra.mxu0 0
      %1719 = vmatprep.subr.bf16.mxu0 0
      %1720 = vmatpush1.bf16.msra.mxu0 0
      %1721 = vmatprep.subr.bf16.mxu0 0
      %1722 = vmatpush1.bf16.msra.mxu0 0
      %1723 = vmatprep.subr.bf16.mxu0 0
      %1724 = vmatpush1.bf16.msra.mxu0 0
      %1725 = vmatprep.subr.bf16.mxu0 0
      %1726 = vmatpush1.bf16.msra.mxu0 0
      %1727 = vmatprep.subr.bf16.mxu0 0
      %1728 = vmatpush1.bf16.msra.mxu0 0
      %1729 = vmatprep.subr.bf16.mxu0 0
      %1730 = vmatpush1.bf16.msra.mxu0 0
      %1731 = vmatprep.subr.bf16.mxu0 0
      %1732 = vmatpush1.bf16.msra.mxu0 0
      %1733 = vmatprep.mubr.bf16.mxu0 0
      %1734 = vmatmul.mubr.bf16.gmra.mrb[0].mxu0 %v1696
      %v1735 = vpop.f32.mrb[0].mxu0
      %v1736 = vadd.f32 0.0, %v1735
      %v1737 = vpop.f32.mrb[0].mxu0
      %v1738 = vpop.f32.mrb[0].mxu0
      %v1739 = vpop.f32.mrb[0].mxu0
      %1740 = vdwg.mxu0
      %v1741 = vadd.f32 %v1478, %v1736
      %v1742 = vadd.f32 %v615, %v1741
      %v1743 = vld [vmem:[%s8 + $0x4] sm:$0x1]
      %v1744 = vlaneseq
      %v1745 = vshrl.u32 %v1744, 7
      %v1746 = vsub.s32 0, %v1745
      %v1747 = vrot.slane %v1743, %v1746
      %v1748 = vadd.f32 %v1742, %v1747
      %v1749 = vpack.c.bf16 %v1748, %v1748
      %s1750 = scalar_lea.vmem %s4, 32
      %v1751 = vld [vmem:[%s1750] sm:$0xf]
      %v1752 = vld [vmem:[%s1750 + $0x4] sm:$0xf]
      %v1753 = vld [vmem:[%s1750 + $0x8] sm:$0xf]
      %v1754 = vld [vmem:[%s1750 + $0xc] sm:$0xf]
      %v1755 = vld [vmem:[%s8 + $0x3] sm:$0x1]
      %v1756 = vlaneseq
      %v1757 = vshrl.u32 %v1756, 7
      %v1758 = vsub.s32 0, %v1757
      %v1759 = vrot.slane %v1755, %v1758
      %v1764 = vunpack.c.l.b16 %v1751
      %v1765 = vunpack.c.l.b16 %v1752
      %v1766 = vunpack.c.l.b16 %v1753
      %v1767 = vunpack.c.l.b16 %v1754
      %v1768 = vpack.c.b16 %v1765, %v1764
      %v1769 = vpack.c.b16 %v1767, %v1766
      %v1773 = vsel %vm576, %v1749, 0
      %1775 = vmatprep.subr.bf16.mxu0 0
      %1776 = vmatpush1.bf16.msra.mxu0 %v1768
      %1777 = vmatprep.subr.bf16.mxu0 0
      %1778 = vmatpush1.bf16.msra.mxu0 %v1769
      %1779 = vmatprep.subr.bf16.mxu0 0
      %1780 = vmatpush1.bf16.msra.mxu0 0
      %1781 = vmatprep.subr.bf16.mxu0 0
      %1782 = vmatpush1.bf16.msra.mxu0 0
      %1783 = vmatprep.subr.bf16.mxu0 0
      %1784 = vmatpush1.bf16.msra.mxu0 0
      %1785 = vmatprep.subr.bf16.mxu0 0
      %1786 = vmatpush1.bf16.msra.mxu0 0
      %1787 = vmatprep.subr.bf16.mxu0 0
      %1788 = vmatpush1.bf16.msra.mxu0 0
      %1789 = vmatprep.subr.bf16.mxu0 0
      %1790 = vmatpush1.bf16.msra.mxu0 0
      %1791 = vmatprep.subr.bf16.mxu0 0
      %1792 = vmatpush1.bf16.msra.mxu0 0
      %1793 = vmatprep.subr.bf16.mxu0 0
      %1794 = vmatpush1.bf16.msra.mxu0 0
      %1795 = vmatprep.subr.bf16.mxu0 0
      %1796 = vmatpush1.bf16.msra.mxu0 0
      %1797 = vmatprep.subr.bf16.mxu0 0
      %1798 = vmatpush1.bf16.msra.mxu0 0
      %1799 = vmatprep.subr.bf16.mxu0 0
      %1800 = vmatpush1.bf16.msra.mxu0 0
      %1801 = vmatprep.subr.bf16.mxu0 0
      %1802 = vmatpush1.bf16.msra.mxu0 0
      %1803 = vmatprep.subr.bf16.mxu0 0
      %1804 = vmatpush1.bf16.msra.mxu0 0
      %1805 = vmatprep.subr.bf16.mxu0 0
      %1806 = vmatpush1.bf16.msra.mxu0 0
      %1807 = vmatprep.mubr.bf16.mxu0 0
      %1808 = vmatmul.mubr.bf16.gmra.mrb[0].mxu0 %v1773
      %v1809 = vpop.f32.mrb[0].mxu0
      %v1810 = vadd.f32 %v1759, %v1809
      %v1811 = vpop.f32.mrb[0].mxu0
      %v1812 = vpop.f32.mrb[0].mxu0
      %v1813 = vpop.f32.mrb[0].mxu0
      %1814 = vdwg.mxu0
      %v1815 = vpack.c.bf16 %v1810, %v1810
      %s1816 = scalar_lea.vmem %s5, 256
      %v1817 = vld [vmem:[%s1816] sm:$0xf]
      %v1818 = vld [vmem:[%s1816 + $0x4] sm:$0xf]
      %v1819 = vld [vmem:[%s1816 + $0x8] sm:$0xf]
      %v1820 = vld [vmem:[%s1816 + $0xc] sm:$0xf]
      %v1821 = vld [vmem:[%s1816 + $0x10] sm:$0xf]
      %v1822 = vld [vmem:[%s1816 + $0x14] sm:$0xf]
      %v1823 = vld [vmem:[%s1816 + $0x18] sm:$0xf]
      %v1824 = vld [vmem:[%s1816 + $0x1c] sm:$0xf]
      %v1825 = vld [vmem:[%s8 + $0xc] sm:$0x1]
      %v1826 = vlaneseq
      %v1827 = vshrl.u32 %v1826, 7
      %v1828 = vsub.s32 0, %v1827
      %v1829 = vrot.slane %v1825, %v1828
      %v1838 = vunpack.c.l.b16 %v1817
      %v1839 = vunpack.c.l.b16 %v1818
      %v1840 = vunpack.c.l.b16 %v1819
      %v1841 = vunpack.c.l.b16 %v1820
      %v1842 = vunpack.c.l.b16 %v1821
      %v1843 = vunpack.c.l.b16 %v1822
      %v1844 = vunpack.c.l.b16 %v1823
      %v1845 = vunpack.c.l.b16 %v1824
      %v1846 = vpack.c.b16 %v1839, %v1838
      %v1847 = vpack.c.b16 %v1841, %v1840
      %v1848 = vpack.c.b16 %v1843, %v1842
      %v1849 = vpack.c.b16 %v1845, %v1844
      %1854 = vmatprep.subr.bf16.mxu0 0
      %1855 = vmatpush1.bf16.msra.mxu0 %v1846
      %1856 = vmatprep.subr.bf16.mxu0 0
      %1857 = vmatpush1.bf16.msra.mxu0 %v1847
      %1858 = vmatprep.subr.bf16.mxu0 0
      %1859 = vmatpush1.bf16.msra.mxu0 %v1848
      %1860 = vmatprep.subr.bf16.mxu0 0
      %1861 = vmatpush1.bf16.msra.mxu0 %v1849
      %1862 = vmatprep.subr.bf16.mxu0 0
      %1863 = vmatpush1.bf16.msra.mxu0 0
      %1864 = vmatprep.subr.bf16.mxu0 0
      %1865 = vmatpush1.bf16.msra.mxu0 0
      %1866 = vmatprep.subr.bf16.mxu0 0
      %1867 = vmatpush1.bf16.msra.mxu0 0
      %1868 = vmatprep.subr.bf16.mxu0 0
      %1869 = vmatpush1.bf16.msra.mxu0 0
      %1870 = vmatprep.subr.bf16.mxu0 0
      %1871 = vmatpush1.bf16.msra.mxu0 0
      %1872 = vmatprep.subr.bf16.mxu0 0
      %1873 = vmatpush1.bf16.msra.mxu0 0
      %1874 = vmatprep.subr.bf16.mxu0 0
      %1875 = vmatpush1.bf16.msra.mxu0 0
      %1876 = vmatprep.subr.bf16.mxu0 0
      %1877 = vmatpush1.bf16.msra.mxu0 0
      %1878 = vmatprep.subr.bf16.mxu0 0
      %1879 = vmatpush1.bf16.msra.mxu0 0
      %1880 = vmatprep.subr.bf16.mxu0 0
      %1881 = vmatpush1.bf16.msra.mxu0 0
      %1882 = vmatprep.subr.bf16.mxu0 0
      %1883 = vmatpush1.bf16.msra.mxu0 0
      %1884 = vmatprep.subr.bf16.mxu0 0
      %1885 = vmatpush1.bf16.msra.mxu0 0
      %1886 = vmatprep.mubr.bf16.mxu0 0
      %1887 = vmatmul.mubr.bf16.gmra.mrb[0].mxu0 %v725
      %v1888 = vpop.f32.mrb[0].mxu0
      %v1889 = vadd.f32 %v1829, %v1888
      %v1890 = vpop.f32.mrb[0].mxu0
      %v1891 = vpop.f32.mrb[0].mxu0
      %v1892 = vpop.f32.mrb[0].mxu0
      %1893 = vdwg.mxu0
      %v1894 = vpack.c.bf16 %v1889, %v1889
      %v1896 = vsel %vm576, %v1815, 0
      %v1899 = vsel %vm576, %v1894, 0
      %1901 = vmatprep.subr.bf16.mxu0 0
      %1902 = vmatpush1.bf16.xpose.msra.mxu0 %v1899
      %1903 = vmatprep.subr.bf16.mxu0 0
      %1904 = vmatpush1.bf16.xpose.msra.mxu0 0
      %1905 = vmatprep.subr.bf16.mxu0 0
      %1906 = vmatpush1.bf16.xpose.msra.mxu0 0
      %1907 = vmatprep.subr.bf16.mxu0 0
      %1908 = vmatpush1.bf16.xpose.msra.mxu0 0
      %1909 = vmatprep.subr.bf16.mxu0 0
      %1910 = vmatpush1.bf16.xpose.msra.mxu0 0
      %1911 = vmatprep.subr.bf16.mxu0 0
      %1912 = vmatpush1.bf16.xpose.msra.mxu0 0
      %1913 = vmatprep.subr.bf16.mxu0 0
      %1914 = vmatpush1.bf16.xpose.msra.mxu0 0
      %1915 = vmatprep.subr.bf16.mxu0 0
      %1916 = vmatpush1.bf16.xpose.msra.mxu0 0
      %1917 = vmatprep.subr.bf16.mxu0 0
      %1918 = vmatpush1.bf16.xpose.msra.mxu0 0
      %1919 = vmatprep.subr.bf16.mxu0 0
      %1920 = vmatpush1.bf16.xpose.msra.mxu0 0
      %1921 = vmatprep.subr.bf16.mxu0 0
      %1922 = vmatpush1.bf16.xpose.msra.mxu0 0
      %1923 = vmatprep.subr.bf16.mxu0 0
      %1924 = vmatpush1.bf16.xpose.msra.mxu0 0
      %1925 = vmatprep.subr.bf16.mxu0 0
      %1926 = vmatpush1.bf16.xpose.msra.mxu0 0
      %1927 = vmatprep.subr.bf16.mxu0 0
      %1928 = vmatpush1.bf16.xpose.msra.mxu0 0
      %1929 = vmatprep.subr.bf16.mxu0 0
      %1930 = vmatpush1.bf16.xpose.msra.mxu0 0
      %1931 = vmatprep.subr.bf16.mxu0 0
      %1932 = vmatpush1.bf16.xpose.msra.mxu0 0
      %1933 = vmatprep.mubr.bf16.mxu0 0
      %1934 = vmatmul.mubr.bf16.gmra.mrb[0].mxu0 %v1896
      %v1935 = vpop.f32.mrb[0].mxu0
      %v1936 = vadd.f32 0.0, %v1935
      %v1937 = vpop.f32.mrb[0].mxu0
      %v1938 = vpop.f32.mrb[0].mxu0
      %v1939 = vpop.f32.mrb[0].mxu0
      %1940 = vdwg.mxu0
      %v1941 = vsel %vm369, %v1936, -inf
      %1942 = vmax.xlane.f32.xlu0 %v1941
      %v1943 = vpop.xlane.xlu0 %1942
      %v1944 = vsub.f32 %v1936, %v1943
      %v1945 = vmul.f32 %v1944, 1.442695
      %v1946 = vpow.pop %v1945
      %v1947 = vsel %vm369, %v1946, 0.0
      %1948 = vadd.xlane.f32.xlu0 %v1947
      %v1949 = vpop.xlane.xlu0 %1948
      %v1950 = vrcp.pop %v1949
      %v1951 = vmul.f32 %v1949, %v1950
      %v1952 = vsub.f32 2.0, %v1951
      %v1953 = vmul.f32 %v1950, %v1952
      %v1954 = vmul.f32 %v1946, %v1953
      %v1955 = vpack.c.bf16 %v1954, %v1954
      %s1956 = scalar_lea.vmem %s5, 288
      %v1957 = vld [vmem:[%s1956] sm:$0xf]
      %v1958 = vld [vmem:[%s1956 + $0x4] sm:$0xf]
      %v1959 = vld [vmem:[%s1956 + $0x8] sm:$0xf]
      %v1960 = vld [vmem:[%s1956 + $0xc] sm:$0xf]
      %v1961 = vld [vmem:[%s1956 + $0x10] sm:$0xf]
      %v1962 = vld [vmem:[%s1956 + $0x14] sm:$0xf]
      %v1963 = vld [vmem:[%s1956 + $0x18] sm:$0xf]
      %v1964 = vld [vmem:[%s1956 + $0x1c] sm:$0xf]
      %v1965 = vld [vmem:[%s8 + $0x14] sm:$0x1]
      %v1966 = vlaneseq
      %v1967 = vshrl.u32 %v1966, 7
      %v1968 = vsub.s32 0, %v1967
      %v1969 = vrot.slane %v1965, %v1968
      %v1978 = vunpack.c.l.b16 %v1957
      %v1979 = vunpack.c.l.b16 %v1958
      %v1980 = vunpack.c.l.b16 %v1959
      %v1981 = vunpack.c.l.b16 %v1960
      %v1982 = vunpack.c.l.b16 %v1961
      %v1983 = vunpack.c.l.b16 %v1962
      %v1984 = vunpack.c.l.b16 %v1963
      %v1985 = vunpack.c.l.b16 %v1964
      %v1986 = vpack.c.b16 %v1979, %v1978
      %v1987 = vpack.c.b16 %v1981, %v1980
      %v1988 = vpack.c.b16 %v1983, %v1982
      %v1989 = vpack.c.b16 %v1985, %v1984
      %1994 = vmatprep.subr.bf16.mxu0 0
      %1995 = vmatpush1.bf16.msra.mxu0 %v1986
      %1996 = vmatprep.subr.bf16.mxu0 0
      %1997 = vmatpush1.bf16.msra.mxu0 %v1987
      %1998 = vmatprep.subr.bf16.mxu0 0
      %1999 = vmatpush1.bf16.msra.mxu0 %v1988
      %2000 = vmatprep.subr.bf16.mxu0 0
      %2001 = vmatpush1.bf16.msra.mxu0 %v1989
      %2002 = vmatprep.subr.bf16.mxu0 0
      %2003 = vmatpush1.bf16.msra.mxu0 0
      %2004 = vmatprep.subr.bf16.mxu0 0
      %2005 = vmatpush1.bf16.msra.mxu0 0
      %2006 = vmatprep.subr.bf16.mxu0 0
      %2007 = vmatpush1.bf16.msra.mxu0 0
      %2008 = vmatprep.subr.bf16.mxu0 0
      %2009 = vmatpush1.bf16.msra.mxu0 0
      %2010 = vmatprep.subr.bf16.mxu0 0
      %2011 = vmatpush1.bf16.msra.mxu0 0
      %2012 = vmatprep.subr.bf16.mxu0 0
      %2013 = vmatpush1.bf16.msra.mxu0 0
      %2014 = vmatprep.subr.bf16.mxu0 0
      %2015 = vmatpush1.bf16.msra.mxu0 0
      %2016 = vmatprep.subr.bf16.mxu0 0
      %2017 = vmatpush1.bf16.msra.mxu0 0
      %2018 = vmatprep.subr.bf16.mxu0 0
      %2019 = vmatpush1.bf16.msra.mxu0 0
      %2020 = vmatprep.subr.bf16.mxu0 0
      %2021 = vmatpush1.bf16.msra.mxu0 0
      %2022 = vmatprep.subr.bf16.mxu0 0
      %2023 = vmatpush1.bf16.msra.mxu0 0
      %2024 = vmatprep.subr.bf16.mxu0 0
      %2025 = vmatpush1.bf16.msra.mxu0 0
      %2026 = vmatprep.mubr.bf16.mxu0 0
      %2027 = vmatmul.mubr.bf16.gmra.mrb[0].mxu0 %v725
      %v2028 = vpop.f32.mrb[0].mxu0
      %v2029 = vadd.f32 %v1969, %v2028
      %v2030 = vpop.f32.mrb[0].mxu0
      %v2031 = vpop.f32.mrb[0].mxu0
      %v2032 = vpop.f32.mrb[0].mxu0
      %2033 = vdwg.mxu0
      %v2034 = vpack.c.bf16 %v2029, %v2029
      %s2035 = scalar_lea.vmem %s5, 320
      %v2036 = vld [vmem:[%s2035] sm:$0xf]
      %v2037 = vld [vmem:[%s2035 + $0x4] sm:$0xf]
      %v2038 = vld [vmem:[%s2035 + $0x8] sm:$0xf]
      %v2039 = vld [vmem:[%s2035 + $0xc] sm:$0xf]
      %v2040 = vld [vmem:[%s2035 + $0x10] sm:$0xf]
      %v2041 = vld [vmem:[%s2035 + $0x14] sm:$0xf]
      %v2042 = vld [vmem:[%s2035 + $0x18] sm:$0xf]
      %v2043 = vld [vmem:[%s2035 + $0x1c] sm:$0xf]
      %v2044 = vld [vmem:[%s8 + $0xd] sm:$0x1]
      %v2045 = vlaneseq
      %v2046 = vshrl.u32 %v2045, 7
      %v2047 = vsub.s32 0, %v2046
      %v2048 = vrot.slane %v2044, %v2047
      %v2057 = vunpack.c.l.b16 %v2036
      %v2058 = vunpack.c.l.b16 %v2037
      %v2059 = vunpack.c.l.b16 %v2038
      %v2060 = vunpack.c.l.b16 %v2039
      %v2061 = vunpack.c.l.b16 %v2040
      %v2062 = vunpack.c.l.b16 %v2041
      %v2063 = vunpack.c.l.b16 %v2042
      %v2064 = vunpack.c.l.b16 %v2043
      %v2065 = vpack.c.b16 %v2058, %v2057
      %v2066 = vpack.c.b16 %v2060, %v2059
      %v2067 = vpack.c.b16 %v2062, %v2061
      %v2068 = vpack.c.b16 %v2064, %v2063
      %2073 = vmatprep.subr.bf16.mxu0 0
      %2074 = vmatpush1.bf16.msra.mxu0 %v2065
      %2075 = vmatprep.subr.bf16.mxu0 0
      %2076 = vmatpush1.bf16.msra.mxu0 %v2066
      %2077 = vmatprep.subr.bf16.mxu0 0
      %2078 = vmatpush1.bf16.msra.mxu0 %v2067
      %2079 = vmatprep.subr.bf16.mxu0 0
      %2080 = vmatpush1.bf16.msra.mxu0 %v2068
      %2081 = vmatprep.subr.bf16.mxu0 0
      %2082 = vmatpush1.bf16.msra.mxu0 0
      %2083 = vmatprep.subr.bf16.mxu0 0
      %2084 = vmatpush1.bf16.msra.mxu0 0
      %2085 = vmatprep.subr.bf16.mxu0 0
      %2086 = vmatpush1.bf16.msra.mxu0 0
      %2087 = vmatprep.subr.bf16.mxu0 0
      %2088 = vmatpush1.bf16.msra.mxu0 0
      %2089 = vmatprep.subr.bf16.mxu0 0
      %2090 = vmatpush1.bf16.msra.mxu0 0
      %2091 = vmatprep.subr.bf16.mxu0 0
      %2092 = vmatpush1.bf16.msra.mxu0 0
      %2093 = vmatprep.subr.bf16.mxu0 0
      %2094 = vmatpush1.bf16.msra.mxu0 0
      %2095 = vmatprep.subr.bf16.mxu0 0
      %2096 = vmatpush1.bf16.msra.mxu0 0
      %2097 = vmatprep.subr.bf16.mxu0 0
      %2098 = vmatpush1.bf16.msra.mxu0 0
      %2099 = vmatprep.subr.bf16.mxu0 0
      %2100 = vmatpush1.bf16.msra.mxu0 0
      %2101 = vmatprep.subr.bf16.mxu0 0
      %2102 = vmatpush1.bf16.msra.mxu0 0
      %2103 = vmatprep.subr.bf16.mxu0 0
      %2104 = vmatpush1.bf16.msra.mxu0 0
      %2105 = vmatprep.mubr.bf16.mxu0 0
      %2106 = vmatmul.mubr.bf16.gmra.mrb[0].mxu0 %v725
      %v2107 = vpop.f32.mrb[0].mxu0
      %v2108 = vadd.f32 %v2048, %v2107
      %v2109 = vpop.f32.mrb[0].mxu0
      %v2110 = vpop.f32.mrb[0].mxu0
      %v2111 = vpop.f32.mrb[0].mxu0
      %2112 = vdwg.mxu0
      %v2113 = vpack.c.bf16 %v2108, %v2108
      %v2115 = vsel %vm576, %v2113, 0
      %2117 = vmatprep.subr.bf16.mxu0 0
      %2118 = vmatpush1.bf16.xpose.msra.mxu0 %v2115
      %2119 = vmatprep.subr.bf16.mxu0 0
      %2120 = vmatpush1.bf16.xpose.msra.mxu0 0
      %2121 = vmatprep.subr.bf16.mxu0 0
      %2122 = vmatpush1.bf16.xpose.msra.mxu0 0
      %2123 = vmatprep.subr.bf16.mxu0 0
      %2124 = vmatpush1.bf16.xpose.msra.mxu0 0
      %2125 = vmatprep.subr.bf16.mxu0 0
      %2126 = vmatpush1.bf16.xpose.msra.mxu0 0
      %2127 = vmatprep.subr.bf16.mxu0 0
      %2128 = vmatpush1.bf16.xpose.msra.mxu0 0
      %2129 = vmatprep.subr.bf16.mxu0 0
      %2130 = vmatpush1.bf16.xpose.msra.mxu0 0
      %2131 = vmatprep.subr.bf16.mxu0 0
      %2132 = vmatpush1.bf16.xpose.msra.mxu0 0
      %2133 = vmatprep.subr.bf16.mxu0 0
      %2134 = vmatpush1.bf16.xpose.msra.mxu0 0
      %2135 = vmatprep.subr.bf16.mxu0 0
      %2136 = vmatpush1.bf16.xpose.msra.mxu0 0
      %2137 = vmatprep.subr.bf16.mxu0 0
      %2138 = vmatpush1.bf16.xpose.msra.mxu0 0
      %2139 = vmatprep.subr.bf16.mxu0 0
      %2140 = vmatpush1.bf16.xpose.msra.mxu0 0
      %2141 = vmatprep.subr.bf16.mxu0 0
      %2142 = vmatpush1.bf16.xpose.msra.mxu0 0
      %2143 = vmatprep.subr.bf16.mxu0 0
      %2144 = vmatpush1.bf16.xpose.msra.mxu0 0
      %2145 = vmatprep.subr.bf16.mxu0 0
      %2146 = vmatpush1.bf16.xpose.msra.mxu0 0
      %2147 = vmatprep.subr.bf16.mxu0 0
      %2148 = vmatpush1.bf16.xpose.msra.mxu0 0
      %2149 = vmatprep.mubr.bf16.mxu0 0
      %2150 = vmatmul.mubr.bf16.gmra.mrb[0].mxu0 %v1896
      %v2151 = vpop.f32.mrb[0].mxu0
      %v2152 = vadd.f32 0.0, %v2151
      %v2153 = vpop.f32.mrb[0].mxu0
      %v2154 = vpop.f32.mrb[0].mxu0
      %v2155 = vpop.f32.mrb[0].mxu0
      %2156 = vdwg.mxu0
      %v2157 = vsel %vm369, %v2152, -inf
      %2158 = vmax.xlane.f32.xlu0 %v2157
      %v2159 = vpop.xlane.xlu0 %2158
      %v2160 = vsub.f32 %v2152, %v2159
      %v2161 = vmul.f32 %v2160, 1.442695
      %v2162 = vpow.pop %v2161
      %v2163 = vsel %vm369, %v2162, 0.0
      %2164 = vadd.xlane.f32.xlu0 %v2163
      %v2165 = vpop.xlane.xlu0 %2164
      %v2166 = vrcp.pop %v2165
      %v2167 = vmul.f32 %v2165, %v2166
      %v2168 = vsub.f32 2.0, %v2167
      %v2169 = vmul.f32 %v2166, %v2168
      %v2170 = vmul.f32 %v2162, %v2169
      %v2171 = vpack.c.bf16 %v2170, %v2170
      %s2172 = scalar_lea.vmem %s5, 352
      %v2173 = vld [vmem:[%s2172] sm:$0xf]
      %v2174 = vld [vmem:[%s2172 + $0x4] sm:$0xf]
      %v2175 = vld [vmem:[%s2172 + $0x8] sm:$0xf]
      %v2176 = vld [vmem:[%s2172 + $0xc] sm:$0xf]
      %v2177 = vld [vmem:[%s2172 + $0x10] sm:$0xf]
      %v2178 = vld [vmem:[%s2172 + $0x14] sm:$0xf]
      %v2179 = vld [vmem:[%s2172 + $0x18] sm:$0xf]
      %v2180 = vld [vmem:[%s2172 + $0x1c] sm:$0xf]
      %v2181 = vld [vmem:[%s8 + $0x15] sm:$0x1]
      %v2182 = vlaneseq
      %v2183 = vshrl.u32 %v2182, 7
      %v2184 = vsub.s32 0, %v2183
      %v2185 = vrot.slane %v2181, %v2184
      %v2194 = vunpack.c.l.b16 %v2173
      %v2195 = vunpack.c.l.b16 %v2174
      %v2196 = vunpack.c.l.b16 %v2175
      %v2197 = vunpack.c.l.b16 %v2176
      %v2198 = vunpack.c.l.b16 %v2177
      %v2199 = vunpack.c.l.b16 %v2178
      %v2200 = vunpack.c.l.b16 %v2179
      %v2201 = vunpack.c.l.b16 %v2180
      %v2202 = vpack.c.b16 %v2195, %v2194
      %v2203 = vpack.c.b16 %v2197, %v2196
      %v2204 = vpack.c.b16 %v2199, %v2198
      %v2205 = vpack.c.b16 %v2201, %v2200
      %2210 = vmatprep.subr.bf16.mxu0 0
      %2211 = vmatpush1.bf16.msra.mxu0 %v2202
      %2212 = vmatprep.subr.bf16.mxu0 0
      %2213 = vmatpush1.bf16.msra.mxu0 %v2203
      %2214 = vmatprep.subr.bf16.mxu0 0
      %2215 = vmatpush1.bf16.msra.mxu0 %v2204
      %2216 = vmatprep.subr.bf16.mxu0 0
      %2217 = vmatpush1.bf16.msra.mxu0 %v2205
      %2218 = vmatprep.subr.bf16.mxu0 0
      %2219 = vmatpush1.bf16.msra.mxu0 0
      %2220 = vmatprep.subr.bf16.mxu0 0
      %2221 = vmatpush1.bf16.msra.mxu0 0
      %2222 = vmatprep.subr.bf16.mxu0 0
      %2223 = vmatpush1.bf16.msra.mxu0 0
      %2224 = vmatprep.subr.bf16.mxu0 0
      %2225 = vmatpush1.bf16.msra.mxu0 0
      %2226 = vmatprep.subr.bf16.mxu0 0
      %2227 = vmatpush1.bf16.msra.mxu0 0
      %2228 = vmatprep.subr.bf16.mxu0 0
      %2229 = vmatpush1.bf16.msra.mxu0 0
      %2230 = vmatprep.subr.bf16.mxu0 0
      %2231 = vmatpush1.bf16.msra.mxu0 0
      %2232 = vmatprep.subr.bf16.mxu0 0
      %2233 = vmatpush1.bf16.msra.mxu0 0
      %2234 = vmatprep.subr.bf16.mxu0 0
      %2235 = vmatpush1.bf16.msra.mxu0 0
      %2236 = vmatprep.subr.bf16.mxu0 0
      %2237 = vmatpush1.bf16.msra.mxu0 0
      %2238 = vmatprep.subr.bf16.mxu0 0
      %2239 = vmatpush1.bf16.msra.mxu0 0
      %2240 = vmatprep.subr.bf16.mxu0 0
      %2241 = vmatpush1.bf16.msra.mxu0 0
      %2242 = vmatprep.mubr.bf16.mxu0 0
      %2243 = vmatmul.mubr.bf16.gmra.mrb[0].mxu0 %v725
      %v2244 = vpop.f32.mrb[0].mxu0
      %v2245 = vadd.f32 %v2185, %v2244
      %v2246 = vpop.f32.mrb[0].mxu0
      %v2247 = vpop.f32.mrb[0].mxu0
      %v2248 = vpop.f32.mrb[0].mxu0
      %2249 = vdwg.mxu0
      %v2250 = vpack.c.bf16 %v2245, %v2245
      %v2252 = vsel %vm369, %v2171, 0
      %v2255 = vsel %vm373, %v2250, 0
      %2257 = vmatprep.subr.bf16.mxu0 0
      %2258 = vmatpush1.bf16.msra.mxu0 %v2255
      %2259 = vmatprep.subr.bf16.mxu0 0
      %2260 = vmatpush1.bf16.msra.mxu0 0
      %2261 = vmatprep.subr.bf16.mxu0 0
      %2262 = vmatpush1.bf16.msra.mxu0 0
      %2263 = vmatprep.subr.bf16.mxu0 0
      %2264 = vmatpush1.bf16.msra.mxu0 0
      %2265 = vmatprep.subr.bf16.mxu0 0
      %2266 = vmatpush1.bf16.msra.mxu0 0
      %2267 = vmatprep.subr.bf16.mxu0 0
      %2268 = vmatpush1.bf16.msra.mxu0 0
      %2269 = vmatprep.subr.bf16.mxu0 0
      %2270 = vmatpush1.bf16.msra.mxu0 0
      %2271 = vmatprep.subr.bf16.mxu0 0
      %2272 = vmatpush1.bf16.msra.mxu0 0
      %2273 = vmatprep.subr.bf16.mxu0 0
      %2274 = vmatpush1.bf16.msra.mxu0 0
      %2275 = vmatprep.subr.bf16.mxu0 0
      %2276 = vmatpush1.bf16.msra.mxu0 0
      %2277 = vmatprep.subr.bf16.mxu0 0
      %2278 = vmatpush1.bf16.msra.mxu0 0
      %2279 = vmatprep.subr.bf16.mxu0 0
      %2280 = vmatpush1.bf16.msra.mxu0 0
      %2281 = vmatprep.subr.bf16.mxu0 0
      %2282 = vmatpush1.bf16.msra.mxu0 0
      %2283 = vmatprep.subr.bf16.mxu0 0
      %2284 = vmatpush1.bf16.msra.mxu0 0
      %2285 = vmatprep.subr.bf16.mxu0 0
      %2286 = vmatpush1.bf16.msra.mxu0 0
      %2287 = vmatprep.subr.bf16.mxu0 0
      %2288 = vmatpush1.bf16.msra.mxu0 0
      %2289 = vmatprep.mubr.bf16.mxu0 0
      %2290 = vmatmul.mubr.bf16.gmra.mrb[0].mxu0 %v2252
      %v2291 = vpop.f32.mrb[0].mxu0
      %v2292 = vadd.f32 0.0, %v2291
      %v2293 = vpop.f32.mrb[0].mxu0
      %v2294 = vpop.f32.mrb[0].mxu0
      %v2295 = vpop.f32.mrb[0].mxu0
      %2296 = vdwg.mxu0
      %v2298 = vsel %vm369, %v1955, 0
      %v2301 = vsel %vm373, %v2034, 0
      %2303 = vmatprep.subr.bf16.mxu0 0
      %2304 = vmatpush1.bf16.msra.mxu0 %v2301
      %2305 = vmatprep.subr.bf16.mxu0 0
      %2306 = vmatpush1.bf16.msra.mxu0 0
      %2307 = vmatprep.subr.bf16.mxu0 0
      %2308 = vmatpush1.bf16.msra.mxu0 0
      %2309 = vmatprep.subr.bf16.mxu0 0
      %2310 = vmatpush1.bf16.msra.mxu0 0
      %2311 = vmatprep.subr.bf16.mxu0 0
      %2312 = vmatpush1.bf16.msra.mxu0 0
      %2313 = vmatprep.subr.bf16.mxu0 0
      %2314 = vmatpush1.bf16.msra.mxu0 0
      %2315 = vmatprep.subr.bf16.mxu0 0
      %2316 = vmatpush1.bf16.msra.mxu0 0
      %2317 = vmatprep.subr.bf16.mxu0 0
      %2318 = vmatpush1.bf16.msra.mxu0 0
      %2319 = vmatprep.subr.bf16.mxu0 0
      %2320 = vmatpush1.bf16.msra.mxu0 0
      %2321 = vmatprep.subr.bf16.mxu0 0
      %2322 = vmatpush1.bf16.msra.mxu0 0
      %2323 = vmatprep.subr.bf16.mxu0 0
      %2324 = vmatpush1.bf16.msra.mxu0 0
      %2325 = vmatprep.subr.bf16.mxu0 0
      %2326 = vmatpush1.bf16.msra.mxu0 0
      %2327 = vmatprep.subr.bf16.mxu0 0
      %2328 = vmatpush1.bf16.msra.mxu0 0
      %2329 = vmatprep.subr.bf16.mxu0 0
      %2330 = vmatpush1.bf16.msra.mxu0 0
      %2331 = vmatprep.subr.bf16.mxu0 0
      %2332 = vmatpush1.bf16.msra.mxu0 0
      %2333 = vmatprep.subr.bf16.mxu0 0
      %2334 = vmatpush1.bf16.msra.mxu0 0
      %2335 = vmatprep.mubr.bf16.mxu0 0
      %2336 = vmatmul.mubr.bf16.gmra.mrb[0].mxu0 %v2298
      %v2337 = vpop.f32.mrb[0].mxu0
      %v2338 = vadd.f32 %v2292, %v2337
      %v2339 = vpop.f32.mrb[0].mxu0
      %v2340 = vpop.f32.mrb[0].mxu0
      %v2341 = vpop.f32.mrb[0].mxu0
      %2342 = vdwg.mxu0
      %s2343 = scalar_lea.vmem %s5, 384
      %v2344 = vld [vmem:[%s2343] sm:$0xf]
      %v2345 = vld [vmem:[%s2343 + $0x4] sm:$0xf]
      %v2346 = vld [vmem:[%s2343 + $0x8] sm:$0xf]
      %v2347 = vld [vmem:[%s2343 + $0xc] sm:$0xf]
      %v2348 = vld [vmem:[%s2343 + $0x10] sm:$0xf]
      %v2349 = vld [vmem:[%s2343 + $0x14] sm:$0xf]
      %v2350 = vld [vmem:[%s2343 + $0x18] sm:$0xf]
      %v2351 = vld [vmem:[%s2343 + $0x1c] sm:$0xf]
      %v2352 = vld [vmem:[%s8 + $0xe] sm:$0x1]
      %v2353 = vlaneseq
      %v2354 = vshrl.u32 %v2353, 7
      %v2355 = vsub.s32 0, %v2354
      %v2356 = vrot.slane %v2352, %v2355
      %v2365 = vunpack.c.l.b16 %v2344
      %v2366 = vunpack.c.l.b16 %v2345
      %v2367 = vunpack.c.l.b16 %v2346
      %v2368 = vunpack.c.l.b16 %v2347
      %v2369 = vunpack.c.l.b16 %v2348
      %v2370 = vunpack.c.l.b16 %v2349
      %v2371 = vunpack.c.l.b16 %v2350
      %v2372 = vunpack.c.l.b16 %v2351
      %v2373 = vpack.c.b16 %v2366, %v2365
      %v2374 = vpack.c.b16 %v2368, %v2367
      %v2375 = vpack.c.b16 %v2370, %v2369
      %v2376 = vpack.c.b16 %v2372, %v2371
      %2381 = vmatprep.subr.bf16.mxu0 0
      %2382 = vmatpush1.bf16.msra.mxu0 %v2373
      %2383 = vmatprep.subr.bf16.mxu0 0
      %2384 = vmatpush1.bf16.msra.mxu0 %v2374
      %2385 = vmatprep.subr.bf16.mxu0 0
      %2386 = vmatpush1.bf16.msra.mxu0 %v2375
      %2387 = vmatprep.subr.bf16.mxu0 0
      %2388 = vmatpush1.bf16.msra.mxu0 %v2376
      %2389 = vmatprep.subr.bf16.mxu0 0
      %2390 = vmatpush1.bf16.msra.mxu0 0
      %2391 = vmatprep.subr.bf16.mxu0 0
      %2392 = vmatpush1.bf16.msra.mxu0 0
      %2393 = vmatprep.subr.bf16.mxu0 0
      %2394 = vmatpush1.bf16.msra.mxu0 0
      %2395 = vmatprep.subr.bf16.mxu0 0
      %2396 = vmatpush1.bf16.msra.mxu0 0
      %2397 = vmatprep.subr.bf16.mxu0 0
      %2398 = vmatpush1.bf16.msra.mxu0 0
      %2399 = vmatprep.subr.bf16.mxu0 0
      %2400 = vmatpush1.bf16.msra.mxu0 0
      %2401 = vmatprep.subr.bf16.mxu0 0
      %2402 = vmatpush1.bf16.msra.mxu0 0
      %2403 = vmatprep.subr.bf16.mxu0 0
      %2404 = vmatpush1.bf16.msra.mxu0 0
      %2405 = vmatprep.subr.bf16.mxu0 0
      %2406 = vmatpush1.bf16.msra.mxu0 0
      %2407 = vmatprep.subr.bf16.mxu0 0
      %2408 = vmatpush1.bf16.msra.mxu0 0
      %2409 = vmatprep.subr.bf16.mxu0 0
      %2410 = vmatpush1.bf16.msra.mxu0 0
      %2411 = vmatprep.subr.bf16.mxu0 0
      %2412 = vmatpush1.bf16.msra.mxu0 0
      %2413 = vmatprep.mubr.bf16.mxu0 0
      %2414 = vmatmul.mubr.bf16.gmra.mrb[0].mxu0 %v725
      %v2415 = vpop.f32.mrb[0].mxu0
      %v2416 = vadd.f32 %v2356, %v2415
      %v2417 = vpop.f32.mrb[0].mxu0
      %v2418 = vpop.f32.mrb[0].mxu0
      %v2419 = vpop.f32.mrb[0].mxu0
      %2420 = vdwg.mxu0
      %v2421 = vpack.c.bf16 %v2416, %v2416
      %v2423 = vsel %vm576, %v2421, 0
      %2425 = vmatprep.subr.bf16.mxu0 0
      %2426 = vmatpush1.bf16.xpose.msra.mxu0 %v2423
      %2427 = vmatprep.subr.bf16.mxu0 0
      %2428 = vmatpush1.bf16.xpose.msra.mxu0 0
      %2429 = vmatprep.subr.bf16.mxu0 0
      %2430 = vmatpush1.bf16.xpose.msra.mxu0 0
      %2431 = vmatprep.subr.bf16.mxu0 0
      %2432 = vmatpush1.bf16.xpose.msra.mxu0 0
      %2433 = vmatprep.subr.bf16.mxu0 0
      %2434 = vmatpush1.bf16.xpose.msra.mxu0 0
      %2435 = vmatprep.subr.bf16.mxu0 0
      %2436 = vmatpush1.bf16.xpose.msra.mxu0 0
      %2437 = vmatprep.subr.bf16.mxu0 0
      %2438 = vmatpush1.bf16.xpose.msra.mxu0 0
      %2439 = vmatprep.subr.bf16.mxu0 0
      %2440 = vmatpush1.bf16.xpose.msra.mxu0 0
      %2441 = vmatprep.subr.bf16.mxu0 0
      %2442 = vmatpush1.bf16.xpose.msra.mxu0 0
      %2443 = vmatprep.subr.bf16.mxu0 0
      %2444 = vmatpush1.bf16.xpose.msra.mxu0 0
      %2445 = vmatprep.subr.bf16.mxu0 0
      %2446 = vmatpush1.bf16.xpose.msra.mxu0 0
      %2447 = vmatprep.subr.bf16.mxu0 0
      %2448 = vmatpush1.bf16.xpose.msra.mxu0 0
      %2449 = vmatprep.subr.bf16.mxu0 0
      %2450 = vmatpush1.bf16.xpose.msra.mxu0 0
      %2451 = vmatprep.subr.bf16.mxu0 0
      %2452 = vmatpush1.bf16.xpose.msra.mxu0 0
      %2453 = vmatprep.subr.bf16.mxu0 0
      %2454 = vmatpush1.bf16.xpose.msra.mxu0 0
      %2455 = vmatprep.subr.bf16.mxu0 0
      %2456 = vmatpush1.bf16.xpose.msra.mxu0 0
      %2457 = vmatprep.mubr.bf16.mxu0 0
      %2458 = vmatmul.mubr.bf16.gmra.mrb[0].mxu0 %v1896
      %v2459 = vpop.f32.mrb[0].mxu0
      %v2460 = vadd.f32 0.0, %v2459
      %v2461 = vpop.f32.mrb[0].mxu0
      %v2462 = vpop.f32.mrb[0].mxu0
      %v2463 = vpop.f32.mrb[0].mxu0
      %2464 = vdwg.mxu0
      %v2465 = vsel %vm369, %v2460, -inf
      %2466 = vmax.xlane.f32.xlu0 %v2465
      %v2467 = vpop.xlane.xlu0 %2466
      %v2468 = vsub.f32 %v2460, %v2467
      %v2469 = vmul.f32 %v2468, 1.442695
      %v2470 = vpow.pop %v2469
      %v2471 = vsel %vm369, %v2470, 0.0
      %2472 = vadd.xlane.f32.xlu0 %v2471
      %v2473 = vpop.xlane.xlu0 %2472
      %v2474 = vrcp.pop %v2473
      %v2475 = vmul.f32 %v2473, %v2474
      %v2476 = vsub.f32 2.0, %v2475
      %v2477 = vmul.f32 %v2474, %v2476
      %v2478 = vmul.f32 %v2470, %v2477
      %v2479 = vpack.c.bf16 %v2478, %v2478
      %s2480 = scalar_lea.vmem %s5, 416
      %v2481 = vld [vmem:[%s2480] sm:$0xf]
      %v2482 = vld [vmem:[%s2480 + $0x4] sm:$0xf]
      %v2483 = vld [vmem:[%s2480 + $0x8] sm:$0xf]
      %v2484 = vld [vmem:[%s2480 + $0xc] sm:$0xf]
      %v2485 = vld [vmem:[%s2480 + $0x10] sm:$0xf]
      %v2486 = vld [vmem:[%s2480 + $0x14] sm:$0xf]
      %v2487 = vld [vmem:[%s2480 + $0x18] sm:$0xf]
      %v2488 = vld [vmem:[%s2480 + $0x1c] sm:$0xf]
      %v2489 = vld [vmem:[%s8 + $0x16] sm:$0x1]
      %v2490 = vlaneseq
      %v2491 = vshrl.u32 %v2490, 7
      %v2492 = vsub.s32 0, %v2491
      %v2493 = vrot.slane %v2489, %v2492
      %v2502 = vunpack.c.l.b16 %v2481
      %v2503 = vunpack.c.l.b16 %v2482
      %v2504 = vunpack.c.l.b16 %v2483
      %v2505 = vunpack.c.l.b16 %v2484
      %v2506 = vunpack.c.l.b16 %v2485
      %v2507 = vunpack.c.l.b16 %v2486
      %v2508 = vunpack.c.l.b16 %v2487
      %v2509 = vunpack.c.l.b16 %v2488
      %v2510 = vpack.c.b16 %v2503, %v2502
      %v2511 = vpack.c.b16 %v2505, %v2504
      %v2512 = vpack.c.b16 %v2507, %v2506
      %v2513 = vpack.c.b16 %v2509, %v2508
      %2518 = vmatprep.subr.bf16.mxu0 0
      %2519 = vmatpush1.bf16.msra.mxu0 %v2510
      %2520 = vmatprep.subr.bf16.mxu0 0
      %2521 = vmatpush1.bf16.msra.mxu0 %v2511
      %2522 = vmatprep.subr.bf16.mxu0 0
      %2523 = vmatpush1.bf16.msra.mxu0 %v2512
      %2524 = vmatprep.subr.bf16.mxu0 0
      %2525 = vmatpush1.bf16.msra.mxu0 %v2513
      %2526 = vmatprep.subr.bf16.mxu0 0
      %2527 = vmatpush1.bf16.msra.mxu0 0
      %2528 = vmatprep.subr.bf16.mxu0 0
      %2529 = vmatpush1.bf16.msra.mxu0 0
      %2530 = vmatprep.subr.bf16.mxu0 0
      %2531 = vmatpush1.bf16.msra.mxu0 0
      %2532 = vmatprep.subr.bf16.mxu0 0
      %2533 = vmatpush1.bf16.msra.mxu0 0
      %2534 = vmatprep.subr.bf16.mxu0 0
      %2535 = vmatpush1.bf16.msra.mxu0 0
      %2536 = vmatprep.subr.bf16.mxu0 0
      %2537 = vmatpush1.bf16.msra.mxu0 0
      %2538 = vmatprep.subr.bf16.mxu0 0
      %2539 = vmatpush1.bf16.msra.mxu0 0
      %2540 = vmatprep.subr.bf16.mxu0 0
      %2541 = vmatpush1.bf16.msra.mxu0 0
      %2542 = vmatprep.subr.bf16.mxu0 0
      %2543 = vmatpush1.bf16.msra.mxu0 0
      %2544 = vmatprep.subr.bf16.mxu0 0
      %2545 = vmatpush1.bf16.msra.mxu0 0
      %2546 = vmatprep.subr.bf16.mxu0 0
      %2547 = vmatpush1.bf16.msra.mxu0 0
      %2548 = vmatprep.subr.bf16.mxu0 0
      %2549 = vmatpush1.bf16.msra.mxu0 0
      %2550 = vmatprep.mubr.bf16.mxu0 0
      %2551 = vmatmul.mubr.bf16.gmra.mrb[0].mxu0 %v725
      %v2552 = vpop.f32.mrb[0].mxu0
      %v2553 = vadd.f32 %v2493, %v2552
      %v2554 = vpop.f32.mrb[0].mxu0
      %v2555 = vpop.f32.mrb[0].mxu0
      %v2556 = vpop.f32.mrb[0].mxu0
      %2557 = vdwg.mxu0
      %v2558 = vpack.c.bf16 %v2553, %v2553
      %v2560 = vsel %vm369, %v2479, 0
      %v2563 = vsel %vm373, %v2558, 0
      %2565 = vmatprep.subr.bf16.mxu0 0
      %2566 = vmatpush1.bf16.msra.mxu0 %v2563
      %2567 = vmatprep.subr.bf16.mxu0 0
      %2568 = vmatpush1.bf16.msra.mxu0 0
      %2569 = vmatprep.subr.bf16.mxu0 0
      %2570 = vmatpush1.bf16.msra.mxu0 0
      %2571 = vmatprep.subr.bf16.mxu0 0
      %2572 = vmatpush1.bf16.msra.mxu0 0
      %2573 = vmatprep.subr.bf16.mxu0 0
      %2574 = vmatpush1.bf16.msra.mxu0 0
      %2575 = vmatprep.subr.bf16.mxu0 0
      %2576 = vmatpush1.bf16.msra.mxu0 0
      %2577 = vmatprep.subr.bf16.mxu0 0
      %2578 = vmatpush1.bf16.msra.mxu0 0
      %2579 = vmatprep.subr.bf16.mxu0 0
      %2580 = vmatpush1.bf16.msra.mxu0 0
      %2581 = vmatprep.subr.bf16.mxu0 0
      %2582 = vmatpush1.bf16.msra.mxu0 0
      %2583 = vmatprep.subr.bf16.mxu0 0
      %2584 = vmatpush1.bf16.msra.mxu0 0
      %2585 = vmatprep.subr.bf16.mxu0 0
      %2586 = vmatpush1.bf16.msra.mxu0 0
      %2587 = vmatprep.subr.bf16.mxu0 0
      %2588 = vmatpush1.bf16.msra.mxu0 0
      %2589 = vmatprep.subr.bf16.mxu0 0
      %2590 = vmatpush1.bf16.msra.mxu0 0
      %2591 = vmatprep.subr.bf16.mxu0 0
      %2592 = vmatpush1.bf16.msra.mxu0 0
      %2593 = vmatprep.subr.bf16.mxu0 0
      %2594 = vmatpush1.bf16.msra.mxu0 0
      %2595 = vmatprep.subr.bf16.mxu0 0
      %2596 = vmatpush1.bf16.msra.mxu0 0
      %2597 = vmatprep.mubr.bf16.mxu0 0
      %2598 = vmatmul.mubr.bf16.gmra.mrb[0].mxu0 %v2560
      %v2599 = vpop.f32.mrb[0].mxu0
      %v2600 = vadd.f32 0.0, %v2599
      %v2601 = vpop.f32.mrb[0].mxu0
      %v2602 = vpop.f32.mrb[0].mxu0
      %v2603 = vpop.f32.mrb[0].mxu0
      %2604 = vdwg.mxu0
      %v2605 = vadd.f32 %v2338, %v2600
      %s2606 = scalar_lea.vmem %s5, 448
      %v2607 = vld [vmem:[%s2606] sm:$0xf]
      %v2608 = vld [vmem:[%s2606 + $0x4] sm:$0xf]
      %v2609 = vld [vmem:[%s2606 + $0x8] sm:$0xf]
      %v2610 = vld [vmem:[%s2606 + $0xc] sm:$0xf]
      %v2611 = vld [vmem:[%s2606 + $0x10] sm:$0xf]
      %v2612 = vld [vmem:[%s2606 + $0x14] sm:$0xf]
      %v2613 = vld [vmem:[%s2606 + $0x18] sm:$0xf]
      %v2614 = vld [vmem:[%s2606 + $0x1c] sm:$0xf]
      %v2615 = vld [vmem:[%s8 + $0xf] sm:$0x1]
      %v2616 = vlaneseq
      %v2617 = vshrl.u32 %v2616, 7
      %v2618 = vsub.s32 0, %v2617
      %v2619 = vrot.slane %v2615, %v2618
      %v2628 = vunpack.c.l.b16 %v2607
      %v2629 = vunpack.c.l.b16 %v2608
      %v2630 = vunpack.c.l.b16 %v2609
      %v2631 = vunpack.c.l.b16 %v2610
      %v2632 = vunpack.c.l.b16 %v2611
      %v2633 = vunpack.c.l.b16 %v2612
      %v2634 = vunpack.c.l.b16 %v2613
      %v2635 = vunpack.c.l.b16 %v2614
      %v2636 = vpack.c.b16 %v2629, %v2628
      %v2637 = vpack.c.b16 %v2631, %v2630
      %v2638 = vpack.c.b16 %v2633, %v2632
      %v2639 = vpack.c.b16 %v2635, %v2634
      %2644 = vmatprep.subr.bf16.mxu0 0
      %2645 = vmatpush1.bf16.msra.mxu0 %v2636
      %2646 = vmatprep.subr.bf16.mxu0 0
      %2647 = vmatpush1.bf16.msra.mxu0 %v2637
      %2648 = vmatprep.subr.bf16.mxu0 0
      %2649 = vmatpush1.bf16.msra.mxu0 %v2638
      %2650 = vmatprep.subr.bf16.mxu0 0
      %2651 = vmatpush1.bf16.msra.mxu0 %v2639
      %2652 = vmatprep.subr.bf16.mxu0 0
      %2653 = vmatpush1.bf16.msra.mxu0 0
      %2654 = vmatprep.subr.bf16.mxu0 0
      %2655 = vmatpush1.bf16.msra.mxu0 0
      %2656 = vmatprep.subr.bf16.mxu0 0
      %2657 = vmatpush1.bf16.msra.mxu0 0
      %2658 = vmatprep.subr.bf16.mxu0 0
      %2659 = vmatpush1.bf16.msra.mxu0 0
      %2660 = vmatprep.subr.bf16.mxu0 0
      %2661 = vmatpush1.bf16.msra.mxu0 0
      %2662 = vmatprep.subr.bf16.mxu0 0
      %2663 = vmatpush1.bf16.msra.mxu0 0
      %2664 = vmatprep.subr.bf16.mxu0 0
      %2665 = vmatpush1.bf16.msra.mxu0 0
      %2666 = vmatprep.subr.bf16.mxu0 0
      %2667 = vmatpush1.bf16.msra.mxu0 0
      %2668 = vmatprep.subr.bf16.mxu0 0
      %2669 = vmatpush1.bf16.msra.mxu0 0
      %2670 = vmatprep.subr.bf16.mxu0 0
      %2671 = vmatpush1.bf16.msra.mxu0 0
      %2672 = vmatprep.subr.bf16.mxu0 0
      %2673 = vmatpush1.bf16.msra.mxu0 0
      %2674 = vmatprep.subr.bf16.mxu0 0
      %2675 = vmatpush1.bf16.msra.mxu0 0
      %2676 = vmatprep.mubr.bf16.mxu0 0
      %2677 = vmatmul.mubr.bf16.gmra.mrb[0].mxu0 %v725
      %v2678 = vpop.f32.mrb[0].mxu0
      %v2679 = vadd.f32 %v2619, %v2678
      %v2680 = vpop.f32.mrb[0].mxu0
      %v2681 = vpop.f32.mrb[0].mxu0
      %v2682 = vpop.f32.mrb[0].mxu0
      %2683 = vdwg.mxu0
      %v2684 = vpack.c.bf16 %v2679, %v2679
      %v2686 = vsel %vm576, %v2684, 0
      %2688 = vmatprep.subr.bf16.mxu0 0
      %2689 = vmatpush1.bf16.xpose.msra.mxu0 %v2686
      %2690 = vmatprep.subr.bf16.mxu0 0
      %2691 = vmatpush1.bf16.xpose.msra.mxu0 0
      %2692 = vmatprep.subr.bf16.mxu0 0
      %2693 = vmatpush1.bf16.xpose.msra.mxu0 0
      %2694 = vmatprep.subr.bf16.mxu0 0
      %2695 = vmatpush1.bf16.xpose.msra.mxu0 0
      %2696 = vmatprep.subr.bf16.mxu0 0
      %2697 = vmatpush1.bf16.xpose.msra.mxu0 0
      %2698 = vmatprep.subr.bf16.mxu0 0
      %2699 = vmatpush1.bf16.xpose.msra.mxu0 0
      %2700 = vmatprep.subr.bf16.mxu0 0
      %2701 = vmatpush1.bf16.xpose.msra.mxu0 0
      %2702 = vmatprep.subr.bf16.mxu0 0
      %2703 = vmatpush1.bf16.xpose.msra.mxu0 0
      %2704 = vmatprep.subr.bf16.mxu0 0
      %2705 = vmatpush1.bf16.xpose.msra.mxu0 0
      %2706 = vmatprep.subr.bf16.mxu0 0
      %2707 = vmatpush1.bf16.xpose.msra.mxu0 0
      %2708 = vmatprep.subr.bf16.mxu0 0
      %2709 = vmatpush1.bf16.xpose.msra.mxu0 0
      %2710 = vmatprep.subr.bf16.mxu0 0
      %2711 = vmatpush1.bf16.xpose.msra.mxu0 0
      %2712 = vmatprep.subr.bf16.mxu0 0
      %2713 = vmatpush1.bf16.xpose.msra.mxu0 0
      %2714 = vmatprep.subr.bf16.mxu0 0
      %2715 = vmatpush1.bf16.xpose.msra.mxu0 0
      %2716 = vmatprep.subr.bf16.mxu0 0
      %2717 = vmatpush1.bf16.xpose.msra.mxu0 0
      %2718 = vmatprep.subr.bf16.mxu0 0
      %2719 = vmatpush1.bf16.xpose.msra.mxu0 0
      %2720 = vmatprep.mubr.bf16.mxu0 0
      %2721 = vmatmul.mubr.bf16.gmra.mrb[0].mxu0 %v1896
      %v2722 = vpop.f32.mrb[0].mxu0
      %v2723 = vadd.f32 0.0, %v2722
      %v2724 = vpop.f32.mrb[0].mxu0
      %v2725 = vpop.f32.mrb[0].mxu0
      %v2726 = vpop.f32.mrb[0].mxu0
      %2727 = vdwg.mxu0
      %v2728 = vsel %vm369, %v2723, -inf
      %2729 = vmax.xlane.f32.xlu0 %v2728
      %v2730 = vpop.xlane.xlu0 %2729
      %v2731 = vsub.f32 %v2723, %v2730
      %v2732 = vmul.f32 %v2731, 1.442695
      %v2733 = vpow.pop %v2732
      %v2734 = vsel %vm369, %v2733, 0.0
      %2735 = vadd.xlane.f32.xlu0 %v2734
      %v2736 = vpop.xlane.xlu0 %2735
      %v2737 = vrcp.pop %v2736
      %v2738 = vmul.f32 %v2736, %v2737
      %v2739 = vsub.f32 2.0, %v2738
      %v2740 = vmul.f32 %v2737, %v2739
      %v2741 = vmul.f32 %v2733, %v2740
      %v2742 = vpack.c.bf16 %v2741, %v2741
      %s2743 = scalar_lea.vmem %s5, 480
      %v2744 = vld [vmem:[%s2743] sm:$0xf]
      %v2745 = vld [vmem:[%s2743 + $0x4] sm:$0xf]
      %v2746 = vld [vmem:[%s2743 + $0x8] sm:$0xf]
      %v2747 = vld [vmem:[%s2743 + $0xc] sm:$0xf]
      %v2748 = vld [vmem:[%s2743 + $0x10] sm:$0xf]
      %v2749 = vld [vmem:[%s2743 + $0x14] sm:$0xf]
      %v2750 = vld [vmem:[%s2743 + $0x18] sm:$0xf]
      %v2751 = vld [vmem:[%s2743 + $0x1c] sm:$0xf]
      %v2752 = vld [vmem:[%s8 + $0x17] sm:$0x1]
      %v2753 = vlaneseq
      %v2754 = vshrl.u32 %v2753, 7
      %v2755 = vsub.s32 0, %v2754
      %v2756 = vrot.slane %v2752, %v2755
      %v2765 = vunpack.c.l.b16 %v2744
      %v2766 = vunpack.c.l.b16 %v2745
      %v2767 = vunpack.c.l.b16 %v2746
      %v2768 = vunpack.c.l.b16 %v2747
      %v2769 = vunpack.c.l.b16 %v2748
      %v2770 = vunpack.c.l.b16 %v2749
      %v2771 = vunpack.c.l.b16 %v2750
      %v2772 = vunpack.c.l.b16 %v2751
      %v2773 = vpack.c.b16 %v2766, %v2765
      %v2774 = vpack.c.b16 %v2768, %v2767
      %v2775 = vpack.c.b16 %v2770, %v2769
      %v2776 = vpack.c.b16 %v2772, %v2771
      %2781 = vmatprep.subr.bf16.mxu0 0
      %2782 = vmatpush1.bf16.msra.mxu0 %v2773
      %2783 = vmatprep.subr.bf16.mxu0 0
      %2784 = vmatpush1.bf16.msra.mxu0 %v2774
      %2785 = vmatprep.subr.bf16.mxu0 0
      %2786 = vmatpush1.bf16.msra.mxu0 %v2775
      %2787 = vmatprep.subr.bf16.mxu0 0
      %2788 = vmatpush1.bf16.msra.mxu0 %v2776
      %2789 = vmatprep.subr.bf16.mxu0 0
      %2790 = vmatpush1.bf16.msra.mxu0 0
      %2791 = vmatprep.subr.bf16.mxu0 0
      %2792 = vmatpush1.bf16.msra.mxu0 0
      %2793 = vmatprep.subr.bf16.mxu0 0
      %2794 = vmatpush1.bf16.msra.mxu0 0
      %2795 = vmatprep.subr.bf16.mxu0 0
      %2796 = vmatpush1.bf16.msra.mxu0 0
      %2797 = vmatprep.subr.bf16.mxu0 0
      %2798 = vmatpush1.bf16.msra.mxu0 0
      %2799 = vmatprep.subr.bf16.mxu0 0
      %2800 = vmatpush1.bf16.msra.mxu0 0
      %2801 = vmatprep.subr.bf16.mxu0 0
      %2802 = vmatpush1.bf16.msra.mxu0 0
      %2803 = vmatprep.subr.bf16.mxu0 0
      %2804 = vmatpush1.bf16.msra.mxu0 0
      %2805 = vmatprep.subr.bf16.mxu0 0
      %2806 = vmatpush1.bf16.msra.mxu0 0
      %2807 = vmatprep.subr.bf16.mxu0 0
      %2808 = vmatpush1.bf16.msra.mxu0 0
      %2809 = vmatprep.subr.bf16.mxu0 0
      %2810 = vmatpush1.bf16.msra.mxu0 0
      %2811 = vmatprep.subr.bf16.mxu0 0
      %2812 = vmatpush1.bf16.msra.mxu0 0
      %2813 = vmatprep.mubr.bf16.mxu0 0
      %2814 = vmatmul.mubr.bf16.gmra.mrb[0].mxu0 %v725
      %v2815 = vpop.f32.mrb[0].mxu0
      %v2816 = vadd.f32 %v2756, %v2815
      %v2817 = vpop.f32.mrb[0].mxu0
      %v2818 = vpop.f32.mrb[0].mxu0
      %v2819 = vpop.f32.mrb[0].mxu0
      %2820 = vdwg.mxu0
      %v2821 = vpack.c.bf16 %v2816, %v2816
      %v2823 = vsel %vm369, %v2742, 0
      %v2826 = vsel %vm373, %v2821, 0
      %2828 = vmatprep.subr.bf16.mxu0 0
      %2829 = vmatpush1.bf16.msra.mxu0 %v2826
      %2830 = vmatprep.subr.bf16.mxu0 0
      %2831 = vmatpush1.bf16.msra.mxu0 0
      %2832 = vmatprep.subr.bf16.mxu0 0
      %2833 = vmatpush1.bf16.msra.mxu0 0
      %2834 = vmatprep.subr.bf16.mxu0 0
      %2835 = vmatpush1.bf16.msra.mxu0 0
      %2836 = vmatprep.subr.bf16.mxu0 0
      %2837 = vmatpush1.bf16.msra.mxu0 0
      %2838 = vmatprep.subr.bf16.mxu0 0
      %2839 = vmatpush1.bf16.msra.mxu0 0
      %2840 = vmatprep.subr.bf16.mxu0 0
      %2841 = vmatpush1.bf16.msra.mxu0 0
      %2842 = vmatprep.subr.bf16.mxu0 0
      %2843 = vmatpush1.bf16.msra.mxu0 0
      %2844 = vmatprep.subr.bf16.mxu0 0
      %2845 = vmatpush1.bf16.msra.mxu0 0
      %2846 = vmatprep.subr.bf16.mxu0 0
      %2847 = vmatpush1.bf16.msra.mxu0 0
      %2848 = vmatprep.subr.bf16.mxu0 0
      %2849 = vmatpush1.bf16.msra.mxu0 0
      %2850 = vmatprep.subr.bf16.mxu0 0
      %2851 = vmatpush1.bf16.msra.mxu0 0
      %2852 = vmatprep.subr.bf16.mxu0 0
      %2853 = vmatpush1.bf16.msra.mxu0 0
      %2854 = vmatprep.subr.bf16.mxu0 0
      %2855 = vmatpush1.bf16.msra.mxu0 0
      %2856 = vmatprep.subr.bf16.mxu0 0
      %2857 = vmatpush1.bf16.msra.mxu0 0
      %2858 = vmatprep.subr.bf16.mxu0 0
      %2859 = vmatpush1.bf16.msra.mxu0 0
      %2860 = vmatprep.mubr.bf16.mxu0 0
      %2861 = vmatmul.mubr.bf16.gmra.mrb[0].mxu0 %v2823
      %v2862 = vpop.f32.mrb[0].mxu0
      %v2863 = vadd.f32 0.0, %v2862
      %v2864 = vpop.f32.mrb[0].mxu0
      %v2865 = vpop.f32.mrb[0].mxu0
      %v2866 = vpop.f32.mrb[0].mxu0
      %2867 = vdwg.mxu0
      %v2868 = vadd.f32 %v2605, %v2863
      %v2869 = vadd.f32 %v1748, %v2868
      %v2870 = vld [vmem:[%s8 + $0x5] sm:$0x1]
      %v2871 = vlaneseq
      %v2872 = vshrl.u32 %v2871, 7
      %v2873 = vsub.s32 0, %v2872
      %v2874 = vrot.slane %v2870, %v2873
      %v2875 = vadd.f32 %v2869, %v2874
      %v2876 = vpack.c.bf16 %v2875, %v2875
      %s2877 = scalar_lea.vmem %s4, 48
      %v2878 = vld [vmem:[%s2877] sm:$0xf]
      %v2879 = vld [vmem:[%s2877 + $0x4] sm:$0xf]
      %v2880 = vld [vmem:[%s2877 + $0x8] sm:$0xf]
      %v2881 = vld [vmem:[%s2877 + $0xc] sm:$0xf]
      %v2882 = vld [vmem:[%s8 + $0x6] sm:$0x1]
      %v2883 = vlaneseq
      %v2884 = vshrl.u32 %v2883, 7
      %v2885 = vsub.s32 0, %v2884
      %v2886 = vrot.slane %v2882, %v2885
      %v2891 = vunpack.c.l.b16 %v2878
      %v2892 = vunpack.c.l.b16 %v2879
      %v2893 = vunpack.c.l.b16 %v2880
      %v2894 = vunpack.c.l.b16 %v2881
      %v2895 = vpack.c.b16 %v2892, %v2891
      %v2896 = vpack.c.b16 %v2894, %v2893
      %v2900 = vsel %vm576, %v2876, 0
      %2902 = vmatprep.subr.bf16.mxu0 0
      %2903 = vmatpush1.bf16.msra.mxu0 %v2895
      %2904 = vmatprep.subr.bf16.mxu0 0
      %2905 = vmatpush1.bf16.msra.mxu0 %v2896
      %2906 = vmatprep.subr.bf16.mxu0 0
      %2907 = vmatpush1.bf16.msra.mxu0 0
      %2908 = vmatprep.subr.bf16.mxu0 0
      %2909 = vmatpush1.bf16.msra.mxu0 0
      %2910 = vmatprep.subr.bf16.mxu0 0
      %2911 = vmatpush1.bf16.msra.mxu0 0
      %2912 = vmatprep.subr.bf16.mxu0 0
      %2913 = vmatpush1.bf16.msra.mxu0 0
      %2914 = vmatprep.subr.bf16.mxu0 0
      %2915 = vmatpush1.bf16.msra.mxu0 0
      %2916 = vmatprep.subr.bf16.mxu0 0
      %2917 = vmatpush1.bf16.msra.mxu0 0
      %2918 = vmatprep.subr.bf16.mxu0 0
      %2919 = vmatpush1.bf16.msra.mxu0 0
      %2920 = vmatprep.subr.bf16.mxu0 0
      %2921 = vmatpush1.bf16.msra.mxu0 0
      %2922 = vmatprep.subr.bf16.mxu0 0
      %2923 = vmatpush1.bf16.msra.mxu0 0
      %2924 = vmatprep.subr.bf16.mxu0 0
      %2925 = vmatpush1.bf16.msra.mxu0 0
      %2926 = vmatprep.subr.bf16.mxu0 0
      %2927 = vmatpush1.bf16.msra.mxu0 0
      %2928 = vmatprep.subr.bf16.mxu0 0
      %2929 = vmatpush1.bf16.msra.mxu0 0
      %2930 = vmatprep.subr.bf16.mxu0 0
      %2931 = vmatpush1.bf16.msra.mxu0 0
      %2932 = vmatprep.subr.bf16.mxu0 0
      %2933 = vmatpush1.bf16.msra.mxu0 0
      %2934 = vmatprep.mubr.bf16.mxu0 0
      %2935 = vmatmul.mubr.bf16.gmra.mrb[0].mxu0 %v2900
      %v2936 = vpop.f32.mrb[0].mxu0
      %v2937 = vadd.f32 %v2886, %v2936
      %v2938 = vpop.f32.mrb[0].mxu0
      %v2939 = vpop.f32.mrb[0].mxu0
      %v2940 = vpop.f32.mrb[0].mxu0
      %2941 = vdwg.mxu0
      %v2942 = vmax.f32 %v2937, 0.0
      %v2943 = vpack.c.bf16 %v2942, %v2942
      %v2944 = vld [vmem:[%s6] sm:$0xf]
      %v2945 = vld [vmem:[%s6 + $0x4] sm:$0xf]
      %v2946 = vld [vmem:[%s6 + $0x8] sm:$0xf]
      %v2947 = vld [vmem:[%s6 + $0xc] sm:$0xf]
      %v2948 = vld [vmem:[%s9] sm:$0x1]
      %v2950 = vlaneseq
      %v2951 = vshrl.u32 %v2950, 7
      %v2952 = vsub.s32 0, %v2951
      %v2953 = vrot.slane %v2948, %v2952
      %v2959 = vunpack.c.l.b16 %v2944
      %v2960 = vunpack.c.l.b16 %v2945
      %v2961 = vunpack.c.l.b16 %v2946
      %v2962 = vunpack.c.l.b16 %v2947
      %v2963 = vpack.c.b16 %v2960, %v2959
      %v2964 = vpack.c.b16 %v2962, %v2961
      %v2968 = vsel %vm576, %v2943, 0
      %2970 = vmatprep.subr.bf16.mxu0 0
      %2971 = vmatpush1.bf16.msra.mxu0 %v2963
      %2972 = vmatprep.subr.bf16.mxu0 0
      %2973 = vmatpush1.bf16.msra.mxu0 %v2964
      %2974 = vmatprep.subr.bf16.mxu0 0
      %2975 = vmatpush1.bf16.msra.mxu0 0
      %2976 = vmatprep.subr.bf16.mxu0 0
      %2977 = vmatpush1.bf16.msra.mxu0 0
      %2978 = vmatprep.subr.bf16.mxu0 0
      %2979 = vmatpush1.bf16.msra.mxu0 0
      %2980 = vmatprep.subr.bf16.mxu0 0
      %2981 = vmatpush1.bf16.msra.mxu0 0
      %2982 = vmatprep.subr.bf16.mxu0 0
      %2983 = vmatpush1.bf16.msra.mxu0 0
      %2984 = vmatprep.subr.bf16.mxu0 0
      %2985 = vmatpush1.bf16.msra.mxu0 0
      %2986 = vmatprep.subr.bf16.mxu0 0
      %2987 = vmatpush1.bf16.msra.mxu0 0
      %2988 = vmatprep.subr.bf16.mxu0 0
      %2989 = vmatpush1.bf16.msra.mxu0 0
      %2990 = vmatprep.subr.bf16.mxu0 0
      %2991 = vmatpush1.bf16.msra.mxu0 0
      %2992 = vmatprep.subr.bf16.mxu0 0
      %2993 = vmatpush1.bf16.msra.mxu0 0
      %2994 = vmatprep.subr.bf16.mxu0 0
      %2995 = vmatpush1.bf16.msra.mxu0 0
      %2996 = vmatprep.subr.bf16.mxu0 0
      %2997 = vmatpush1.bf16.msra.mxu0 0
      %2998 = vmatprep.subr.bf16.mxu0 0
      %2999 = vmatpush1.bf16.msra.mxu0 0
      %3000 = vmatprep.subr.bf16.mxu0 0
      %3001 = vmatpush1.bf16.msra.mxu0 0
      %3002 = vmatprep.mubr.bf16.mxu0 0
      %3003 = vmatmul.mubr.bf16.gmra.mrb[0].mxu0 %v2968
      %v3004 = vpop.f32.mrb[0].mxu0
      %v3005 = vadd.f32 %v2953, %v3004
      %v3006 = vpop.f32.mrb[0].mxu0
      %v3007 = vpop.f32.mrb[0].mxu0
      %v3008 = vpop.f32.mrb[0].mxu0
      %3009 = vdwg.mxu0
      %3010 = vst.msk [vmem:[%s359] sm:$0xff] %vm369, %v3005
      %p3011 = scmp.lt.s32.totalorder %s21, 1
      %s3012 = scalar_select %p3011, %s21, 1
      %s3013 = smul.addr %s3012, 8
      %s3014 = scalar_lea.vmem %s10, %s3013
      // Predicated region
      $region61: #{baseline_attn_cnp_forward.1} parent=59 // pred_check
        %p3015 = pneg %p254
      $region62: #{baseline_attn_cnp_forward.1} parent=59 // pred_check_branch
        %3017 = sbr.rel (%p3015) target = $region64
      $region63: #{baseline_attn_cnp_forward.1} parent=59 // pred_region
        _
      $region64: #{baseline_attn_cnp_forward.1} parent=59 // pred_fallthru
        _
    $region60: #{baseline_attn_cnp_forward.1} parent=5 // pred_fallthru
      _
    %p3018 = scmp.le.s32.totalorder 2, %s16
    // Predicated region
    $region65: #{baseline_attn_cnp_forward.1} parent=5 // pred_check
      %p3019 = pneg %p3018
    $region66: #{baseline_attn_cnp_forward.1} parent=5 // pred_check_branch
      %3021 = sbr.rel (%p3019) target = $region68
    $region67: #{baseline_attn_cnp_forward.1} parent=5 // pred_region
      %s3022 = ssub.s32 %s16, 2
      // Predicated region
      $region69: #{baseline_attn_cnp_forward.1} parent=67 // pred_check
        %p3023 = pneg %p260
      $region70: #{baseline_attn_cnp_forward.1} parent=67 // pred_check_branch
        %3025 = sbr.rel (%p3023) target = $region72
      $region71: #{baseline_attn_cnp_forward.1} parent=67 // pred_region
        %p3026 = scmp.lt.s32.totalorder %s22, 1
        %s3027 = scalar_select %p3026, %s22, 1
        %s3028 = smul.addr %s3027, 8
        %s3029 = scalar_lea.vmem %s10, %s3028
      $region72: #{baseline_attn_cnp_forward.1} parent=67 // pred_fallthru
        _
    $region68: #{baseline_attn_cnp_forward.1} parent=5 // pred_fallthru
      _
  $region6: #{baseline_attn_cnp_forward.1} parent=0 // loop_footer
    %s20 = sadd.s32 1, %s16
  $region7: #{baseline_attn_cnp_forward.1} parent=0 // loop_footer_branch
    %15 = sbr.rel target = $region3
  $region8: #{baseline_attn_cnp_forward.1} parent=0 // loop_exit
    _

</llo_original>
